<compile_context>
chip_gen: v5e
topology: v5e:2x2
jax: 0.10.0
libtpu: 0.0.40
codegen_flags: <defaults>
</compile_context>

<pallas_src>
import functools
import math

import jax
import jax.numpy as jnp
from jax.experimental import pallas as pl
from jax.experimental.pallas import tpu as pltpu

MXU_DTYPE = jnp.bfloat16   # weights + matmul operands; accumulation stays f32
LN_EPS = 1e-5              # torch.nn.LayerNorm default
NEG_BIG = -1e30            # finite "-inf": keeps fully-masked rows NaN-free


# ----------------------------- tiling helpers -----------------------------

def _row_tile(m):
    # full slab if small, else 256 rows (multiple of 8) - fits v7x's 64 MiB
    # VMEM together with streamed bf16 weights.
    return m if m <= 256 else 256


def _inner_tile(h):
    # d_inner is a contraction dim for the second MLP matmul -> only tile it
    # when the tile divides it exactly (no padded garbage in the reduction).
    if h <= 512:
        return h
    for t in (512, 256, 128):
        if h % t == 0:
            return t
    return h


def _vocab_tile(vp):
    return vp if vp <= 1024 else 512


def _cparams(semantics, need_bytes):
    # vmem_limit_bytes derived from resident block bytes with headroom,
    # capped at 64 MiB (v7x physical VMEM).
    limit = int(min(max(2 * need_bytes + (4 << 20), 32 << 20), 64 << 20))
    return pltpu.CompilerParams(dimension_semantics=semantics,
                                vmem_limit_bytes=limit)


# ----------------------------- in-kernel math -----------------------------

def _ln(x, g, b):
    mean = jnp.mean(x, axis=-1, keepdims=True)
    xc = x - mean
    var = jnp.mean(xc * xc, axis=-1, keepdims=True)   # biased, like torch
    return xc * jax.lax.rsqrt(var + LN_EPS) * g + b


def _erf_approx(x):
    # Abramowitz & Stegun 7.1.26 (|err| < 1.5e-7); exp() goes to the EUP.
    a1, a2, a3, a4, a5 = (0.254829592, -0.284496736, 1.421413741,
                          -1.453152027, 1.061405429)
    p = 0.3275911
    sign = jnp.where(x >= 0.0, 1.0, -1.0)
    ax = jnp.abs(x)
    t = 1.0 / (1.0 + p * ax)
    poly = ((((a5 * t + a4) * t + a3) * t + a2) * t + a1) * t
    return sign * (1.0 - poly * jnp.exp(-ax * ax))


def _gelu(x):
    return 0.5 * x * (1.0 + _erf_approx(x * (1.0 / math.sqrt(2.0))))


# ----------------------------- Pallas kernels -----------------------------

def _ln_proj_kernel(x_ref, g_ref, b_ref, w_ref, wb_ref, xn_ref, y_ref):
    # xn = LN(x); y = xn @ W + b      (fused LayerNorm + projection)
    xn = _ln(x_ref[...], g_ref[...], b_ref[...])
    xn_ref[...] = xn
    y_ref[...] = (jnp.dot(xn.astype(MXU_DTYPE), w_ref[...],
                          preferred_element_type=jnp.float32) + wb_ref[...])


def _add_ln_proj_kernel(a_ref, r_ref, g_ref, b_ref, w_ref, wb_ref,
                        xn_ref, y_ref):
    # xn = LN(a + r); y = xn @ W + b  (fused residual + LayerNorm + projection)
    xn = _ln(a_ref[...] + r_ref[...], g_ref[...], b_ref[...])
    xn_ref[...] = xn
    y_ref[...] = (jnp.dot(xn.astype(MXU_DTYPE), w_ref[...],
                          preferred_element_type=jnp.float32) + wb_ref[...])


def _proj_kernel(x_ref, w_ref, wb_ref, y_ref):
    y_ref[...] = (jnp.dot(x_ref[...].astype(MXU_DTYPE), w_ref[...],
                          preferred_element_type=jnp.float32) + wb_ref[...])


def _add_ln_mlp_kernel(a_ref, r_ref, g_ref, b_ref,
                       w1_ref, b1_ref, w2_ref, b2_ref,
                       o_ref, xn_sc, acc_sc):
    # x = LN(a + r); y = GELU((x@W1+b1)@W2+b2) + x   (GELU last, like module)
    # W1/W2 streamed along d_inner (inner "arbitrary" grid axis); f32 acc.
    k = pl.program_id(1)

    @pl.when(k == 0)
    def _():
        xn_sc[...] = _ln(a_ref[...] + r_ref[...], g_ref[...], b_ref[...])
        acc_sc[...] = jnp.zeros_like(acc_sc)

    h = (jnp.dot(xn_sc[...].astype(MXU_DTYPE), w1_ref[...],
                 preferred_element_type=jnp.float32) + b1_ref[...])
    acc_sc[...] += jnp.dot(h.astype(MXU_DTYPE), w2_ref[...],
                           preferred_element_type=jnp.float32)

    @pl.when(k == pl.num_programs(1) - 1)
    def _():
        o_ref[...] = _gelu(acc_sc[...] + b2_ref[...]) + xn_sc[...]


def _ln_kernel(x_ref, g_ref, b_ref, o_ref):
    o_ref[...] = _ln(x_ref[...], g_ref[...], b_ref[...])


def _logits_kernel(x_ref, w_ref, o_ref):
    # x (tm, D) f32 @ w (tn, D) bf16 ^T -> (tm, tn) f32 (trans_b contraction,
    # no pre-transposed duplicate of the vocab table needed).
    o_ref[...] = jax.lax.dot_general(
        x_ref[...].astype(MXU_DTYPE), w_ref[...],
        dimension_numbers=(((1,), (1,)), ((), ())),
        preferred_element_type=jnp.float32)


def _attn_heads(q_all, k_all, v_all, bias, n_heads, out_dtype):
    # q_all: (T, D), k_all/v_all: (S, D), bias broadcastable to (T, S).
    T, D = q_all.shape
    dh = D // n_heads
    scale = 1.0 / math.sqrt(dh)                       # torch SDPA default
    outs = []
    for h in range(n_heads):                          # static unroll over heads
        sl = slice(h * dh, (h + 1) * dh)
        q = (q_all[:, sl] * scale).astype(MXU_DTYPE)
        k = k_all[:, sl].astype(MXU_DTYPE)
        v = v_all[:, sl].astype(MXU_DTYPE)
        s = jax.lax.dot_general(q, k, (((1,), (1,)), ((), ())),
                                preferred_element_type=jnp.float32)
        s = s + bias
        m = jnp.max(s, axis=-1, keepdims=True)
        e = jnp.exp(s - m)
        p = e * pl.reciprocal(jnp.sum(e, axis=-1, keepdims=True), approx=True)
        outs.append(jnp.dot(p.astype(MXU_DTYPE), v,
                            preferred_element_type=jnp.float32))
    # Single lane-dense (T, D) store (no per-head masked partial stores).
    return jnp.concatenate(outs, axis=-1).astype(out_dtype)


def _attn_pad_kernel(q_ref, k_ref, v_ref, bias_ref, o_ref, *, n_heads):
    # bias_ref[0]: (1, S) additive 0 / -1e30, broadcast over heads & queries.
    o_ref[0] = _attn_heads(q_ref[0], k_ref[0], v_ref[0], bias_ref[0],
                           n_heads, o_ref.dtype)


def _attn_causal_kernel(q_ref, k_ref, v_ref, o_ref, *, n_heads):
    T = q_ref.shape[1]
    S = k_ref.shape[1]
    q0 = pl.program_id(1) * T                        # absolute query offset
    row = jax.lax.broadcasted_iota(jnp.int32, (T, S), 0) + q0
    col = jax.lax.broadcasted_iota(jnp.int32, (T, S), 1)
    bias = jnp.where(row >= col, 0.0, NEG_BIG).astype(jnp.float32)
    o_ref[0] = _attn_heads(q_ref[0], k_ref[0], v_ref[0], bias,
                           n_heads, o_ref.dtype)


# ----------------------------- kernel wrappers -----------------------------

def _flat(x):
    return x.reshape(-1, x.shape[-1])


def ln_proj(x, g, b, w, wb, *, residual=None):
    """(optional x+residual) -> LayerNorm -> Linear.  Returns (ln_out, proj)."""
    lead = x.shape[:-1]
    D = x.shape[-1]
    P = w.shape[1]
    x2 = _flat(x)
    M = x2.shape[0]
    tm = _row_tile(M)

    row_d = pl.BlockSpec((tm, D), lambda i: (i, 0))
    row_p = pl.BlockSpec((tm, P), lambda i: (i, 0))
    vec_d = pl.BlockSpec((1, D), lambda i: (0, 0))
    vec_p = pl.BlockSpec((1, P), lambda i: (0, 0))
    # constant-index weight block -> single buffer (halves resident VMEM)
    w_spec = pl.BlockSpec((D, P), lambda i: (0, 0), pipeline_mode=pl.Buffered(1))

    if residual is None:
        kernel = _ln_proj_kernel
        args = (x2, g, b, w, wb)
        in_specs = [row_d, vec_d, vec_d, w_spec, vec_p]
        act_bytes = 4 * tm * D * 2
    else:
        kernel = _add_ln_proj_kernel
        args = (x2, _flat(residual), g, b, w, wb)
        in_specs = [row_d, row_d, vec_d, vec_d, w_spec, vec_p]
        act_bytes = 4 * tm * D * 4

    need = act_bytes + 2 * D * P + 4 * (2 * D + P) + 4 * tm * (D + P) * 2
    xn, y = pl.pallas_call(
        kernel,
        out_shape=(jax.ShapeDtypeStruct((M, D), jnp.float32),
                   jax.ShapeDtypeStruct((M, P), jnp.float32)),
        grid=(pl.cdiv(M, tm),),
        in_specs=in_specs,
        out_specs=(row_d, row_p),
        compiler_params=_cparams(("parallel",), need),
    )(*args)
    return xn.reshape(*lead, D), y.reshape(*lead, P)


def proj(x, w, wb):
    lead = x.shape[:-1]
    D = x.shape[-1]
    P = w.shape[1]
    x2 = _flat(x)
    M = x2.shape[0]
    tm = _row_tile(M)
    need = 4 * tm * D * 2 + 2 * D * P + 4 * P + 4 * tm * P * 2
    y = pl.pallas_call(
        _proj_kernel,
        out_shape=jax.ShapeDtypeStruct((M, P), jnp.float32),
        grid=(pl.cdiv(M, tm),),
        in_specs=[pl.BlockSpec((tm, D), lambda i: (i, 0)),
                  pl.BlockSpec((D, P), lambda i: (0, 0),
                               pipeline_mode=pl.Buffered(1)),
                  pl.BlockSpec((1, P), lambda i: (0, 0))],
        out_specs=pl.BlockSpec((tm, P), lambda i: (i, 0)),
        compiler_params=_cparams(("parallel",), need),
    )(x2, w, wb)
    return y.reshape(*lead, P)


def add_ln_mlp(a, r, g, b, w1, b1, w2, b2):
    """x = LN(a+r); out = GELU((x@W1+b1)@W2+b2) + x, tiled over d_inner."""
    lead = a.shape[:-1]
    D = a.shape[-1]
    H = w1.shape[1]
    a2, r2 = _flat(a), _flat(r)
    M = a2.shape[0]
    tm = _row_tile(M)
    tk = _inner_tile(H)

    row = pl.BlockSpec((tm, D), lambda i, k: (i, 0))
    vec_d = pl.BlockSpec((1, D), lambda i, k: (0, 0))
    need = (4 * tm * D * 4                 # a, r (double-buffered)
            + 2 * (D * tk + tk * D) * 2    # W1/W2 slices (double-buffered)
            + 4 * (tk + 3 * D)             # biases / LN params
            + 4 * tm * D * 2               # output
            + 4 * tm * (2 * D + tk))       # scratches + hidden temp

    out = pl.pallas_call(
        _add_ln_mlp_kernel,
        out_shape=jax.ShapeDtypeStruct((M, D), jnp.float32),
        grid=(pl.cdiv(M, tm), pl.cdiv(H, tk)),    # reduction axis (d_inner) last
        in_specs=[row, row, vec_d, vec_d,
                  pl.BlockSpec((D, tk), lambda i, k: (0, k)),
                  pl.BlockSpec((1, tk), lambda i, k: (0, k)),
                  pl.BlockSpec((tk, D), lambda i, k: (k, 0)),
                  vec_d],
        out_specs=row,
        scratch_shapes=[pltpu.VMEM((tm, D), jnp.float32),
                        pltpu.VMEM((tm, D), jnp.float32)],
        compiler_params=_cparams(("parallel", "arbitrary"), need),
    )(a2, r2, g, b, w1, b1, w2, b2)
    return out.reshape(*lead, D)


def layernorm(x, g, b):
    lead = x.shape[:-1]
    D = x.shape[-1]
    x2 = _flat(x)
    M = x2.shape[0]
    tm = _row_tile(M)
    row = pl.BlockSpec((tm, D), lambda i: (i, 0))
    need = 4 * tm * D * 4 + 4 * 2 * D
    out = pl.pallas_call(
        _ln_kernel,
        out_shape=jax.ShapeDtypeStruct((M, D), jnp.float32),
        grid=(pl.cdiv(M, tm),),
        in_specs=[row,
                  pl.BlockSpec((1, D), lambda i: (0, 0)),
                  pl.BlockSpec((1, D), lambda i: (0, 0))],
        out_specs=row,
        compiler_params=_cparams(("parallel",), need),
    )(x2, g, b)
    return out.reshape(*lead, D)


def mha_fused(q, k, v, n_heads, *, pad_bias=None, causal=False):
    """scaled_dot_product_attention (no output projection, as in the module).

    q/k/v: (N, T/S, d_model) already projected.  Heads are split IN-KERNEL so
    both input and output blocks stay lane-dense (last dim = d_model).
    pad_bias: (N, 1, S) additive 0 / -1e30.  Returns (N, T, d_model).
    """
    N, T, D = q.shape
    S = k.shape[1]
    tq = T if T <= 512 else 256                    # query-block grid axis
    grid = (N, pl.cdiv(T, tq))

    q_spec = pl.BlockSpec((1, tq, D), lambda b, qi: (b, qi, 0))
    kv_spec = pl.BlockSpec((1, S, D), lambda b, qi: (b, 0, 0))
    o_spec = pl.BlockSpec((1, tq, D), lambda b, qi: (b, qi, 0))
    out_shape = jax.ShapeDtypeStruct((N, T, D), jnp.float32)
    need = 4 * tq * D * 4 + 4 * S * D * 4 + 4 * S * 2 + 4 * tq * S * 3
    cp = _cparams(("parallel", "parallel"), need)

    if causal:
        kernel = functools.partial(_attn_causal_kernel, n_heads=n_heads)
        return pl.pallas_call(
            kernel, out_shape=out_shape, grid=grid,
            in_specs=[q_spec, kv_spec, kv_spec], out_specs=o_spec,
            compiler_params=cp,
        )(q, k, v)

    kernel = functools.partial(_attn_pad_kernel, n_heads=n_heads)
    return pl.pallas_call(
        kernel, out_shape=out_shape, grid=grid,
        in_specs=[q_spec, kv_spec, kv_spec,
                  pl.BlockSpec((1, 1, S), lambda b, qi: (b, 0, 0))],
        out_specs=o_spec, compiler_params=cp,
    )(q, k, v, pad_bias)


def logits_matmul(x, w_vocab_bf16, vocab):
    """x: (N, T, D) f32; w_vocab_bf16: (V_pad, D) bf16 (V_pad % 128 == 0).

    Vocab axis is the OUTER grid dim so each weight slice streams from HBM
    exactly once; output tiles are lane-dense (>=128 wide).
    """
    N, T, D = x.shape
    Vp = w_vocab_bf16.shape[0]
    x2 = x.reshape(-1, D)
    M = x2.shape[0]
    tm = _row_tile(M)
    tn = _vocab_tile(Vp)
    need = 4 * tm * D * 2 + 2 * tn * D * 2 + 4 * tm * tn * 2
    out = pl.pallas_call(
        _logits_kernel,
        out_shape=jax.ShapeDtypeStruct((M, Vp), jnp.float32),
        grid=(pl.cdiv(Vp, tn), pl.cdiv(M, tm)),     # vocab outer, rows inner
        in_specs=[pl.BlockSpec((tm, D), lambda j, i: (i, 0)),
                  pl.BlockSpec((tn, D), lambda j, i: (j, 0))],
        out_specs=pl.BlockSpec((tm, tn), lambda j, i: (i, j)),
        compiler_params=_cparams(("parallel", "parallel"), need),
    )(x2, w_vocab_bf16)
    return out[:, :vocab].reshape(N, T, vocab)


# ----------------------------- model forward -----------------------------

def sinusoidal_pe(length, d_model):
    # TODO(synk): positional_encoder is an injected Module in the PyTorch code;
    # the canonical additive sinusoidal encoding is used (dropout = identity).
    pos = jnp.arange(length, dtype=jnp.float32)[:, None]
    i = jnp.arange(0, d_model, 2, dtype=jnp.float32)
    div = jnp.exp(-math.log(10000.0) * i / d_model)
    pe = jnp.zeros((length, d_model), jnp.float32)
    pe = pe.at[:, 0::2].set(jnp.sin(pos * div))
    pe = pe.at[:, 1::2].set(jnp.cos(pos * div))
    return pe


def encoder_layer_fwd(p, source, pad_bias, n_heads):
    xn, qkv = ln_proj(source, p["ln1_g"], p["ln1_b"], p["w_qkv"], p["b_qkv"])
    q, k, v = jnp.split(qkv, 3, axis=-1)
    a = mha_fused(q, k, v, n_heads, pad_bias=pad_bias)
    # (a + xn) -> LN -> MLP -> + LN-output residual, all fused
    return add_ln_mlp(a, xn, p["ln2_g"], p["ln2_b"],
                      p["w1"], p["b1"], p["w2"], p["b2"])


def decoder_layer_fwd(p, target, source, pad_bias, n_heads):
    xn1, qkv = ln_proj(target, p["ln1_g"], p["ln1_b"],
                       p["w_qkv_self"], p["b_qkv_self"])
    q, k, v = jnp.split(qkv, 3, axis=-1)
    a = mha_fused(q, k, v, n_heads, causal=True)
    # (a + xn1) -> LN -> cross-attention query projection, fused
    xn2, q2 = ln_proj(a, p["ln2_g"], p["ln2_b"],
                      p["w_q_cross"], p["b_q_cross"], residual=xn1)
    kv = proj(source, p["w_kv_cross"], p["b_kv_cross"])
    k2, v2 = jnp.split(kv, 2, axis=-1)
    c = mha_fused(q2, k2, v2, n_heads, pad_bias=pad_bias)
    return add_ln_mlp(c, xn2, p["ln3_g"], p["ln3_b"],
                      p["w1"], p["b1"], p["w2"], p["b2"])


def encoder_decoder_fwd(params, target_ids, source_ids,
                        source_key_padding_mask, n_heads):
    N, s = source_ids.shape
    _, t = target_ids.shape
    d_model = params["embed"].shape[1]
    vocab = params["embed"].shape[0]

    # InputIdEncoder: embedding gather (XLA glue) + sinusoidal PE.
    # target_vocab_size=None -> target embedding is the SAME table as source.
    source = params["embed"][source_ids] + sinusoidal_pe(s, d_model)[None]
    target = params["embed"][target_ids] + sinusoidal_pe(t, d_model)[None]

    # Additive key-padding bias (N, 1, s): True => attend (0), False => -1e30.
    pad_bias = jnp.where(source_key_padding_mask, 0.0,
                         NEG_BIG)[:, None, :].astype(jnp.float32)

    x = source
    for p in params["encoder_layers"]:
        x = encoder_layer_fwd(p, x, pad_bias, n_heads)
    encoded_source = layernorm(x, params["enc_ln_g"], params["enc_ln_b"])

    y = target
    for p in params["decoder_layers"]:
        y = decoder_layer_fwd(p, y, encoded_source, pad_bias, n_heads)
    decoded_target = layernorm(y, params["dec_ln_g"], params["dec_ln_b"])

    # out = decoded_target @ source_embedding.T (tied head, vocab-outer tiling)
    return logits_matmul(decoded_target, params["embed_lg"], vocab)


# ----------------------------- parameter init -----------------------------

def _init_linear(key, d_in, d_out):
    # torch.nn.Linear init; stored pre-transposed as (in, out), weights in bf16.
    kw, kb = jax.random.split(key)
    bound = 1.0 / math.sqrt(d_in)
    w = jax.random.uniform(kw, (d_in, d_out), jnp.float32, -bound, bound)
    b = jax.random.uniform(kb, (1, d_out), jnp.float32, -bound, bound)
    return w.astype(MXU_DTYPE), b


def _init_packed_linears(key, d_model, n_proj):
    # n_proj separate nn.Linear(d_model, d_model), concatenated on the out dim.
    ws, bs = [], []
    for k in jax.random.split(key, n_proj):
        w, b = _init_linear(k, d_model, d_model)
        ws.append(w)
        bs.append(b)
    return jnp.concatenate(ws, axis=1), jnp.concatenate(bs, axis=1)


def init_encoder_layer(key, d_model, d_inner):
    k1, k2, k3 = jax.random.split(key, 3)
    w_qkv, b_qkv = _init_packed_linears(k1, d_model, 3)
    w1, b1 = _init_linear(k2, d_model, d_inner)
    w2, b2 = _init_linear(k3, d_inner, d_model)
    ones = jnp.ones((1, d_model), jnp.float32)
    zeros = jnp.zeros((1, d_model), jnp.float32)
    return dict(ln1_g=ones, ln1_b=zeros, w_qkv=w_qkv, b_qkv=b_qkv,
                ln2_g=ones, ln2_b=zeros, w1=w1, b1=b1, w2=w2, b2=b2)


def init_decoder_layer(key, d_model, d_inner):
    k1, k2, k3, k4, k5 = jax.random.split(key, 5)
    w_qkv_s, b_qkv_s = _init_packed_linears(k1, d_model, 3)
    w_q_c, b_q_c = _init_linear(k2, d_model, d_model)
    w_kv_c, b_kv_c = _init_packed_linears(k3, d_model, 2)   # [K | V]
    w1, b1 = _init_linear(k4, d_model, d_inner)
    w2, b2 = _init_linear(k5, d_inner, d_model)
    ones = jnp.ones((1, d_model), jnp.float32)
    zeros = jnp.zeros((1, d_model), jnp.float32)
    return dict(ln1_g=ones, ln1_b=zeros, w_qkv_self=w_qkv_s, b_qkv_self=b_qkv_s,
                ln2_g=ones, ln2_b=zeros, w_q_cross=w_q_c, b_q_cross=b_q_c,
                w_kv_cross=w_kv_c, b_kv_cross=b_kv_c,
                ln3_g=ones, ln3_b=zeros, w1=w1, b1=b1, w2=w2, b2=b2)


def init_params(key, d_model, d_inner, n_encoder_stacks, vocab):
    ke, kenc, kdec = jax.random.split(key, 3)
    embed = jax.random.normal(ke, (vocab, d_model), jnp.float32)  # nn.Embedding ~ N(0,1)
    # Logits head reuses the same table: one bf16 copy, vocab padded to a
    # multiple of 128 lanes (no f32 pre-transposed duplicate is kept).
    v_pad = ((vocab + 127) // 128) * 128
    embed_lg = jnp.zeros((v_pad, d_model), jnp.float32).at[:vocab].set(embed)
    ones = jnp.ones((1, d_model), jnp.float32)
    zeros = jnp.zeros((1, d_model), jnp.float32)
    return dict(
        embed=embed,
        embed_lg=embed_lg.astype(MXU_DTYPE),
        encoder_layers=[init_encoder_layer(k, d_model, d_inner)
                        for k in jax.random.split(kenc, n_encoder_stacks)],
        # NOTE: the PyTorch module builds the decoder with n_encoder_stacks layers.
        decoder_layers=[init_decoder_layer(k, d_model, d_inner)
                        for k in jax.random.split(kdec, n_encoder_stacks)],
        enc_ln_g=ones, enc_ln_b=zeros, dec_ln_g=ones, dec_ln_b=zeros,
    )


# ----------------------------- main -----------------------------

if __name__ == "__main__":
    N, S, T = 2, 8, 8
    D_MODEL, N_HEADS, D_INNER = 32, 4, 64
    VOCAB = 50
    N_ENC = 2          # n_encoder_stacks (decoder also uses this, per the module)

    key = jax.random.PRNGKey(0)
    kp, ks, kt = jax.random.split(key, 3)
    params = init_params(kp, D_MODEL, D_INNER, N_ENC, VOCAB)

    source_ids = jax.random.randint(ks, (N, S), 0, VOCAB)
    target_ids = jax.random.randint(kt, (N, T), 0, VOCAB)
    # True = real token (participates in attention), False = padding
    lengths = jnp.array([8, 5])
    source_key_padding_mask = jnp.arange(S)[None, :] < lengths[:, None]

    fwd = jax.jit(encoder_decoder_fwd, static_argnums=(4,))
    out = fwd(params, target_ids, source_ids, source_key_padding_mask, N_HEADS)
    out = jax.block_until_ready(out)

    assert out.shape == (N, T, VOCAB), out.shape
    assert bool(jnp.all(jnp.isfinite(out)))
    print("KERNEL_OK")
</pallas_src>

<mosaic_0001>
module attributes {stable_mosaic.version = 11 : i64} {
  func.func @_ln_proj_kernel(%arg0: i32, %arg1: memref<16x32xf32, #tpu.memory_space<vmem>>, %arg2: memref<1x32xf32, #tpu.memory_space<vmem>>, %arg3: memref<1x32xf32, #tpu.memory_space<vmem>>, %arg4: memref<32x96xbf16, #tpu.memory_space<vmem>>, %arg5: memref<1x96xf32, #tpu.memory_space<vmem>>, %arg6: memref<16x32xf32, #tpu.memory_space<vmem>>, %arg7: memref<16x96xf32, #tpu.memory_space<vmem>>) attributes {dimension_semantics = [#tpu.dimension_semantics<parallel>], iteration_bounds = array<i64: 1>, scalar_prefetch = 0 : i64, scratch_operands = 0 : i64, tpu.core_type = #tpu.core_type<tc>, window_params = [{transform_indices = @transform_0, window_bounds = array<i64: 16, 32>}, {pipeline_mode = #tpu.pipeline_mode<synchronous>, transform_indices = @transform_1, window_bounds = array<i64: 1, 32>}, {pipeline_mode = #tpu.pipeline_mode<synchronous>, transform_indices = @transform_2, window_bounds = array<i64: 1, 32>}, {pipeline_mode = #tpu.pipeline_mode<synchronous>, transform_indices = @transform_3, window_bounds = array<i64: 32, 96>}, {pipeline_mode = #tpu.pipeline_mode<synchronous>, transform_indices = @transform_4, window_bounds = array<i64: 1, 96>}, {transform_indices = @transform_5, window_bounds = array<i64: 16, 32>}, {transform_indices = @transform_6, window_bounds = array<i64: 16, 96>}]} {
    %c0 = arith.constant 0 : index
    %c0_0 = arith.constant 0 : index
    %0 = vector.load %arg1[%c0, %c0_0] : memref<16x32xf32, #tpu.memory_space<vmem>>, vector<16x32xf32>
    %c0_1 = arith.constant 0 : index
    %c0_2 = arith.constant 0 : index
    %1 = vector.load %arg2[%c0_1, %c0_2] : memref<1x32xf32, #tpu.memory_space<vmem>>, vector<1x32xf32>
    %c0_3 = arith.constant 0 : index
    %c0_4 = arith.constant 0 : index
    %2 = vector.load %arg3[%c0_3, %c0_4] : memref<1x32xf32, #tpu.memory_space<vmem>>, vector<1x32xf32>
    %cst = arith.constant dense<0.000000e+00> : vector<16xf32>
    %3 = vector.multi_reduction <add>, %0, %cst [1] : vector<16x32xf32> to vector<16xf32>
    %4 = vector.shape_cast %3 : vector<16xf32> to vector<16x1xf32>
    %cst_5 = arith.constant 3.200000e+01 : f32
    %5 = vector.broadcast %cst_5 : f32 to vector<16x1xf32>
    %6 = arith.divf %4, %5 : vector<16x1xf32>
    %7 = vector.broadcast %6 : vector<16x1xf32> to vector<16x32xf32>
    %8 = arith.subf %0, %7 : vector<16x32xf32>
    %9 = arith.mulf %8, %8 : vector<16x32xf32>
    %cst_6 = arith.constant dense<0.000000e+00> : vector<16xf32>
    %10 = vector.multi_reduction <add>, %9, %cst_6 [1] : vector<16x32xf32> to vector<16xf32>
    %11 = vector.shape_cast %10 : vector<16xf32> to vector<16x1xf32>
    %cst_7 = arith.constant 3.200000e+01 : f32
    %12 = vector.broadcast %cst_7 : f32 to vector<16x1xf32>
    %13 = arith.divf %11, %12 : vector<16x1xf32>
    %cst_8 = arith.constant 9.99999974E-6 : f32
    %14 = vector.broadcast %cst_8 : f32 to vector<16x1xf32>
    %15 = arith.addf %13, %14 : vector<16x1xf32>
    %16 = math.rsqrt %15 : vector<16x1xf32>
    %17 = vector.broadcast %16 : vector<16x1xf32> to vector<16x32xf32>
    %18 = arith.mulf %8, %17 : vector<16x32xf32>
    %19 = vector.broadcast %1 : vector<1x32xf32> to vector<16x32xf32>
    %20 = arith.mulf %18, %19 : vector<16x32xf32>
    %21 = vector.broadcast %2 : vector<1x32xf32> to vector<16x32xf32>
    %22 = arith.addf %20, %21 : vector<16x32xf32>
    %c0_9 = arith.constant 0 : index
    %c0_10 = arith.constant 0 : index
    %23 = vector.load %arg6[%c0_9, %c0_10] : memref<16x32xf32, #tpu.memory_space<vmem>>, vector<16x32xf32>
    tpu.vector_store %arg6[%c0_9, %c0_10], %22 {strides = array<i32>} : memref<16x32xf32, #tpu.memory_space<vmem>>, vector<16x32xf32>,
    %24 = arith.truncf %22 : vector<16x32xf32> to vector<16x32xbf16>
    %c0_11 = arith.constant 0 : index
    %c0_12 = arith.constant 0 : index
    %25 = vector.load %arg4[%c0_11, %c0_12] : memref<32x96xbf16, #tpu.memory_space<vmem>>, vector<32x96xbf16>
    %cst_13 = arith.constant dense<0.000000e+00> : vector<16x96xf32>
    %26 = tpu.matmul %24, %25, %cst_13 {dimension_numbers = #tpu.dot_dimension_numbers<[1], [0], [0], [1], [0, 0, 1, 1], [], []>} : vector<16x32xbf16>, vector<32x96xbf16>, vector<16x96xf32> -> vector<16x96xf32>
    %c0_14 = arith.constant 0 : index
    %c0_15 = arith.constant 0 : index
    %27 = vector.load %arg5[%c0_14, %c0_15] : memref<1x96xf32, #tpu.memory_space<vmem>>, vector<1x96xf32>
    %28 = vector.broadcast %27 : vector<1x96xf32> to vector<16x96xf32>
    %29 = arith.addf %26, %28 : vector<16x96xf32>
    %c0_16 = arith.constant 0 : index
    %c0_17 = arith.constant 0 : index
    %30 = vector.load %arg7[%c0_16, %c0_17] : memref<16x96xf32, #tpu.memory_space<vmem>>, vector<16x96xf32>
    tpu.vector_store %arg7[%c0_16, %c0_17], %29 {strides = array<i32>} : memref<16x96xf32, #tpu.memory_space<vmem>>, vector<16x96xf32>,
    return
  }
  func.func @transform_0(%arg0: i32) -> (i32, i32) {
    %c0_i32 = arith.constant 0 : i32
    %c0_i32_0 = arith.constant 0 : i32
    return %arg0, %c0_i32 : i32, i32
  }
  func.func @transform_1(%arg0: i32) -> (i32, i32) {
    %c0_i32 = arith.constant 0 : i32
    %c0_i32_0 = arith.constant 0 : i32
    %c0_i32_1 = arith.constant 0 : i32
    return %c0_i32, %c0_i32_0 : i32, i32
  }
  func.func @transform_2(%arg0: i32) -> (i32, i32) {
    %c0_i32 = arith.constant 0 : i32
    %c0_i32_0 = arith.constant 0 : i32
    %c0_i32_1 = arith.constant 0 : i32
    return %c0_i32, %c0_i32_0 : i32, i32
  }
  func.func @transform_3(%arg0: i32) -> (i32, i32) {
    %c0_i32 = arith.constant 0 : i32
    %c0_i32_0 = arith.constant 0 : i32
    %c0_i32_1 = arith.constant 0 : i32
    return %c0_i32, %c0_i32_0 : i32, i32
  }
  func.func @transform_4(%arg0: i32) -> (i32, i32) {
    %c0_i32 = arith.constant 0 : i32
    %c0_i32_0 = arith.constant 0 : i32
    %c0_i32_1 = arith.constant 0 : i32
    return %c0_i32, %c0_i32_0 : i32, i32
  }
  func.func @transform_5(%arg0: i32) -> (i32, i32) {
    %c0_i32 = arith.constant 0 : i32
    %c0_i32_0 = arith.constant 0 : i32
    return %arg0, %c0_i32 : i32, i32
  }
  func.func @transform_6(%arg0: i32) -> (i32, i32) {
    %c0_i32 = arith.constant 0 : i32
    %c0_i32_0 = arith.constant 0 : i32
    return %arg0, %c0_i32 : i32, i32
  }
}

module attributes {stable_mosaic.version = 11 : i64} {
  func.func @_attn_pad_kernel(%arg0: i32, %arg1: i32, %arg2: memref<1x8x32xf32, #tpu.memory_space<vmem>>, %arg3: memref<1x8x32xf32, #tpu.memory_space<vmem>>, %arg4: memref<1x8x32xf32, #tpu.memory_space<vmem>>, %arg5: memref<1x1x8xf32, #tpu.memory_space<vmem>>, %arg6: memref<1x8x32xf32, #tpu.memory_space<vmem>>) attributes {dimension_semantics = [#tpu.dimension_semantics<parallel>, #tpu.dimension_semantics<parallel>], iteration_bounds = array<i64: 2, 1>, scalar_prefetch = 0 : i64, scratch_operands = 0 : i64, tpu.core_type = #tpu.core_type<tc>, window_params = [{transform_indices = @transform_0, window_bounds = array<i64: 1, 8, 32>}, {transform_indices = @transform_1, window_bounds = array<i64: 1, 8, 32>}, {transform_indices = @transform_2, window_bounds = array<i64: 1, 8, 32>}, {transform_indices = @transform_3, window_bounds = array<i64: 1, 1, 8>}, {transform_indices = @transform_4, window_bounds = array<i64: 1, 8, 32>}]} {
    %c0 = arith.constant 0 : index
    %c0_0 = arith.constant 0 : index
    %c0_1 = arith.constant 0 : index
    %0 = vector.load %arg2[%c0, %c0_0, %c0_1] : memref<1x8x32xf32, #tpu.memory_space<vmem>>, vector<1x8x32xf32>
    %1 = vector.shape_cast %0 : vector<1x8x32xf32> to vector<8x32xf32>
    %c0_2 = arith.constant 0 : index
    %c0_3 = arith.constant 0 : index
    %c0_4 = arith.constant 0 : index
    %2 = vector.load %arg3[%c0_2, %c0_3, %c0_4] : memref<1x8x32xf32, #tpu.memory_space<vmem>>, vector<1x8x32xf32>
    %3 = vector.shape_cast %2 : vector<1x8x32xf32> to vector<8x32xf32>
    %c0_5 = arith.constant 0 : index
    %c0_6 = arith.constant 0 : index
    %c0_7 = arith.constant 0 : index
    %4 = vector.load %arg4[%c0_5, %c0_6, %c0_7] : memref<1x8x32xf32, #tpu.memory_space<vmem>>, vector<1x8x32xf32>
    %5 = vector.shape_cast %4 : vector<1x8x32xf32> to vector<8x32xf32>
    %c0_8 = arith.constant 0 : index
    %c0_9 = arith.constant 0 : index
    %c0_10 = arith.constant 0 : index
    %6 = vector.load %arg5[%c0_8, %c0_9, %c0_10] : memref<1x1x8xf32, #tpu.memory_space<vmem>>, vector<1x1x8xf32>
    %7 = vector.shape_cast %6 : vector<1x1x8xf32> to vector<1x8xf32>
    %8 = vector.extract_strided_slice %1 {offsets = [0, 0], sizes = [8, 8], strides = [1, 1]} : vector<8x32xf32> to vector<8x8xf32>
    %cst = arith.constant 0.353553385 : f32
    %9 = vector.broadcast %cst : f32 to vector<8x8xf32>
    %10 = arith.mulf %8, %9 : vector<8x8xf32>
    %11 = arith.truncf %10 : vector<8x8xf32> to vector<8x8xbf16>
    %12 = vector.extract_strided_slice %3 {offsets = [0, 0], sizes = [8, 8], strides = [1, 1]} : vector<8x32xf32> to vector<8x8xf32>
    %13 = arith.truncf %12 : vector<8x8xf32> to vector<8x8xbf16>
    %14 = vector.extract_strided_slice %5 {offsets = [0, 0], sizes = [8, 8], strides = [1, 1]} : vector<8x32xf32> to vector<8x8xf32>
    %15 = arith.truncf %14 : vector<8x8xf32> to vector<8x8xbf16>
    %cst_11 = arith.constant dense<0.000000e+00> : vector<8x8xf32>
    %16 = tpu.matmul %11, %13, %cst_11 {dimension_numbers = #tpu.dot_dimension_numbers<[1], [1], [0], [0], [0, 0, 1, 0], [], []>} : vector<8x8xbf16>, vector<8x8xbf16>, vector<8x8xf32> -> vector<8x8xf32>
    %17 = vector.broadcast %7 : vector<1x8xf32> to vector<8x8xf32>
    %18 = arith.addf %16, %17 : vector<8x8xf32>
    %cst_12 = arith.constant dense<0xFF800000> : vector<8xf32>
    %19 = vector.multi_reduction <maximumf>, %18, %cst_12 [1] : vector<8x8xf32> to vector<8xf32>
    %20 = vector.shape_cast %19 : vector<8xf32> to vector<8x1xf32>
    %21 = vector.broadcast %20 : vector<8x1xf32> to vector<8x8xf32>
    %22 = arith.subf %18, %21 : vector<8x8xf32>
    %23 = math.exp %22 : vector<8x8xf32>
    %cst_13 = arith.constant dense<0.000000e+00> : vector<8xf32>
    %24 = vector.multi_reduction <add>, %23, %cst_13 [1] : vector<8x8xf32> to vector<8xf32>
    %25 = vector.shape_cast %24 : vector<8xf32> to vector<8x1xf32>
    %26 = tpu.reciprocal %25 {approx = true} : vector<8x1xf32> -> vector<8x1xf32>
    %27 = vector.broadcast %26 : vector<8x1xf32> to vector<8x8xf32>
    %28 = arith.mulf %23, %27 : vector<8x8xf32>
    %29 = arith.truncf %28 : vector<8x8xf32> to vector<8x8xbf16>
    %cst_14 = arith.constant dense<0.000000e+00> : vector<8x8xf32>
    %30 = tpu.matmul %29, %15, %cst_14 {dimension_numbers = #tpu.dot_dimension_numbers<[1], [0], [0], [1], [0, 0, 1, 1], [], []>} : vector<8x8xbf16>, vector<8x8xbf16>, vector<8x8xf32> -> vector<8x8xf32>
    %31 = vector.extract_strided_slice %1 {offsets = [0, 8], sizes = [8, 8], strides = [1, 1]} : vector<8x32xf32> to vector<8x8xf32>
    %cst_15 = arith.constant 0.353553385 : f32
    %32 = vector.broadcast %cst_15 : f32 to vector<8x8xf32>
    %33 = arith.mulf %31, %32 : vector<8x8xf32>
    %34 = arith.truncf %33 : vector<8x8xf32> to vector<8x8xbf16>
    %35 = vector.extract_strided_slice %3 {offsets = [0, 8], sizes = [8, 8], strides = [1, 1]} : vector<8x32xf32> to vector<8x8xf32>
    %36 = arith.truncf %35 : vector<8x8xf32> to vector<8x8xbf16>
    %37 = vector.extract_strided_slice %5 {offsets = [0, 8], sizes = [8, 8], strides = [1, 1]} : vector<8x32xf32> to vector<8x8xf32>
    %38 = arith.truncf %37 : vector<8x8xf32> to vector<8x8xbf16>
    %cst_16 = arith.constant dense<0.000000e+00> : vector<8x8xf32>
    %39 = tpu.matmul %34, %36, %cst_16 {dimension_numbers = #tpu.dot_dimension_numbers<[1], [1], [0], [0], [0, 0, 1, 0], [], []>} : vector<8x8xbf16>, vector<8x8xbf16>, vector<8x8xf32> -> vector<8x8xf32>
    %40 = vector.broadcast %7 : vector<1x8xf32> to vector<8x8xf32>
    %41 = arith.addf %39, %40 : vector<8x8xf32>
    %cst_17 = arith.constant dense<0xFF800000> : vector<8xf32>
    %42 = vector.multi_reduction <maximumf>, %41, %cst_17 [1] : vector<8x8xf32> to vector<8xf32>
    %43 = vector.shape_cast %42 : vector<8xf32> to vector<8x1xf32>
    %44 = vector.broadcast %43 : vector<8x1xf32> to vector<8x8xf32>
    %45 = arith.subf %41, %44 : vector<8x8xf32>
    %46 = math.exp %45 : vector<8x8xf32>
    %cst_18 = arith.constant dense<0.000000e+00> : vector<8xf32>
    %47 = vector.multi_reduction <add>, %46, %cst_18 [1] : vector<8x8xf32> to vector<8xf32>
    %48 = vector.shape_cast %47 : vector<8xf32> to vector<8x1xf32>
    %49 = tpu.reciprocal %48 {approx = true} : vector<8x1xf32> -> vector<8x1xf32>
    %50 = vector.broadcast %49 : vector<8x1xf32> to vector<8x8xf32>
    %51 = arith.mulf %46, %50 : vector<8x8xf32>
    %52 = arith.truncf %51 : vector<8x8xf32> to vector<8x8xbf16>
    %cst_19 = arith.constant dense<0.000000e+00> : vector<8x8xf32>
    %53 = tpu.matmul %52, %38, %cst_19 {dimension_numbers = #tpu.dot_dimension_numbers<[1], [0], [0], [1], [0, 0, 1, 1], [], []>} : vector<8x8xbf16>, vector<8x8xbf16>, vector<8x8xf32> -> vector<8x8xf32>
    %54 = vector.extract_strided_slice %1 {offsets = [0, 16], sizes = [8, 8], strides = [1, 1]} : vector<8x32xf32> to vector<8x8xf32>
    %cst_20 = arith.constant 0.353553385 : f32
    %55 = vector.broadcast %cst_20 : f32 to vector<8x8xf32>
    %56 = arith.mulf %54, %55 : vector<8x8xf32>
    %57 = arith.truncf %56 : vector<8x8xf32> to vector<8x8xbf16>
    %58 = vector.extract_strided_slice %3 {offsets = [0, 16], sizes = [8, 8], strides = [1, 1]} : vector<8x32xf32> to vector<8x8xf32>
    %59 = arith.truncf %58 : vector<8x8xf32> to vector<8x8xbf16>
    %60 = vector.extract_strided_slice %5 {offsets = [0, 16], sizes = [8, 8], strides = [1, 1]} : vector<8x32xf32> to vector<8x8xf32>
    %61 = arith.truncf %60 : vector<8x8xf32> to vector<8x8xbf16>
    %cst_21 = arith.constant dense<0.000000e+00> : vector<8x8xf32>
    %62 = tpu.matmul %57, %59, %cst_21 {dimension_numbers = #tpu.dot_dimension_numbers<[1], [1], [0], [0], [0, 0, 1, 0], [], []>} : vector<8x8xbf16>, vector<8x8xbf16>, vector<8x8xf32> -> vector<8x8xf32>
    %63 = vector.broadcast %7 : vector<1x8xf32> to vector<8x8xf32>
    %64 = arith.addf %62, %63 : vector<8x8xf32>
    %cst_22 = arith.constant dense<0xFF800000> : vector<8xf32>
    %65 = vector.multi_reduction <maximumf>, %64, %cst_22 [1] : vector<8x8xf32> to vector<8xf32>
    %66 = vector.shape_cast %65 : vector<8xf32> to vector<8x1xf32>
    %67 = vector.broadcast %66 : vector<8x1xf32> to vector<8x8xf32>
    %68 = arith.subf %64, %67 : vector<8x8xf32>
    %69 = math.exp %68 : vector<8x8xf32>
    %cst_23 = arith.constant dense<0.000000e+00> : vector<8xf32>
    %70 = vector.multi_reduction <add>, %69, %cst_23 [1] : vector<8x8xf32> to vector<8xf32>
    %71 = vector.shape_cast %70 : vector<8xf32> to vector<8x1xf32>
    %72 = tpu.reciprocal %71 {approx = true} : vector<8x1xf32> -> vector<8x1xf32>
    %73 = vector.broadcast %72 : vector<8x1xf32> to vector<8x8xf32>
    %74 = arith.mulf %69, %73 : vector<8x8xf32>
    %75 = arith.truncf %74 : vector<8x8xf32> to vector<8x8xbf16>
    %cst_24 = arith.constant dense<0.000000e+00> : vector<8x8xf32>
    %76 = tpu.matmul %75, %61, %cst_24 {dimension_numbers = #tpu.dot_dimension_numbers<[1], [0], [0], [1], [0, 0, 1, 1], [], []>} : vector<8x8xbf16>, vector<8x8xbf16>, vector<8x8xf32> -> vector<8x8xf32>
    %77 = vector.extract_strided_slice %1 {offsets = [0, 24], sizes = [8, 8], strides = [1, 1]} : vector<8x32xf32> to vector<8x8xf32>
    %cst_25 = arith.constant 0.353553385 : f32
    %78 = vector.broadcast %cst_25 : f32 to vector<8x8xf32>
    %79 = arith.mulf %77, %78 : vector<8x8xf32>
    %80 = arith.truncf %79 : vector<8x8xf32> to vector<8x8xbf16>
    %81 = vector.extract_strided_slice %3 {offsets = [0, 24], sizes = [8, 8], strides = [1, 1]} : vector<8x32xf32> to vector<8x8xf32>
    %82 = arith.truncf %81 : vector<8x8xf32> to vector<8x8xbf16>
    %83 = vector.extract_strided_slice %5 {offsets = [0, 24], sizes = [8, 8], strides = [1, 1]} : vector<8x32xf32> to vector<8x8xf32>
    %84 = arith.truncf %83 : vector<8x8xf32> to vector<8x8xbf16>
    %cst_26 = arith.constant dense<0.000000e+00> : vector<8x8xf32>
    %85 = tpu.matmul %80, %82, %cst_26 {dimension_numbers = #tpu.dot_dimension_numbers<[1], [1], [0], [0], [0, 0, 1, 0], [], []>} : vector<8x8xbf16>, vector<8x8xbf16>, vector<8x8xf32> -> vector<8x8xf32>
    %86 = vector.broadcast %7 : vector<1x8xf32> to vector<8x8xf32>
    %87 = arith.addf %85, %86 : vector<8x8xf32>
    %cst_27 = arith.constant dense<0xFF800000> : vector<8xf32>
    %88 = vector.multi_reduction <maximumf>, %87, %cst_27 [1] : vector<8x8xf32> to vector<8xf32>
    %89 = vector.shape_cast %88 : vector<8xf32> to vector<8x1xf32>
    %90 = vector.broadcast %89 : vector<8x1xf32> to vector<8x8xf32>
    %91 = arith.subf %87, %90 : vector<8x8xf32>
    %92 = math.exp %91 : vector<8x8xf32>
    %cst_28 = arith.constant dense<0.000000e+00> : vector<8xf32>
    %93 = vector.multi_reduction <add>, %92, %cst_28 [1] : vector<8x8xf32> to vector<8xf32>
    %94 = vector.shape_cast %93 : vector<8xf32> to vector<8x1xf32>
    %95 = tpu.reciprocal %94 {approx = true} : vector<8x1xf32> -> vector<8x1xf32>
    %96 = vector.broadcast %95 : vector<8x1xf32> to vector<8x8xf32>
    %97 = arith.mulf %92, %96 : vector<8x8xf32>
    %98 = arith.truncf %97 : vector<8x8xf32> to vector<8x8xbf16>
    %cst_29 = arith.constant dense<0.000000e+00> : vector<8x8xf32>
    %99 = tpu.matmul %98, %84, %cst_29 {dimension_numbers = #tpu.dot_dimension_numbers<[1], [0], [0], [1], [0, 0, 1, 1], [], []>} : vector<8x8xbf16>, vector<8x8xbf16>, vector<8x8xf32> -> vector<8x8xf32>
    %100 = tpu.concatenate %30, %53, %76, %99 in 1 : vector<8x8xf32>, vector<8x8xf32>, vector<8x8xf32>, vector<8x8xf32> -> vector<8x32xf32>
    %c0_30 = arith.constant 0 : index
    %c0_31 = arith.constant 0 : index
    %c0_32 = arith.constant 0 : index
    %101 = vector.load %arg6[%c0_30, %c0_31, %c0_32] : memref<1x8x32xf32, #tpu.memory_space<vmem>>, vector<1x8x32xf32>
    %102 = vector.shape_cast %101 : vector<1x8x32xf32> to vector<8x32xf32>
    %103 = vector.shape_cast %100 : vector<8x32xf32> to vector<1x8x32xf32>
    tpu.vector_store %arg6[%c0_30, %c0_31, %c0_32], %103 {strides = array<i32>} : memref<1x8x32xf32, #tpu.memory_space<vmem>>, vector<1x8x32xf32>,
    return
  }
  func.func @transform_0(%arg0: i32, %arg1: i32) -> (i32, i32, i32) {
    %c0_i32 = arith.constant 0 : i32
    %c0_i32_0 = arith.constant 0 : i32
    return %arg0, %arg1, %c0_i32 : i32, i32, i32
  }
  func.func @transform_1(%arg0: i32, %arg1: i32) -> (i32, i32, i32) {
    %c0_i32 = arith.constant 0 : i32
    %c0_i32_0 = arith.constant 0 : i32
    %c0_i32_1 = arith.constant 0 : i32
    return %arg0, %c0_i32, %c0_i32_0 : i32, i32, i32
  }
  func.func @transform_2(%arg0: i32, %arg1: i32) -> (i32, i32, i32) {
    %c0_i32 = arith.constant 0 : i32
    %c0_i32_0 = arith.constant 0 : i32
    %c0_i32_1 = arith.constant 0 : i32
    return %arg0, %c0_i32, %c0_i32_0 : i32, i32, i32
  }
  func.func @transform_3(%arg0: i32, %arg1: i32) -> (i32, i32, i32) {
    %c0_i32 = arith.constant 0 : i32
    %c0_i32_0 = arith.constant 0 : i32
    %c0_i32_1 = arith.constant 0 : i32
    return %arg0, %c0_i32, %c0_i32_0 : i32, i32, i32
  }
  func.func @transform_4(%arg0: i32, %arg1: i32) -> (i32, i32, i32) {
    %c0_i32 = arith.constant 0 : i32
    %c0_i32_0 = arith.constant 0 : i32
    return %arg0, %arg1, %c0_i32 : i32, i32, i32
  }
}

module attributes {stable_mosaic.version = 11 : i64} {
  func.func @_add_ln_mlp_kernel(%arg0: i32, %arg1: i32, %arg2: memref<16x32xf32, #tpu.memory_space<vmem>>, %arg3: memref<16x32xf32, #tpu.memory_space<vmem>>, %arg4: memref<1x32xf32, #tpu.memory_space<vmem>>, %arg5: memref<1x32xf32, #tpu.memory_space<vmem>>, %arg6: memref<32x64xbf16, #tpu.memory_space<vmem>>, %arg7: memref<1x64xf32, #tpu.memory_space<vmem>>, %arg8: memref<64x32xbf16, #tpu.memory_space<vmem>>, %arg9: memref<1x32xf32, #tpu.memory_space<vmem>>, %arg10: memref<16x32xf32, #tpu.memory_space<vmem>>, %arg11: memref<16x32xf32, #tpu.memory_space<vmem>>, %arg12: memref<16x32xf32, #tpu.memory_space<vmem>>) attributes {dimension_semantics = [#tpu.dimension_semantics<parallel>, #tpu.dimension_semantics<arbitrary>], iteration_bounds = array<i64: 1, 1>, scalar_prefetch = 0 : i64, scratch_operands = 2 : i64, tpu.core_type = #tpu.core_type<tc>, window_params = [{transform_indices = @transform_0, window_bounds = array<i64: 16, 32>}, {transform_indices = @transform_1, window_bounds = array<i64: 16, 32>}, {pipeline_mode = #tpu.pipeline_mode<synchronous>, transform_indices = @transform_2, window_bounds = array<i64: 1, 32>}, {pipeline_mode = #tpu.pipeline_mode<synchronous>, transform_indices = @transform_3, window_bounds = array<i64: 1, 32>}, {transform_indices = @transform_4, window_bounds = array<i64: 32, 64>}, {transform_indices = @transform_5, window_bounds = array<i64: 1, 64>}, {transform_indices = @transform_6, window_bounds = array<i64: 64, 32>}, {pipeline_mode = #tpu.pipeline_mode<synchronous>, transform_indices = @transform_7, window_bounds = array<i64: 1, 32>}, {transform_indices = @transform_8, window_bounds = array<i64: 16, 32>}]} {
    %c0_i32 = arith.constant 0 : i32
    %0 = arith.cmpi eq, %arg1, %c0_i32 : i32
    %1 = arith.extui %0 : i1 to i32
    %c0_i32_0 = arith.constant 0 : i32
    %2 = arith.cmpi ne, %1, %c0_i32_0 : i32
    scf.if %2 {
      %c0_15 = arith.constant 0 : index
      %c0_16 = arith.constant 0 : index
      %19 = vector.load %arg2[%c0_15, %c0_16] : memref<16x32xf32, #tpu.memory_space<vmem>>, vector<16x32xf32>
      %c0_17 = arith.constant 0 : index
      %c0_18 = arith.constant 0 : index
      %20 = vector.load %arg3[%c0_17, %c0_18] : memref<16x32xf32, #tpu.memory_space<vmem>>, vector<16x32xf32>
      %21 = arith.addf %19, %20 : vector<16x32xf32>
      %c0_19 = arith.constant 0 : index
      %c0_20 = arith.constant 0 : index
      %22 = vector.load %arg4[%c0_19, %c0_20] : memref<1x32xf32, #tpu.memory_space<vmem>>, vector<1x32xf32>
      %c0_21 = arith.constant 0 : index
      %c0_22 = arith.constant 0 : index
      %23 = vector.load %arg5[%c0_21, %c0_22] : memref<1x32xf32, #tpu.memory_space<vmem>>, vector<1x32xf32>
      %cst_23 = arith.constant dense<0.000000e+00> : vector<16xf32>
      %24 = vector.multi_reduction <add>, %21, %cst_23 [1] : vector<16x32xf32> to vector<16xf32>
      %25 = vector.shape_cast %24 : vector<16xf32> to vector<16x1xf32>
      %cst_24 = arith.constant 3.200000e+01 : f32
      %26 = vector.broadcast %cst_24 : f32 to vector<16x1xf32>
      %27 = arith.divf %25, %26 : vector<16x1xf32>
      %28 = vector.broadcast %27 : vector<16x1xf32> to vector<16x32xf32>
      %29 = arith.subf %21, %28 : vector<16x32xf32>
      %30 = arith.mulf %29, %29 : vector<16x32xf32>
      %cst_25 = arith.constant dense<0.000000e+00> : vector<16xf32>
      %31 = vector.multi_reduction <add>, %30, %cst_25 [1] : vector<16x32xf32> to vector<16xf32>
      %32 = vector.shape_cast %31 : vector<16xf32> to vector<16x1xf32>
      %cst_26 = arith.constant 3.200000e+01 : f32
      %33 = vector.broadcast %cst_26 : f32 to vector<16x1xf32>
      %34 = arith.divf %32, %33 : vector<16x1xf32>
      %cst_27 = arith.constant 9.99999974E-6 : f32
      %35 = vector.broadcast %cst_27 : f32 to vector<16x1xf32>
      %36 = arith.addf %34, %35 : vector<16x1xf32>
      %37 = math.rsqrt %36 : vector<16x1xf32>
      %38 = vector.broadcast %37 : vector<16x1xf32> to vector<16x32xf32>
      %39 = arith.mulf %29, %38 : vector<16x32xf32>
      %40 = vector.broadcast %22 : vector<1x32xf32> to vector<16x32xf32>
      %41 = arith.mulf %39, %40 : vector<16x32xf32>
      %42 = vector.broadcast %23 : vector<1x32xf32> to vector<16x32xf32>
      %43 = arith.addf %41, %42 : vector<16x32xf32>
      %c0_28 = arith.constant 0 : index
      %c0_29 = arith.constant 0 : index
      %44 = vector.load %arg11[%c0_28, %c0_29] : memref<16x32xf32, #tpu.memory_space<vmem>>, vector<16x32xf32>
      tpu.vector_store %arg11[%c0_28, %c0_29], %43 {strides = array<i32>} : memref<16x32xf32, #tpu.memory_space<vmem>>, vector<16x32xf32>,
      %cst_30 = arith.constant 0.000000e+00 : f32
      %45 = vector.broadcast %cst_30 : f32 to vector<16x32xf32>
      %c0_31 = arith.constant 0 : index
      %c0_32 = arith.constant 0 : index
      %46 = vector.load %arg12[%c0_31, %c0_32] : memref<16x32xf32, #tpu.memory_space<vmem>>, vector<16x32xf32>
      tpu.vector_store %arg12[%c0_31, %c0_32], %45 {strides = array<i32>} : memref<16x32xf32, #tpu.memory_space<vmem>>, vector<16x32xf32>,
    } else {
    }
    %c0 = arith.constant 0 : index
    %c0_1 = arith.constant 0 : index
    %3 = vector.load %arg11[%c0, %c0_1] : memref<16x32xf32, #tpu.memory_space<vmem>>, vector<16x32xf32>
    %4 = arith.truncf %3 : vector<16x32xf32> to vector<16x32xbf16>
    %c0_2 = arith.constant 0 : index
    %c0_3 = arith.constant 0 : index
    %5 = vector.load %arg6[%c0_2, %c0_3] : memref<32x64xbf16, #tpu.memory_space<vmem>>, vector<32x64xbf16>
    %cst = arith.constant dense<0.000000e+00> : vector<16x64xf32>
    %6 = tpu.matmul %4, %5, %cst {dimension_numbers = #tpu.dot_dimension_numbers<[1], [0], [0], [1], [0, 0, 1, 1], [], []>} : vector<16x32xbf16>, vector<32x64xbf16>, vector<16x64xf32> -> vector<16x64xf32>
    %c0_4 = arith.constant 0 : index
    %c0_5 = arith.constant 0 : index
    %7 = vector.load %arg7[%c0_4, %c0_5] : memref<1x64xf32, #tpu.memory_space<vmem>>, vector<1x64xf32>
    %8 = vector.broadcast %7 : vector<1x64xf32> to vector<16x64xf32>
    %9 = arith.addf %6, %8 : vector<16x64xf32>
    %c0_6 = arith.constant 0 : index
    %c0_7 = arith.constant 0 : index
    %10 = vector.load %arg12[%c0_6, %c0_7] : memref<16x32xf32, #tpu.memory_space<vmem>>, vector<16x32xf32>
    %11 = arith.truncf %9 : vector<16x64xf32> to vector<16x64xbf16>
    %c0_8 = arith.constant 0 : index
    %c0_9 = arith.constant 0 : index
    %12 = vector.load %arg8[%c0_8, %c0_9] : memref<64x32xbf16, #tpu.memory_space<vmem>>, vector<64x32xbf16>
    %cst_10 = arith.constant dense<0.000000e+00> : vector<16x32xf32>
    %13 = tpu.matmul %11, %12, %cst_10 {dimension_numbers = #tpu.dot_dimension_numbers<[1], [0], [0], [1], [0, 0, 1, 1], [], []>} : vector<16x64xbf16>, vector<64x32xbf16>, vector<16x32xf32> -> vector<16x32xf32>
    %14 = arith.addf %10, %13 : vector<16x32xf32>
    %c0_11 = arith.constant 0 : index
    %c0_12 = arith.constant 0 : index
    %15 = vector.load %arg12[%c0_11, %c0_12] : memref<16x32xf32, #tpu.memory_space<vmem>>, vector<16x32xf32>
    tpu.vector_store %arg12[%c0_11, %c0_12], %14 {strides = array<i32>} : memref<16x32xf32, #tpu.memory_space<vmem>>, vector<16x32xf32>,
    %c0_i32_13 = arith.constant 0 : i32
    %16 = arith.cmpi eq, %arg1, %c0_i32_13 : i32
    %17 = arith.extui %16 : i1 to i32
    %c0_i32_14 = arith.constant 0 : i32
    %18 = arith.cmpi ne, %17, %c0_i32_14 : i32
    scf.if %18 {
      %c0_15 = arith.constant 0 : index
      %c0_16 = arith.constant 0 : index
      %19 = vector.load %arg12[%c0_15, %c0_16] : memref<16x32xf32, #tpu.memory_space<vmem>>, vector<16x32xf32>
      %c0_17 = arith.constant 0 : index
      %c0_18 = arith.constant 0 : index
      %20 = vector.load %arg9[%c0_17, %c0_18] : memref<1x32xf32, #tpu.memory_space<vmem>>, vector<1x32xf32>
      %21 = vector.broadcast %20 : vector<1x32xf32> to vector<16x32xf32>
      %22 = arith.addf %19, %21 : vector<16x32xf32>
      %cst_19 = arith.constant 5.000000e-01 : f32
      %23 = vector.broadcast %cst_19 : f32 to vector<16x32xf32>
      %24 = arith.mulf %23, %22 : vector<16x32xf32>
      %cst_20 = arith.constant 0.707106769 : f32
      %25 = vector.broadcast %cst_20 : f32 to vector<16x32xf32>
      %26 = arith.mulf %22, %25 : vector<16x32xf32>
      %cst_21 = arith.constant 0.000000e+00 : f32
      %27 = vector.broadcast %cst_21 : f32 to vector<16x32xf32>
      %28 = arith.cmpf oge, %26, %27 : vector<16x32xf32>
      %cst_22 = arith.constant 1.000000e+00 : f32
      %cst_23 = arith.constant -1.000000e+00 : f32
      %29 = vector.broadcast %cst_22 : f32 to vector<16x32xf32>
      %30 = vector.broadcast %cst_23 : f32 to vector<16x32xf32>
      %31 = arith.select %28, %29, %30 : vector<16x32xi1>, vector<16x32xf32>
      %32 = math.absf %26 : vector<16x32xf32>
      %cst_24 = arith.constant 0.327591091 : f32
      %33 = vector.broadcast %cst_24 : f32 to vector<16x32xf32>
      %34 = arith.mulf %33, %32 : vector<16x32xf32>
      %cst_25 = arith.constant 1.000000e+00 : f32
      %35 = vector.broadcast %cst_25 : f32 to vector<16x32xf32>
      %36 = arith.addf %35, %34 : vector<16x32xf32>
      %cst_26 = arith.constant 1.000000e+00 : f32
      %37 = vector.broadcast %cst_26 : f32 to vector<16x32xf32>
      %38 = arith.divf %37, %36 : vector<16x32xf32>
      %cst_27 = arith.constant 1.06140542 : f32
      %39 = vector.broadcast %cst_27 : f32 to vector<16x32xf32>
      %40 = arith.mulf %39, %38 : vector<16x32xf32>
      %cst_28 = arith.constant -1.45315206 : f32
      %41 = vector.broadcast %cst_28 : f32 to vector<16x32xf32>
      %42 = arith.addf %40, %41 : vector<16x32xf32>
      %43 = arith.mulf %42, %38 : vector<16x32xf32>
      %cst_29 = arith.constant 1.42141378 : f32
      %44 = vector.broadcast %cst_29 : f32 to vector<16x32xf32>
      %45 = arith.addf %43, %44 : vector<16x32xf32>
      %46 = arith.mulf %45, %38 : vector<16x32xf32>
      %cst_30 = arith.constant -0.284496725 : f32
      %47 = vector.broadcast %cst_30 : f32 to vector<16x32xf32>
      %48 = arith.addf %46, %47 : vector<16x32xf32>
      %49 = arith.mulf %48, %38 : vector<16x32xf32>
      %cst_31 = arith.constant 0.254829586 : f32
      %50 = vector.broadcast %cst_31 : f32 to vector<16x32xf32>
      %51 = arith.addf %49, %50 : vector<16x32xf32>
      %52 = arith.mulf %51, %38 : vector<16x32xf32>
      %cst_32 = arith.constant 0.000000e+00 : f32
      %53 = vector.broadcast %cst_32 : f32 to vector<16x32xf32>
      %54 = arith.subf %53, %32 : vector<16x32xf32>
      %55 = arith.mulf %54, %32 : vector<16x32xf32>
      %56 = math.exp %55 : vector<16x32xf32>
      %57 = arith.mulf %52, %56 : vector<16x32xf32>
      %cst_33 = arith.constant 1.000000e+00 : f32
      %58 = vector.broadcast %cst_33 : f32 to vector<16x32xf32>
      %59 = arith.subf %58, %57 : vector<16x32xf32>
      %60 = arith.mulf %31, %59 : vector<16x32xf32>
      %cst_34 = arith.constant 1.000000e+00 : f32
      %61 = vector.broadcast %cst_34 : f32 to vector<16x32xf32>
      %62 = arith.addf %61, %60 : vector<16x32xf32>
      %63 = arith.mulf %24, %62 : vector<16x32xf32>
      %c0_35 = arith.constant 0 : index
      %c0_36 = arith.constant 0 : index
      %64 = vector.load %arg11[%c0_35, %c0_36] : memref<16x32xf32, #tpu.memory_space<vmem>>, vector<16x32xf32>
      %65 = arith.addf %63, %64 : vector<16x32xf32>
      %c0_37 = arith.constant 0 : index
      %c0_38 = arith.constant 0 : index
      %66 = vector.load %arg10[%c0_37, %c0_38] : memref<16x32xf32, #tpu.memory_space<vmem>>, vector<16x32xf32>
      tpu.vector_store %arg10[%c0_37, %c0_38], %65 {strides = array<i32>} : memref<16x32xf32, #tpu.memory_space<vmem>>, vector<16x32xf32>,
    } else {
    }
    return
  }
  func.func @transform_0(%arg0: i32, %arg1: i32) -> (i32, i32) {
    %c0_i32 = arith.constant 0 : i32
    %c0_i32_0 = arith.constant 0 : i32
    return %arg0, %c0_i32 : i32, i32
  }
  func.func @transform_1(%arg0: i32, %arg1: i32) -> (i32, i32) {
    %c0_i32 = arith.constant 0 : i32
    %c0_i32_0 = arith.constant 0 : i32
    return %arg0, %c0_i32 : i32, i32
  }
  func.func @transform_2(%arg0: i32, %arg1: i32) -> (i32, i32) {
    %c0_i32 = arith.constant 0 : i32
    %c0_i32_0 = arith.constant 0 : i32
    %c0_i32_1 = arith.constant 0 : i32
    return %c0_i32, %c0_i32_0 : i32, i32
  }
  func.func @transform_3(%arg0: i32, %arg1: i32) -> (i32, i32) {
    %c0_i32 = arith.constant 0 : i32
    %c0_i32_0 = arith.constant 0 : i32
    %c0_i32_1 = arith.constant 0 : i32
    return %c0_i32, %c0_i32_0 : i32, i32
  }
  func.func @transform_4(%arg0: i32, %arg1: i32) -> (i32, i32) {
    %c0_i32 = arith.constant 0 : i32
    %c0_i32_0 = arith.constant 0 : i32
    return %c0_i32, %arg1 : i32, i32
  }
  func.func @transform_5(%arg0: i32, %arg1: i32) -> (i32, i32) {
    %c0_i32 = arith.constant 0 : i32
    %c0_i32_0 = arith.constant 0 : i32
    return %c0_i32, %arg1 : i32, i32
  }
  func.func @transform_6(%arg0: i32, %arg1: i32) -> (i32, i32) {
    %c0_i32 = arith.constant 0 : i32
    %c0_i32_0 = arith.constant 0 : i32
    return %arg1, %c0_i32 : i32, i32
  }
  func.func @transform_7(%arg0: i32, %arg1: i32) -> (i32, i32) {
    %c0_i32 = arith.constant 0 : i32
    %c0_i32_0 = arith.constant 0 : i32
    %c0_i32_1 = arith.constant 0 : i32
    return %c0_i32, %c0_i32_0 : i32, i32
  }
  func.func @transform_8(%arg0: i32, %arg1: i32) -> (i32, i32) {
    %c0_i32 = arith.constant 0 : i32
    %c0_i32_0 = arith.constant 0 : i32
    return %arg0, %c0_i32 : i32, i32
  }
}

module attributes {stable_mosaic.version = 11 : i64} {
  func.func @_ln_kernel(%arg0: i32, %arg1: memref<16x32xf32, #tpu.memory_space<vmem>>, %arg2: memref<1x32xf32, #tpu.memory_space<vmem>>, %arg3: memref<1x32xf32, #tpu.memory_space<vmem>>, %arg4: memref<16x32xf32, #tpu.memory_space<vmem>>) attributes {dimension_semantics = [#tpu.dimension_semantics<parallel>], iteration_bounds = array<i64: 1>, scalar_prefetch = 0 : i64, scratch_operands = 0 : i64, tpu.core_type = #tpu.core_type<tc>, window_params = [{transform_indices = @transform_0, window_bounds = array<i64: 16, 32>}, {pipeline_mode = #tpu.pipeline_mode<synchronous>, transform_indices = @transform_1, window_bounds = array<i64: 1, 32>}, {pipeline_mode = #tpu.pipeline_mode<synchronous>, transform_indices = @transform_2, window_bounds = array<i64: 1, 32>}, {transform_indices = @transform_3, window_bounds = array<i64: 16, 32>}]} {
    %c0 = arith.constant 0 : index
    %c0_0 = arith.constant 0 : index
    %0 = vector.load %arg1[%c0, %c0_0] : memref<16x32xf32, #tpu.memory_space<vmem>>, vector<16x32xf32>
    %c0_1 = arith.constant 0 : index
    %c0_2 = arith.constant 0 : index
    %1 = vector.load %arg2[%c0_1, %c0_2] : memref<1x32xf32, #tpu.memory_space<vmem>>, vector<1x32xf32>
    %c0_3 = arith.constant 0 : index
    %c0_4 = arith.constant 0 : index
    %2 = vector.load %arg3[%c0_3, %c0_4] : memref<1x32xf32, #tpu.memory_space<vmem>>, vector<1x32xf32>
    %cst = arith.constant dense<0.000000e+00> : vector<16xf32>
    %3 = vector.multi_reduction <add>, %0, %cst [1] : vector<16x32xf32> to vector<16xf32>
    %4 = vector.shape_cast %3 : vector<16xf32> to vector<16x1xf32>
    %cst_5 = arith.constant 3.200000e+01 : f32
    %5 = vector.broadcast %cst_5 : f32 to vector<16x1xf32>
    %6 = arith.divf %4, %5 : vector<16x1xf32>
    %7 = vector.broadcast %6 : vector<16x1xf32> to vector<16x32xf32>
    %8 = arith.subf %0, %7 : vector<16x32xf32>
    %9 = arith.mulf %8, %8 : vector<16x32xf32>
    %cst_6 = arith.constant dense<0.000000e+00> : vector<16xf32>
    %10 = vector.multi_reduction <add>, %9, %cst_6 [1] : vector<16x32xf32> to vector<16xf32>
    %11 = vector.shape_cast %10 : vector<16xf32> to vector<16x1xf32>
    %cst_7 = arith.constant 3.200000e+01 : f32
    %12 = vector.broadcast %cst_7 : f32 to vector<16x1xf32>
    %13 = arith.divf %11, %12 : vector<16x1xf32>
    %cst_8 = arith.constant 9.99999974E-6 : f32
    %14 = vector.broadcast %cst_8 : f32 to vector<16x1xf32>
    %15 = arith.addf %13, %14 : vector<16x1xf32>
    %16 = math.rsqrt %15 : vector<16x1xf32>
    %17 = vector.broadcast %16 : vector<16x1xf32> to vector<16x32xf32>
    %18 = arith.mulf %8, %17 : vector<16x32xf32>
    %19 = vector.broadcast %1 : vector<1x32xf32> to vector<16x32xf32>
    %20 = arith.mulf %18, %19 : vector<16x32xf32>
    %21 = vector.broadcast %2 : vector<1x32xf32> to vector<16x32xf32>
    %22 = arith.addf %20, %21 : vector<16x32xf32>
    %c0_9 = arith.constant 0 : index
    %c0_10 = arith.constant 0 : index
    %23 = vector.load %arg4[%c0_9, %c0_10] : memref<16x32xf32, #tpu.memory_space<vmem>>, vector<16x32xf32>
    tpu.vector_store %arg4[%c0_9, %c0_10], %22 {strides = array<i32>} : memref<16x32xf32, #tpu.memory_space<vmem>>, vector<16x32xf32>,
    return
  }
  func.func @transform_0(%arg0: i32) -> (i32, i32) {
    %c0_i32 = arith.constant 0 : i32
    %c0_i32_0 = arith.constant 0 : i32
    return %arg0, %c0_i32 : i32, i32
  }
  func.func @transform_1(%arg0: i32) -> (i32, i32) {
    %c0_i32 = arith.constant 0 : i32
    %c0_i32_0 = arith.constant 0 : i32
    %c0_i32_1 = arith.constant 0 : i32
    return %c0_i32, %c0_i32_0 : i32, i32
  }
  func.func @transform_2(%arg0: i32) -> (i32, i32) {
    %c0_i32 = arith.constant 0 : i32
    %c0_i32_0 = arith.constant 0 : i32
    %c0_i32_1 = arith.constant 0 : i32
    return %c0_i32, %c0_i32_0 : i32, i32
  }
  func.func @transform_3(%arg0: i32) -> (i32, i32) {
    %c0_i32 = arith.constant 0 : i32
    %c0_i32_0 = arith.constant 0 : i32
    return %arg0, %c0_i32 : i32, i32
  }
}

module attributes {stable_mosaic.version = 11 : i64} {
  func.func @_proj_kernel(%arg0: i32, %arg1: memref<16x32xf32, #tpu.memory_space<vmem>>, %arg2: memref<32x64xbf16, #tpu.memory_space<vmem>>, %arg3: memref<1x64xf32, #tpu.memory_space<vmem>>, %arg4: memref<16x64xf32, #tpu.memory_space<vmem>>) attributes {dimension_semantics = [#tpu.dimension_semantics<parallel>], iteration_bounds = array<i64: 1>, scalar_prefetch = 0 : i64, scratch_operands = 0 : i64, tpu.core_type = #tpu.core_type<tc>, window_params = [{transform_indices = @transform_0, window_bounds = array<i64: 16, 32>}, {pipeline_mode = #tpu.pipeline_mode<synchronous>, transform_indices = @transform_1, window_bounds = array<i64: 32, 64>}, {pipeline_mode = #tpu.pipeline_mode<synchronous>, transform_indices = @transform_2, window_bounds = array<i64: 1, 64>}, {transform_indices = @transform_3, window_bounds = array<i64: 16, 64>}]} {
    %c0 = arith.constant 0 : index
    %c0_0 = arith.constant 0 : index
    %0 = vector.load %arg1[%c0, %c0_0] : memref<16x32xf32, #tpu.memory_space<vmem>>, vector<16x32xf32>
    %1 = arith.truncf %0 : vector<16x32xf32> to vector<16x32xbf16>
    %c0_1 = arith.constant 0 : index
    %c0_2 = arith.constant 0 : index
    %2 = vector.load %arg2[%c0_1, %c0_2] : memref<32x64xbf16, #tpu.memory_space<vmem>>, vector<32x64xbf16>
    %cst = arith.constant dense<0.000000e+00> : vector<16x64xf32>
    %3 = tpu.matmul %1, %2, %cst {dimension_numbers = #tpu.dot_dimension_numbers<[1], [0], [0], [1], [0, 0, 1, 1], [], []>} : vector<16x32xbf16>, vector<32x64xbf16>, vector<16x64xf32> -> vector<16x64xf32>
    %c0_3 = arith.constant 0 : index
    %c0_4 = arith.constant 0 : index
    %4 = vector.load %arg3[%c0_3, %c0_4] : memref<1x64xf32, #tpu.memory_space<vmem>>, vector<1x64xf32>
    %5 = vector.broadcast %4 : vector<1x64xf32> to vector<16x64xf32>
    %6 = arith.addf %3, %5 : vector<16x64xf32>
    %c0_5 = arith.constant 0 : index
    %c0_6 = arith.constant 0 : index
    %7 = vector.load %arg4[%c0_5, %c0_6] : memref<16x64xf32, #tpu.memory_space<vmem>>, vector<16x64xf32>
    tpu.vector_store %arg4[%c0_5, %c0_6], %6 {strides = array<i32>} : memref<16x64xf32, #tpu.memory_space<vmem>>, vector<16x64xf32>,
    return
  }
  func.func @transform_0(%arg0: i32) -> (i32, i32) {
    %c0_i32 = arith.constant 0 : i32
    %c0_i32_0 = arith.constant 0 : i32
    return %arg0, %c0_i32 : i32, i32
  }
  func.func @transform_1(%arg0: i32) -> (i32, i32) {
    %c0_i32 = arith.constant 0 : i32
    %c0_i32_0 = arith.constant 0 : i32
    %c0_i32_1 = arith.constant 0 : i32
    return %c0_i32, %c0_i32_0 : i32, i32
  }
  func.func @transform_2(%arg0: i32) -> (i32, i32) {
    %c0_i32 = arith.constant 0 : i32
    %c0_i32_0 = arith.constant 0 : i32
    %c0_i32_1 = arith.constant 0 : i32
    return %c0_i32, %c0_i32_0 : i32, i32
  }
  func.func @transform_3(%arg0: i32) -> (i32, i32) {
    %c0_i32 = arith.constant 0 : i32
    %c0_i32_0 = arith.constant 0 : i32
    return %arg0, %c0_i32 : i32, i32
  }
}

module attributes {stable_mosaic.version = 11 : i64} {
  func.func @_add_ln_proj_kernel(%arg0: i32, %arg1: memref<16x32xf32, #tpu.memory_space<vmem>>, %arg2: memref<16x32xf32, #tpu.memory_space<vmem>>, %arg3: memref<1x32xf32, #tpu.memory_space<vmem>>, %arg4: memref<1x32xf32, #tpu.memory_space<vmem>>, %arg5: memref<32x32xbf16, #tpu.memory_space<vmem>>, %arg6: memref<1x32xf32, #tpu.memory_space<vmem>>, %arg7: memref<16x32xf32, #tpu.memory_space<vmem>>, %arg8: memref<16x32xf32, #tpu.memory_space<vmem>>) attributes {dimension_semantics = [#tpu.dimension_semantics<parallel>], iteration_bounds = array<i64: 1>, scalar_prefetch = 0 : i64, scratch_operands = 0 : i64, tpu.core_type = #tpu.core_type<tc>, window_params = [{transform_indices = @transform_0, window_bounds = array<i64: 16, 32>}, {transform_indices = @transform_1, window_bounds = array<i64: 16, 32>}, {pipeline_mode = #tpu.pipeline_mode<synchronous>, transform_indices = @transform_2, window_bounds = array<i64: 1, 32>}, {pipeline_mode = #tpu.pipeline_mode<synchronous>, transform_indices = @transform_3, window_bounds = array<i64: 1, 32>}, {pipeline_mode = #tpu.pipeline_mode<synchronous>, transform_indices = @transform_4, window_bounds = array<i64: 32, 32>}, {pipeline_mode = #tpu.pipeline_mode<synchronous>, transform_indices = @transform_5, window_bounds = array<i64: 1, 32>}, {transform_indices = @transform_6, window_bounds = array<i64: 16, 32>}, {transform_indices = @transform_7, window_bounds = array<i64: 16, 32>}]} {
    %c0 = arith.constant 0 : index
    %c0_0 = arith.constant 0 : index
    %0 = vector.load %arg1[%c0, %c0_0] : memref<16x32xf32, #tpu.memory_space<vmem>>, vector<16x32xf32>
    %c0_1 = arith.constant 0 : index
    %c0_2 = arith.constant 0 : index
    %1 = vector.load %arg2[%c0_1, %c0_2] : memref<16x32xf32, #tpu.memory_space<vmem>>, vector<16x32xf32>
    %2 = arith.addf %0, %1 : vector<16x32xf32>
    %c0_3 = arith.constant 0 : index
    %c0_4 = arith.constant 0 : index
    %3 = vector.load %arg3[%c0_3, %c0_4] : memref<1x32xf32, #tpu.memory_space<vmem>>, vector<1x32xf32>
    %c0_5 = arith.constant 0 : index
    %c0_6 = arith.constant 0 : index
    %4 = vector.load %arg4[%c0_5, %c0_6] : memref<1x32xf32, #tpu.memory_space<vmem>>, vector<1x32xf32>
    %cst = arith.constant dense<0.000000e+00> : vector<16xf32>
    %5 = vector.multi_reduction <add>, %2, %cst [1] : vector<16x32xf32> to vector<16xf32>
    %6 = vector.shape_cast %5 : vector<16xf32> to vector<16x1xf32>
    %cst_7 = arith.constant 3.200000e+01 : f32
    %7 = vector.broadcast %cst_7 : f32 to vector<16x1xf32>
    %8 = arith.divf %6, %7 : vector<16x1xf32>
    %9 = vector.broadcast %8 : vector<16x1xf32> to vector<16x32xf32>
    %10 = arith.subf %2, %9 : vector<16x32xf32>
    %11 = arith.mulf %10, %10 : vector<16x32xf32>
    %cst_8 = arith.constant dense<0.000000e+00> : vector<16xf32>
    %12 = vector.multi_reduction <add>, %11, %cst_8 [1] : vector<16x32xf32> to vector<16xf32>
    %13 = vector.shape_cast %12 : vector<16xf32> to vector<16x1xf32>
    %cst_9 = arith.constant 3.200000e+01 : f32
    %14 = vector.broadcast %cst_9 : f32 to vector<16x1xf32>
    %15 = arith.divf %13, %14 : vector<16x1xf32>
    %cst_10 = arith.constant 9.99999974E-6 : f32
    %16 = vector.broadcast %cst_10 : f32 to vector<16x1xf32>
    %17 = arith.addf %15, %16 : vector<16x1xf32>
    %18 = math.rsqrt %17 : vector<16x1xf32>
    %19 = vector.broadcast %18 : vector<16x1xf32> to vector<16x32xf32>
    %20 = arith.mulf %10, %19 : vector<16x32xf32>
    %21 = vector.broadcast %3 : vector<1x32xf32> to vector<16x32xf32>
    %22 = arith.mulf %20, %21 : vector<16x32xf32>
    %23 = vector.broadcast %4 : vector<1x32xf32> to vector<16x32xf32>
    %24 = arith.addf %22, %23 : vector<16x32xf32>
    %c0_11 = arith.constant 0 : index
    %c0_12 = arith.constant 0 : index
    %25 = vector.load %arg7[%c0_11, %c0_12] : memref<16x32xf32, #tpu.memory_space<vmem>>, vector<16x32xf32>
    tpu.vector_store %arg7[%c0_11, %c0_12], %24 {strides = array<i32>} : memref<16x32xf32, #tpu.memory_space<vmem>>, vector<16x32xf32>,
    %26 = arith.truncf %24 : vector<16x32xf32> to vector<16x32xbf16>
    %c0_13 = arith.constant 0 : index
    %c0_14 = arith.constant 0 : index
    %27 = vector.load %arg5[%c0_13, %c0_14] : memref<32x32xbf16, #tpu.memory_space<vmem>>, vector<32x32xbf16>
    %cst_15 = arith.constant dense<0.000000e+00> : vector<16x32xf32>
    %28 = tpu.matmul %26, %27, %cst_15 {dimension_numbers = #tpu.dot_dimension_numbers<[1], [0], [0], [1], [0, 0, 1, 1], [], []>} : vector<16x32xbf16>, vector<32x32xbf16>, vector<16x32xf32> -> vector<16x32xf32>
    %c0_16 = arith.constant 0 : index
    %c0_17 = arith.constant 0 : index
    %29 = vector.load %arg6[%c0_16, %c0_17] : memref<1x32xf32, #tpu.memory_space<vmem>>, vector<1x32xf32>
    %30 = vector.broadcast %29 : vector<1x32xf32> to vector<16x32xf32>
    %31 = arith.addf %28, %30 : vector<16x32xf32>
    %c0_18 = arith.constant 0 : index
    %c0_19 = arith.constant 0 : index
    %32 = vector.load %arg8[%c0_18, %c0_19] : memref<16x32xf32, #tpu.memory_space<vmem>>, vector<16x32xf32>
    tpu.vector_store %arg8[%c0_18, %c0_19], %31 {strides = array<i32>} : memref<16x32xf32, #tpu.memory_space<vmem>>, vector<16x32xf32>,
    return
  }
  func.func @transform_0(%arg0: i32) -> (i32, i32) {
    %c0_i32 = arith.constant 0 : i32
    %c0_i32_0 = arith.constant 0 : i32
    return %arg0, %c0_i32 : i32, i32
  }
  func.func @transform_1(%arg0: i32) -> (i32, i32) {
    %c0_i32 = arith.constant 0 : i32
    %c0_i32_0 = arith.constant 0 : i32
    return %arg0, %c0_i32 : i32, i32
  }
  func.func @transform_2(%arg0: i32) -> (i32, i32) {
    %c0_i32 = arith.constant 0 : i32
    %c0_i32_0 = arith.constant 0 : i32
    %c0_i32_1 = arith.constant 0 : i32
    return %c0_i32, %c0_i32_0 : i32, i32
  }
  func.func @transform_3(%arg0: i32) -> (i32, i32) {
    %c0_i32 = arith.constant 0 : i32
    %c0_i32_0 = arith.constant 0 : i32
    %c0_i32_1 = arith.constant 0 : i32
    return %c0_i32, %c0_i32_0 : i32, i32
  }
  func.func @transform_4(%arg0: i32) -> (i32, i32) {
    %c0_i32 = arith.constant 0 : i32
    %c0_i32_0 = arith.constant 0 : i32
    %c0_i32_1 = arith.constant 0 : i32
    return %c0_i32, %c0_i32_0 : i32, i32
  }
  func.func @transform_5(%arg0: i32) -> (i32, i32) {
    %c0_i32 = arith.constant 0 : i32
    %c0_i32_0 = arith.constant 0 : i32
    %c0_i32_1 = arith.constant 0 : i32
    return %c0_i32, %c0_i32_0 : i32, i32
  }
  func.func @transform_6(%arg0: i32) -> (i32, i32) {
    %c0_i32 = arith.constant 0 : i32
    %c0_i32_0 = arith.constant 0 : i32
    return %arg0, %c0_i32 : i32, i32
  }
  func.func @transform_7(%arg0: i32) -> (i32, i32) {
    %c0_i32 = arith.constant 0 : i32
    %c0_i32_0 = arith.constant 0 : i32
    return %arg0, %c0_i32 : i32, i32
  }
}

module attributes {stable_mosaic.version = 11 : i64} {
  func.func @_logits_kernel(%arg0: i32, %arg1: i32, %arg2: memref<16x32xf32, #tpu.memory_space<vmem>>, %arg3: memref<128x32xbf16, #tpu.memory_space<vmem>>, %arg4: memref<16x128xf32, #tpu.memory_space<vmem>>) attributes {dimension_semantics = [#tpu.dimension_semantics<parallel>, #tpu.dimension_semantics<parallel>], iteration_bounds = array<i64: 1, 1>, scalar_prefetch = 0 : i64, scratch_operands = 0 : i64, tpu.core_type = #tpu.core_type<tc>, window_params = [{transform_indices = @transform_0, window_bounds = array<i64: 16, 32>}, {transform_indices = @transform_1, window_bounds = array<i64: 128, 32>}, {transform_indices = @transform_2, window_bounds = array<i64: 16, 128>}]} {
    %c0 = arith.constant 0 : index
    %c0_0 = arith.constant 0 : index
    %0 = vector.load %arg2[%c0, %c0_0] : memref<16x32xf32, #tpu.memory_space<vmem>>, vector<16x32xf32>
    %1 = arith.truncf %0 : vector<16x32xf32> to vector<16x32xbf16>
    %c0_1 = arith.constant 0 : index
    %c0_2 = arith.constant 0 : index
    %2 = vector.load %arg3[%c0_1, %c0_2] : memref<128x32xbf16, #tpu.memory_space<vmem>>, vector<128x32xbf16>
    %cst = arith.constant dense<0.000000e+00> : vector<16x128xf32>
    %3 = tpu.matmul %1, %2, %cst {dimension_numbers = #tpu.dot_dimension_numbers<[1], [1], [0], [0], [0, 0, 1, 0], [], []>} : vector<16x32xbf16>, vector<128x32xbf16>, vector<16x128xf32> -> vector<16x128xf32>
    %c0_3 = arith.constant 0 : index
    %c0_4 = arith.constant 0 : index
    %4 = vector.load %arg4[%c0_3, %c0_4] : memref<16x128xf32, #tpu.memory_space<vmem>>, vector<16x128xf32>
    tpu.vector_store %arg4[%c0_3, %c0_4], %3 {strides = array<i32>} : memref<16x128xf32, #tpu.memory_space<vmem>>, vector<16x128xf32>,
    return
  }
  func.func @transform_0(%arg0: i32, %arg1: i32) -> (i32, i32) {
    %c0_i32 = arith.constant 0 : i32
    %c0_i32_0 = arith.constant 0 : i32
    return %arg1, %c0_i32 : i32, i32
  }
  func.func @transform_1(%arg0: i32, %arg1: i32) -> (i32, i32) {
    %c0_i32 = arith.constant 0 : i32
    %c0_i32_0 = arith.constant 0 : i32
    return %arg0, %c0_i32 : i32, i32
  }
  func.func @transform_2(%arg0: i32, %arg1: i32) -> (i32, i32) {
    %c0_i32 = arith.constant 0 : i32
    return %arg1, %arg0 : i32, i32
  }
}

module attributes {stable_mosaic.version = 11 : i64} {
  func.func @_attn_causal_kernel(%arg0: i32, %arg1: i32, %arg2: memref<1x8x32xf32, #tpu.memory_space<vmem>>, %arg3: memref<1x8x32xf32, #tpu.memory_space<vmem>>, %arg4: memref<1x8x32xf32, #tpu.memory_space<vmem>>, %arg5: memref<1x8x32xf32, #tpu.memory_space<vmem>>) attributes {dimension_semantics = [#tpu.dimension_semantics<parallel>, #tpu.dimension_semantics<parallel>], iteration_bounds = array<i64: 2, 1>, scalar_prefetch = 0 : i64, scratch_operands = 0 : i64, tpu.core_type = #tpu.core_type<tc>, window_params = [{transform_indices = @transform_0, window_bounds = array<i64: 1, 8, 32>}, {transform_indices = @transform_1, window_bounds = array<i64: 1, 8, 32>}, {transform_indices = @transform_2, window_bounds = array<i64: 1, 8, 32>}, {transform_indices = @transform_3, window_bounds = array<i64: 1, 8, 32>}]} {
    %c8_i32 = arith.constant 8 : i32
    %0 = arith.muli %arg1, %c8_i32 : i32
    %1 = tpu.iota {dimensions = array<i32: 0>} : vector<8x8xi32>
    %2 = vector.broadcast %0 : i32 to vector<8x8xi32>
    %3 = arith.addi %1, %2 : vector<8x8xi32>
    %4 = tpu.iota {dimensions = array<i32: 1>} : vector<8x8xi32>
    %5 = arith.cmpi sge, %3, %4 : vector<8x8xi32>
    %cst = arith.constant 0.000000e+00 : f32
    %cst_0 = arith.constant -1.000000e+30 : f32
    %6 = vector.broadcast %cst : f32 to vector<8x8xf32>
    %7 = vector.broadcast %cst_0 : f32 to vector<8x8xf32>
    %8 = arith.select %5, %6, %7 : vector<8x8xi1>, vector<8x8xf32>
    %c0 = arith.constant 0 : index
    %c0_1 = arith.constant 0 : index
    %c0_2 = arith.constant 0 : index
    %9 = vector.load %arg2[%c0, %c0_1, %c0_2] : memref<1x8x32xf32, #tpu.memory_space<vmem>>, vector<1x8x32xf32>
    %10 = vector.shape_cast %9 : vector<1x8x32xf32> to vector<8x32xf32>
    %c0_3 = arith.constant 0 : index
    %c0_4 = arith.constant 0 : index
    %c0_5 = arith.constant 0 : index
    %11 = vector.load %arg3[%c0_3, %c0_4, %c0_5] : memref<1x8x32xf32, #tpu.memory_space<vmem>>, vector<1x8x32xf32>
    %12 = vector.shape_cast %11 : vector<1x8x32xf32> to vector<8x32xf32>
    %c0_6 = arith.constant 0 : index
    %c0_7 = arith.constant 0 : index
    %c0_8 = arith.constant 0 : index
    %13 = vector.load %arg4[%c0_6, %c0_7, %c0_8] : memref<1x8x32xf32, #tpu.memory_space<vmem>>, vector<1x8x32xf32>
    %14 = vector.shape_cast %13 : vector<1x8x32xf32> to vector<8x32xf32>
    %15 = vector.extract_strided_slice %10 {offsets = [0, 0], sizes = [8, 8], strides = [1, 1]} : vector<8x32xf32> to vector<8x8xf32>
    %cst_9 = arith.constant 0.353553385 : f32
    %16 = vector.broadcast %cst_9 : f32 to vector<8x8xf32>
    %17 = arith.mulf %15, %16 : vector<8x8xf32>
    %18 = arith.truncf %17 : vector<8x8xf32> to vector<8x8xbf16>
    %19 = vector.extract_strided_slice %12 {offsets = [0, 0], sizes = [8, 8], strides = [1, 1]} : vector<8x32xf32> to vector<8x8xf32>
    %20 = arith.truncf %19 : vector<8x8xf32> to vector<8x8xbf16>
    %21 = vector.extract_strided_slice %14 {offsets = [0, 0], sizes = [8, 8], strides = [1, 1]} : vector<8x32xf32> to vector<8x8xf32>
    %22 = arith.truncf %21 : vector<8x8xf32> to vector<8x8xbf16>
    %cst_10 = arith.constant dense<0.000000e+00> : vector<8x8xf32>
    %23 = tpu.matmul %18, %20, %cst_10 {dimension_numbers = #tpu.dot_dimension_numbers<[1], [1], [0], [0], [0, 0, 1, 0], [], []>} : vector<8x8xbf16>, vector<8x8xbf16>, vector<8x8xf32> -> vector<8x8xf32>
    %24 = arith.addf %23, %8 : vector<8x8xf32>
    %cst_11 = arith.constant dense<0xFF800000> : vector<8xf32>
    %25 = vector.multi_reduction <maximumf>, %24, %cst_11 [1] : vector<8x8xf32> to vector<8xf32>
    %26 = vector.shape_cast %25 : vector<8xf32> to vector<8x1xf32>
    %27 = vector.broadcast %26 : vector<8x1xf32> to vector<8x8xf32>
    %28 = arith.subf %24, %27 : vector<8x8xf32>
    %29 = math.exp %28 : vector<8x8xf32>
    %cst_12 = arith.constant dense<0.000000e+00> : vector<8xf32>
    %30 = vector.multi_reduction <add>, %29, %cst_12 [1] : vector<8x8xf32> to vector<8xf32>
    %31 = vector.shape_cast %30 : vector<8xf32> to vector<8x1xf32>
    %32 = tpu.reciprocal %31 {approx = true} : vector<8x1xf32> -> vector<8x1xf32>
    %33 = vector.broadcast %32 : vector<8x1xf32> to vector<8x8xf32>
    %34 = arith.mulf %29, %33 : vector<8x8xf32>
    %35 = arith.truncf %34 : vector<8x8xf32> to vector<8x8xbf16>
    %cst_13 = arith.constant dense<0.000000e+00> : vector<8x8xf32>
    %36 = tpu.matmul %35, %22, %cst_13 {dimension_numbers = #tpu.dot_dimension_numbers<[1], [0], [0], [1], [0, 0, 1, 1], [], []>} : vector<8x8xbf16>, vector<8x8xbf16>, vector<8x8xf32> -> vector<8x8xf32>
    %37 = vector.extract_strided_slice %10 {offsets = [0, 8], sizes = [8, 8], strides = [1, 1]} : vector<8x32xf32> to vector<8x8xf32>
    %cst_14 = arith.constant 0.353553385 : f32
    %38 = vector.broadcast %cst_14 : f32 to vector<8x8xf32>
    %39 = arith.mulf %37, %38 : vector<8x8xf32>
    %40 = arith.truncf %39 : vector<8x8xf32> to vector<8x8xbf16>
    %41 = vector.extract_strided_slice %12 {offsets = [0, 8], sizes = [8, 8], strides = [1, 1]} : vector<8x32xf32> to vector<8x8xf32>
    %42 = arith.truncf %41 : vector<8x8xf32> to vector<8x8xbf16>
    %43 = vector.extract_strided_slice %14 {offsets = [0, 8], sizes = [8, 8], strides = [1, 1]} : vector<8x32xf32> to vector<8x8xf32>
    %44 = arith.truncf %43 : vector<8x8xf32> to vector<8x8xbf16>
    %cst_15 = arith.constant dense<0.000000e+00> : vector<8x8xf32>
    %45 = tpu.matmul %40, %42, %cst_15 {dimension_numbers = #tpu.dot_dimension_numbers<[1], [1], [0], [0], [0, 0, 1, 0], [], []>} : vector<8x8xbf16>, vector<8x8xbf16>, vector<8x8xf32> -> vector<8x8xf32>
    %46 = arith.addf %45, %8 : vector<8x8xf32>
    %cst_16 = arith.constant dense<0xFF800000> : vector<8xf32>
    %47 = vector.multi_reduction <maximumf>, %46, %cst_16 [1] : vector<8x8xf32> to vector<8xf32>
    %48 = vector.shape_cast %47 : vector<8xf32> to vector<8x1xf32>
    %49 = vector.broadcast %48 : vector<8x1xf32> to vector<8x8xf32>
    %50 = arith.subf %46, %49 : vector<8x8xf32>
    %51 = math.exp %50 : vector<8x8xf32>
    %cst_17 = arith.constant dense<0.000000e+00> : vector<8xf32>
    %52 = vector.multi_reduction <add>, %51, %cst_17 [1] : vector<8x8xf32> to vector<8xf32>
    %53 = vector.shape_cast %52 : vector<8xf32> to vector<8x1xf32>
    %54 = tpu.reciprocal %53 {approx = true} : vector<8x1xf32> -> vector<8x1xf32>
    %55 = vector.broadcast %54 : vector<8x1xf32> to vector<8x8xf32>
    %56 = arith.mulf %51, %55 : vector<8x8xf32>
    %57 = arith.truncf %56 : vector<8x8xf32> to vector<8x8xbf16>
    %cst_18 = arith.constant dense<0.000000e+00> : vector<8x8xf32>
    %58 = tpu.matmul %57, %44, %cst_18 {dimension_numbers = #tpu.dot_dimension_numbers<[1], [0], [0], [1], [0, 0, 1, 1], [], []>} : vector<8x8xbf16>, vector<8x8xbf16>, vector<8x8xf32> -> vector<8x8xf32>
    %59 = vector.extract_strided_slice %10 {offsets = [0, 16], sizes = [8, 8], strides = [1, 1]} : vector<8x32xf32> to vector<8x8xf32>
    %cst_19 = arith.constant 0.353553385 : f32
    %60 = vector.broadcast %cst_19 : f32 to vector<8x8xf32>
    %61 = arith.mulf %59, %60 : vector<8x8xf32>
    %62 = arith.truncf %61 : vector<8x8xf32> to vector<8x8xbf16>
    %63 = vector.extract_strided_slice %12 {offsets = [0, 16], sizes = [8, 8], strides = [1, 1]} : vector<8x32xf32> to vector<8x8xf32>
    %64 = arith.truncf %63 : vector<8x8xf32> to vector<8x8xbf16>
    %65 = vector.extract_strided_slice %14 {offsets = [0, 16], sizes = [8, 8], strides = [1, 1]} : vector<8x32xf32> to vector<8x8xf32>
    %66 = arith.truncf %65 : vector<8x8xf32> to vector<8x8xbf16>
    %cst_20 = arith.constant dense<0.000000e+00> : vector<8x8xf32>
    %67 = tpu.matmul %62, %64, %cst_20 {dimension_numbers = #tpu.dot_dimension_numbers<[1], [1], [0], [0], [0, 0, 1, 0], [], []>} : vector<8x8xbf16>, vector<8x8xbf16>, vector<8x8xf32> -> vector<8x8xf32>
    %68 = arith.addf %67, %8 : vector<8x8xf32>
    %cst_21 = arith.constant dense<0xFF800000> : vector<8xf32>
    %69 = vector.multi_reduction <maximumf>, %68, %cst_21 [1] : vector<8x8xf32> to vector<8xf32>
    %70 = vector.shape_cast %69 : vector<8xf32> to vector<8x1xf32>
    %71 = vector.broadcast %70 : vector<8x1xf32> to vector<8x8xf32>
    %72 = arith.subf %68, %71 : vector<8x8xf32>
    %73 = math.exp %72 : vector<8x8xf32>
    %cst_22 = arith.constant dense<0.000000e+00> : vector<8xf32>
    %74 = vector.multi_reduction <add>, %73, %cst_22 [1] : vector<8x8xf32> to vector<8xf32>
    %75 = vector.shape_cast %74 : vector<8xf32> to vector<8x1xf32>
    %76 = tpu.reciprocal %75 {approx = true} : vector<8x1xf32> -> vector<8x1xf32>
    %77 = vector.broadcast %76 : vector<8x1xf32> to vector<8x8xf32>
    %78 = arith.mulf %73, %77 : vector<8x8xf32>
    %79 = arith.truncf %78 : vector<8x8xf32> to vector<8x8xbf16>
    %cst_23 = arith.constant dense<0.000000e+00> : vector<8x8xf32>
    %80 = tpu.matmul %79, %66, %cst_23 {dimension_numbers = #tpu.dot_dimension_numbers<[1], [0], [0], [1], [0, 0, 1, 1], [], []>} : vector<8x8xbf16>, vector<8x8xbf16>, vector<8x8xf32> -> vector<8x8xf32>
    %81 = vector.extract_strided_slice %10 {offsets = [0, 24], sizes = [8, 8], strides = [1, 1]} : vector<8x32xf32> to vector<8x8xf32>
    %cst_24 = arith.constant 0.353553385 : f32
    %82 = vector.broadcast %cst_24 : f32 to vector<8x8xf32>
    %83 = arith.mulf %81, %82 : vector<8x8xf32>
    %84 = arith.truncf %83 : vector<8x8xf32> to vector<8x8xbf16>
    %85 = vector.extract_strided_slice %12 {offsets = [0, 24], sizes = [8, 8], strides = [1, 1]} : vector<8x32xf32> to vector<8x8xf32>
    %86 = arith.truncf %85 : vector<8x8xf32> to vector<8x8xbf16>
    %87 = vector.extract_strided_slice %14 {offsets = [0, 24], sizes = [8, 8], strides = [1, 1]} : vector<8x32xf32> to vector<8x8xf32>
    %88 = arith.truncf %87 : vector<8x8xf32> to vector<8x8xbf16>
    %cst_25 = arith.constant dense<0.000000e+00> : vector<8x8xf32>
    %89 = tpu.matmul %84, %86, %cst_25 {dimension_numbers = #tpu.dot_dimension_numbers<[1], [1], [0], [0], [0, 0, 1, 0], [], []>} : vector<8x8xbf16>, vector<8x8xbf16>, vector<8x8xf32> -> vector<8x8xf32>
    %90 = arith.addf %89, %8 : vector<8x8xf32>
    %cst_26 = arith.constant dense<0xFF800000> : vector<8xf32>
    %91 = vector.multi_reduction <maximumf>, %90, %cst_26 [1] : vector<8x8xf32> to vector<8xf32>
    %92 = vector.shape_cast %91 : vector<8xf32> to vector<8x1xf32>
    %93 = vector.broadcast %92 : vector<8x1xf32> to vector<8x8xf32>
    %94 = arith.subf %90, %93 : vector<8x8xf32>
    %95 = math.exp %94 : vector<8x8xf32>
    %cst_27 = arith.constant dense<0.000000e+00> : vector<8xf32>
    %96 = vector.multi_reduction <add>, %95, %cst_27 [1] : vector<8x8xf32> to vector<8xf32>
    %97 = vector.shape_cast %96 : vector<8xf32> to vector<8x1xf32>
    %98 = tpu.reciprocal %97 {approx = true} : vector<8x1xf32> -> vector<8x1xf32>
    %99 = vector.broadcast %98 : vector<8x1xf32> to vector<8x8xf32>
    %100 = arith.mulf %95, %99 : vector<8x8xf32>
    %101 = arith.truncf %100 : vector<8x8xf32> to vector<8x8xbf16>
    %cst_28 = arith.constant dense<0.000000e+00> : vector<8x8xf32>
    %102 = tpu.matmul %101, %88, %cst_28 {dimension_numbers = #tpu.dot_dimension_numbers<[1], [0], [0], [1], [0, 0, 1, 1], [], []>} : vector<8x8xbf16>, vector<8x8xbf16>, vector<8x8xf32> -> vector<8x8xf32>
    %103 = tpu.concatenate %36, %58, %80, %102 in 1 : vector<8x8xf32>, vector<8x8xf32>, vector<8x8xf32>, vector<8x8xf32> -> vector<8x32xf32>
    %c0_29 = arith.constant 0 : index
    %c0_30 = arith.constant 0 : index
    %c0_31 = arith.constant 0 : index
    %104 = vector.load %arg5[%c0_29, %c0_30, %c0_31] : memref<1x8x32xf32, #tpu.memory_space<vmem>>, vector<1x8x32xf32>
    %105 = vector.shape_cast %104 : vector<1x8x32xf32> to vector<8x32xf32>
    %106 = vector.shape_cast %103 : vector<8x32xf32> to vector<1x8x32xf32>
    tpu.vector_store %arg5[%c0_29, %c0_30, %c0_31], %106 {strides = array<i32>} : memref<1x8x32xf32, #tpu.memory_space<vmem>>, vector<1x8x32xf32>,
    return
  }
  func.func @transform_0(%arg0: i32, %arg1: i32) -> (i32, i32, i32) {
    %c0_i32 = arith.constant 0 : i32
    %c0_i32_0 = arith.constant 0 : i32
    return %arg0, %arg1, %c0_i32 : i32, i32, i32
  }
  func.func @transform_1(%arg0: i32, %arg1: i32) -> (i32, i32, i32) {
    %c0_i32 = arith.constant 0 : i32
    %c0_i32_0 = arith.constant 0 : i32
    %c0_i32_1 = arith.constant 0 : i32
    return %arg0, %c0_i32, %c0_i32_0 : i32, i32, i32
  }
  func.func @transform_2(%arg0: i32, %arg1: i32) -> (i32, i32, i32) {
    %c0_i32 = arith.constant 0 : i32
    %c0_i32_0 = arith.constant 0 : i32
    %c0_i32_1 = arith.constant 0 : i32
    return %arg0, %c0_i32, %c0_i32_0 : i32, i32, i32
  }
  func.func @transform_3(%arg0: i32, %arg1: i32) -> (i32, i32, i32) {
    %c0_i32 = arith.constant 0 : i32
    %c0_i32_0 = arith.constant 0 : i32
    return %arg0, %arg1, %c0_i32 : i32, i32, i32
  }
}

</mosaic_0001>

<llo_original>
// kernel: encoder_decoder_fwd.21
$region0: #{encoder_decoder_fwd.21}
  #allocation0 [shape = 'u32[]', space=smem, size = 0x4, offset = 0x4, fixed_abs, tag = 'smem constant byte address 0x4 - core index']
  #allocation1 [shape = 'u32[72,128]{1,0:T(1,128)}', space=vmem, size = 0x9000, scoped, tag = 'internal scratch']
  %s0 = inlined_call_operand.vmem [shape: f32[16,32], index: 0, kind: input, shape index: {}]
  %s1 = inlined_call_operand.vmem [shape: f32[1,32], index: 1, kind: input, shape index: {}]
  %s2 = inlined_call_operand.vmem [shape: f32[1,32], index: 2, kind: input, shape index: {}]
  %s3 = inlined_call_operand.vmem [shape: bf16[32,96], index: 3, kind: input, shape index: {}]
  %s4 = inlined_call_operand.vmem [shape: f32[1,96], index: 4, kind: input, shape index: {}]
  %s5 = inlined_call_operand.vmem [shape: f32[16,32], index: 5, kind: output, shape index: {0}]
  %s6 = inlined_call_operand.vmem [shape: f32[16,96], index: 6, kind: output, shape index: {1}]
  %7 = xla_tuple %s5, %s6
  %s8 = sld [smem:[#allocation0]]
  $region38: #{encoder_decoder_fwd.21} parent=0
    _
  %s10 = ssub.s32 1, %s8
  %s11 = scalar_select 0, %s10, %s8
  // Predicated region
  $region2: #{encoder_decoder_fwd.21} parent=0 // pred_check
    _
  $region3: #{encoder_decoder_fwd.21} parent=0 // pred_check_branch
    %13 = sbr.rel (0) target = $region5
  $region4: #{encoder_decoder_fwd.21} parent=0 // pred_region
    _
  $region5: #{encoder_decoder_fwd.21} parent=0 // pred_fallthru
    _
  // Predicated region
  $region6: #{encoder_decoder_fwd.21} parent=0 // pred_check
    _
  $region7: #{encoder_decoder_fwd.21} parent=0 // pred_check_branch
    %15 = sbr.rel (0) target = $region9
  $region8: #{encoder_decoder_fwd.21} parent=0 // pred_region
    _
  $region9: #{encoder_decoder_fwd.21} parent=0 // pred_fallthru
    _
  // Predicated region
  $region10: #{encoder_decoder_fwd.21} parent=0 // pred_check
    _
  $region11: #{encoder_decoder_fwd.21} parent=0 // pred_check_branch
    %17 = sbr.rel (0) target = $region13
  $region12: #{encoder_decoder_fwd.21} parent=0 // pred_region
    _
  $region13: #{encoder_decoder_fwd.21} parent=0 // pred_fallthru
    _
  // Predicated region
  $region14: #{encoder_decoder_fwd.21} parent=0 // pred_check
    _
  $region15: #{encoder_decoder_fwd.21} parent=0 // pred_check_branch
    %19 = sbr.rel (0) target = $region17
  $region16: #{encoder_decoder_fwd.21} parent=0 // pred_region
    _
  $region17: #{encoder_decoder_fwd.21} parent=0 // pred_fallthru
    _
  // Predicated region
  $region18: #{encoder_decoder_fwd.21} parent=0 // pred_check
    _
  $region19: #{encoder_decoder_fwd.21} parent=0 // pred_check_branch
    %21 = sbr.rel (0) target = $region21
  $region20: #{encoder_decoder_fwd.21} parent=0 // pred_region
    _
  $region21: #{encoder_decoder_fwd.21} parent=0 // pred_fallthru
    _
  %v23 = vld [vmem:[%s0] sm:$0xff]
  %v24 = vld [vmem:[%s0 + $0x8] sm:$0xff]
  %v25 = vld [vmem:[%s1] sm:$0x1]
  %v26 = vld [vmem:[%s2] sm:$0x1]
  %vm27 = vcmask 261120
  %v28 = vsel %vm27, %v23, 0.0
  %29 = vadd.xlane.f32.xlu0 %v28
  %v30 = vpop.xlane.xlu0 %29
  %v31 = vsel %vm27, %v24, 0.0
  %32 = vadd.xlane.f32.xlu0 %v31
  %v33 = vpop.xlane.xlu0 %32
  %v34 = vrcp.pop 32.0
  %v35 = vmul.f32 32.0, %v34
  %v36 = vsub.f32 1.0, %v35
  %v37 = vmul.f32 %v34, %v36
  %v38 = vadd.f32 %v34, %v37
  %vm39 = vweird.f32 %v34
  %v40 = vsel %vm39, %v34, %v38
  %v41 = vmul.f32 %v30, %v40
  %v42 = vmul.f32 %v33, %v40
  %v43 = vsub.f32 %v23, %v41
  %v44 = vsub.f32 %v24, %v42
  %v45 = vmul.f32 %v43, %v43
  %v46 = vmul.f32 %v44, %v44
  %v47 = vsel %vm27, %v45, 0.0
  %48 = vadd.xlane.f32.xlu0 %v47
  %v49 = vpop.xlane.xlu0 %48
  %v50 = vsel %vm27, %v46, 0.0
  %51 = vadd.xlane.f32.xlu0 %v50
  %v52 = vpop.xlane.xlu0 %51
  %v53 = vmul.f32 %v49, %v40
  %v54 = vmul.f32 %v52, %v40
  %v55 = vadd.f32 %v53, 1e-05
  %v56 = vadd.f32 %v54, 1e-05
  %v57 = vrsqrt.pop %v55
  %v58 = vmul.f32 %v57, %v55
  %v59 = vmul.f32 %v58, %v57
  %v60 = vmul.f32 0.5, %v59
  %v61 = vsub.f32 1.5, %v60
  %v62 = vmul.f32 %v57, %v61
  %vm63 = vweird.f32 %v55
  %vm64 = vweird.f32 %v57
  %vm65 = vmor %vm63, %vm64
  %v66 = vsel %vm65, %v57, %v62
  %v67 = vrsqrt.pop %v56
  %v68 = vmul.f32 %v67, %v56
  %v69 = vmul.f32 %v68, %v67
  %v70 = vmul.f32 0.5, %v69
  %v71 = vsub.f32 1.5, %v70
  %v72 = vmul.f32 %v67, %v71
  %vm73 = vweird.f32 %v56
  %vm74 = vweird.f32 %v67
  %vm75 = vmor %vm73, %vm74
  %v76 = vsel %vm75, %v67, %v72
  %v77 = vmul.f32 %v43, %v66
  %v78 = vmul.f32 %v44, %v76
  %v80 = vperm.slane %v25, 0
  %v82 = vmul.f32 %v77, %v80
  %v83 = vmul.f32 %v78, %v80
  %v85 = vperm.slane %v26, 0
  %v87 = vadd.f32 %v82, %v85
  %v88 = vadd.f32 %v83, %v85
  %89 = vst.msk [vmem:[%s5] sm:$0xff] %vm27, %v87
  %90 = vst.msk [vmem:[%s5 + $0x8] sm:$0xff] %vm27, %v88
  %v91 = vpack.c.bf16 %v88, %v87
  %v92 = vld [vmem:[%s3] sm:$0xf]
  %v93 = vld [vmem:[%s3 + $0x4] sm:$0xf]
  %v94 = vld [vmem:[%s3 + $0x8] sm:$0xf]
  %v95 = vld [vmem:[%s3 + $0xc] sm:$0xf]
  %v96 = vld [vmem:[%s4] sm:$0x1]
  %v98 = vperm.slane %v96, 0
  %v104 = vunpack.c.l.b16 %v92
  %v105 = vunpack.c.l.b16 %v93
  %v106 = vunpack.c.l.b16 %v94
  %v107 = vunpack.c.l.b16 %v95
  %v108 = vpack.c.b16 %v105, %v104
  %v109 = vpack.c.b16 %v107, %v106
  %v113 = vsel %vm27, %v91, 0
  %115 = vmatpush.bf16.msra.mxu0 0
  %116 = vmatpush.bf16.msra.mxu0 0
  %117 = vmatpush.bf16.msra.mxu0 0
  %118 = vmatpush.bf16.msra.mxu0 0
  %119 = vmatpush.bf16.msra.mxu0 0
  %120 = vmatpush.bf16.msra.mxu0 0
  %121 = vmatpush.bf16.msra.mxu0 %v109
  %122 = vmatpush.bf16.msra.mxu0 %v108
  %123 = vmatmul.bf16.gmra.mxu0 %v113
  %v124 = vpop.f32.mrf.mxu0
  %v125 = vadd.f32 %v98, %v124
  %v126 = vpop.f32.mrf.mxu0
  %v127 = vadd.f32 %v98, %v126
  %128 = vdwg.mxu0
  %vm129 = vcmask 785408
  %130 = vst.msk [vmem:[%s6] sm:$0xff] %vm129, %v125
  %131 = vst.msk [vmem:[%s6 + $0x8] sm:$0xff] %vm129, %v127
  // Predicated region
  $region22: #{encoder_decoder_fwd.21} parent=0 // pred_check
    _
  $region23: #{encoder_decoder_fwd.21} parent=0 // pred_check_branch
    %133 = sbr.rel (0) target = $region25
  $region24: #{encoder_decoder_fwd.21} parent=0 // pred_region
    _
  $region25: #{encoder_decoder_fwd.21} parent=0 // pred_fallthru
    _
  // Predicated region
  $region26: #{encoder_decoder_fwd.21} parent=0 // pred_check
    _
  $region27: #{encoder_decoder_fwd.21} parent=0 // pred_check_branch
    %135 = sbr.rel (0) target = $region29
  $region28: #{encoder_decoder_fwd.21} parent=0 // pred_region
    _
  $region29: #{encoder_decoder_fwd.21} parent=0 // pred_fallthru
    _
  // Predicated region
  $region30: #{encoder_decoder_fwd.21} parent=0 // pred_check
    _
  $region31: #{encoder_decoder_fwd.21} parent=0 // pred_check_branch
    %137 = sbr.rel (0) target = $region33
  $region32: #{encoder_decoder_fwd.21} parent=0 // pred_region
    _
  $region33: #{encoder_decoder_fwd.21} parent=0 // pred_fallthru
    _
  // Predicated region
  $region34: #{encoder_decoder_fwd.21} parent=0 // pred_check
    _
  $region35: #{encoder_decoder_fwd.21} parent=0 // pred_check_branch
    %139 = sbr.rel (0) target = $region37
  $region36: #{encoder_decoder_fwd.21} parent=0 // pred_region
    _
  $region37: #{encoder_decoder_fwd.21} parent=0 // pred_fallthru
    _

// kernel: encoder_decoder_fwd.22
$region0: #{encoder_decoder_fwd.22}
  #allocation0 [shape = 'u32[]', space=smem, size = 0x4, offset = 0x4, fixed_abs, tag = 'smem constant byte address 0x4 - core index']
  #allocation1 [shape = 'u32[72,128]{1,0:T(1,128)}', space=vmem, size = 0x9000, scoped, tag = 'internal scratch']
  %s0 = inlined_call_operand.vmem [shape: f32[2,8,32], index: 0, kind: input, shape index: {}]
  %s1 = inlined_call_operand.vmem [shape: f32[2,8,32], index: 1, kind: input, shape index: {}]
  %s2 = inlined_call_operand.vmem [shape: f32[2,8,32], index: 2, kind: input, shape index: {}]
  %s3 = inlined_call_operand.vmem [shape: f32[2,1,8], index: 3, kind: input, shape index: {}]
  %s4 = inlined_call_operand.vmem [shape: f32[2,8,32], index: 4, kind: output, shape index: {}]
  %s5 = sld [smem:[#allocation0]]
  $region49: #{encoder_decoder_fwd.22} parent=0
    _
  %s7 = ssub.s32 1, %s5
  %s8 = scalar_select 0, %s7, %s5
  loop: start=0, step=1, limit=4
  $region2: #{encoder_decoder_fwd.22} parent=0 // loop_pre_header
    _
  $region3: #{encoder_decoder_fwd.22} parent=0 // loop_header
    %s10 = sphi 0, %s14
    %p11 = scmp.ge.s32.totalorder %s10, 4
    %s17 = sphi 0, %s29
    %s18 = sphi 0, %s25
    %s19 = sphi 0, %s17
    %s20 = sphi 0, %s18
    %s21 = sphi 0, %s19
    %s22 = sphi 0, %s20
    %s34 = sphi 0, %s36
    %s37 = sphi 0, %s34
    %s38 = sphi 0, %s37
    %s54 = sphi 0, %s38
    %s60 = sphi 0, %s62
    %s63 = sphi 0, %s60
    %s64 = sphi 0, %s63
    %s80 = sphi 0, %s64
    %s86 = sphi 0, %s88
    %s89 = sphi 0, %s86
    %s90 = sphi 0, %s89
    %s106 = sphi 0, %s90
    %s112 = sphi 0, %s114
    %s115 = sphi 0, %s112
    %s116 = sphi 0, %s115
    %s132 = sphi 0, %s116
    %s140 = sphi 0, %s142
    %s143 = sphi 0, %s140
    %s144 = sphi 0, %s143
    %s160 = sphi 0, %s144
  $region4: #{encoder_decoder_fwd.22} parent=0 // loop_header_branch
    %13 = sbr.rel (%p11) target = $region8
  $region5: #{encoder_decoder_fwd.22} parent=0 // loop_body
    %s15 = ssub.s32 %s10, 1
    %s16 = ssub.s32 %s10, 2
    %s23 = sadd.s32 1, %s18
    %p24 = scmp.ge.s32.totalorder %s23, 1
    %s25 = scalar_select %p24, 0, %s23
    %s26 = sadd.s32 1, %s17
    %s27 = scalar_select %p24, %s26, %s17
    %p28 = scmp.ge.s32.totalorder %s27, 2
    %s29 = scalar_select %p28, 0, %s27
    %s30 = ssub.s32 %s17, %s29
    %s31 = ssub.s32 %s18, %s25
    %s32 = sor.u32 %s30, %s31
    %p33 = scmp.eq.s32.totalorder %s32, 0
    %s35 = sadd.s32 %s34, 1
    %s36 = scalar_select %p33, %s34, %s35
    %p39 = pneg %p33
    %p40 = scmp.eq.s32.totalorder %s10, 1
    %p41 = por %p39, %p40
    %p42 = scmp.ne.s32.totalorder %s34, %s37
    %p43 = scmp.eq.s32.totalorder %s10, 0
    %p44 = por %p42, %p43
    %p45 = scmp.ne.s32.totalorder %s34, %s37
    %p46 = scmp.eq.s32.totalorder %s15, 1
    %p47 = por %p45, %p46
    %p48 = scmp.ne.s32.totalorder %s37, %s38
    %p49 = scmp.eq.s32.totalorder %s15, 0
    %p50 = por %p48, %p49
    %p51 = scmp.ne.s32.totalorder %s37, %s38
    %p52 = scmp.eq.s32.totalorder %s16, 1
    %p53 = por %p51, %p52
    %p55 = scmp.ne.s32.totalorder %s38, %s54
    %p56 = scmp.eq.s32.totalorder %s16, 0
    %p57 = por %p55, %p56
    %s58 = ssub.s32 %s17, %s29
    %p59 = scmp.eq.s32.totalorder %s58, 0
    %s61 = sadd.s32 %s60, 1
    %s62 = scalar_select %p59, %s60, %s61
    %p65 = pneg %p59
    %p66 = scmp.eq.s32.totalorder %s10, 1
    %p67 = por %p65, %p66
    %p68 = scmp.ne.s32.totalorder %s60, %s63
    %p69 = scmp.eq.s32.totalorder %s10, 0
    %p70 = por %p68, %p69
    %p71 = scmp.ne.s32.totalorder %s60, %s63
    %p72 = scmp.eq.s32.totalorder %s15, 1
    %p73 = por %p71, %p72
    %p74 = scmp.ne.s32.totalorder %s63, %s64
    %p75 = scmp.eq.s32.totalorder %s15, 0
    %p76 = por %p74, %p75
    %p77 = scmp.ne.s32.totalorder %s63, %s64
    %p78 = scmp.eq.s32.totalorder %s16, 1
    %p79 = por %p77, %p78
    %p81 = scmp.ne.s32.totalorder %s64, %s80
    %p82 = scmp.eq.s32.totalorder %s16, 0
    %p83 = por %p81, %p82
    %s84 = ssub.s32 %s17, %s29
    %p85 = scmp.eq.s32.totalorder %s84, 0
    %s87 = sadd.s32 %s86, 1
    %s88 = scalar_select %p85, %s86, %s87
    %p91 = pneg %p85
    %p92 = scmp.eq.s32.totalorder %s10, 1
    %p93 = por %p91, %p92
    %p94 = scmp.ne.s32.totalorder %s86, %s89
    %p95 = scmp.eq.s32.totalorder %s10, 0
    %p96 = por %p94, %p95
    %p97 = scmp.ne.s32.totalorder %s86, %s89
    %p98 = scmp.eq.s32.totalorder %s15, 1
    %p99 = por %p97, %p98
    %p100 = scmp.ne.s32.totalorder %s89, %s90
    %p101 = scmp.eq.s32.totalorder %s15, 0
    %p102 = por %p100, %p101
    %p103 = scmp.ne.s32.totalorder %s89, %s90
    %p104 = scmp.eq.s32.totalorder %s16, 1
    %p105 = por %p103, %p104
    %p107 = scmp.ne.s32.totalorder %s90, %s106
    %p108 = scmp.eq.s32.totalorder %s16, 0
    %p109 = por %p107, %p108
    %s110 = ssub.s32 %s17, %s29
    %p111 = scmp.eq.s32.totalorder %s110, 0
    %s113 = sadd.s32 %s112, 1
    %s114 = scalar_select %p111, %s112, %s113
    %p117 = pneg %p111
    %p118 = scmp.eq.s32.totalorder %s10, 1
    %p119 = por %p117, %p118
    %p120 = scmp.ne.s32.totalorder %s112, %s115
    %p121 = scmp.eq.s32.totalorder %s10, 0
    %p122 = por %p120, %p121
    %p123 = scmp.ne.s32.totalorder %s112, %s115
    %p124 = scmp.eq.s32.totalorder %s15, 1
    %p125 = por %p123, %p124
    %p126 = scmp.ne.s32.totalorder %s115, %s116
    %p127 = scmp.eq.s32.totalorder %s15, 0
    %p128 = por %p126, %p127
    %p129 = scmp.ne.s32.totalorder %s115, %s116
    %p130 = scmp.eq.s32.totalorder %s16, 1
    %p131 = por %p129, %p130
    %p133 = scmp.ne.s32.totalorder %s116, %s132
    %p134 = scmp.eq.s32.totalorder %s16, 0
    %p135 = por %p133, %p134
    %s136 = ssub.s32 %s17, %s29
    %s137 = ssub.s32 %s18, %s25
    %s138 = sor.u32 %s136, %s137
    %p139 = scmp.eq.s32.totalorder %s138, 0
    %s141 = sadd.s32 %s140, 1
    %s142 = scalar_select %p139, %s140, %s141
    %p145 = pneg %p139
    %p146 = scmp.eq.s32.totalorder %s10, 1
    %p147 = por %p145, %p146
    %p148 = scmp.ne.s32.totalorder %s140, %s143
    %p149 = scmp.eq.s32.totalorder %s10, 0
    %p150 = por %p148, %p149
    %p151 = scmp.ne.s32.totalorder %s140, %s143
    %p152 = scmp.eq.s32.totalorder %s15, 1
    %p153 = por %p151, %p152
    %p154 = scmp.ne.s32.totalorder %s143, %s144
    %p155 = scmp.eq.s32.totalorder %s15, 0
    %p156 = por %p154, %p155
    %p157 = scmp.ne.s32.totalorder %s143, %s144
    %p158 = scmp.eq.s32.totalorder %s16, 1
    %p159 = por %p157, %p158
    %p161 = scmp.ne.s32.totalorder %s144, %s160
    %p162 = scmp.eq.s32.totalorder %s16, 0
    %p163 = por %p161, %p162
    %p164 = scmp.le.s32.totalorder 1, %s10
    %p165 = scmp.lt.s32.totalorder %s10, 3
    %p166 = pnand %p164, %p165
    %p167 = pneg %p166
    // Predicated region
    $region9: #{encoder_decoder_fwd.22} parent=5 // pred_check
      _
    $region10: #{encoder_decoder_fwd.22} parent=5 // pred_check_branch
      %169 = sbr.rel (%p166) target = $region12
    $region11: #{encoder_decoder_fwd.22} parent=5 // pred_region
      %s170 = ssub.s32 %s10, 1
    $region12: #{encoder_decoder_fwd.22} parent=5 // pred_fallthru
      _
    %p171 = scmp.lt.s32.totalorder %s10, 2
    // Predicated region
    $region13: #{encoder_decoder_fwd.22} parent=5 // pred_check
      %p172 = pneg %p171
    $region14: #{encoder_decoder_fwd.22} parent=5 // pred_check_branch
      %174 = sbr.rel (%p172) target = $region16
    $region15: #{encoder_decoder_fwd.22} parent=5 // pred_region
      // Predicated region
      $region17: #{encoder_decoder_fwd.22} parent=15 // pred_check
        %p175 = pneg %p44
      $region18: #{encoder_decoder_fwd.22} parent=15 // pred_check_branch
        %177 = sbr.rel (%p175) target = $region20
      $region19: #{encoder_decoder_fwd.22} parent=15 // pred_region
        %p178 = scmp.lt.s32.totalorder %s17, 1
        %s179 = scalar_select %p178, %s17, 1
        %p180 = scmp.lt.s32.totalorder %s18, 0
        %s181 = scalar_select %p180, %s18, 0
        %s182 = sadd.s32 %s181, %s179
        %s183 = smul.addr %s182, 8
        %s184 = scalar_lea.vmem %s0, %s183
      $region20: #{encoder_decoder_fwd.22} parent=15 // pred_fallthru
        _
      // Predicated region
      $region21: #{encoder_decoder_fwd.22} parent=15 // pred_check
        %p185 = pneg %p70
      $region22: #{encoder_decoder_fwd.22} parent=15 // pred_check_branch
        %187 = sbr.rel (%p185) target = $region24
      $region23: #{encoder_decoder_fwd.22} parent=15 // pred_region
        %p188 = scmp.lt.s32.totalorder %s17, 1
        %s189 = scalar_select %p188, %s17, 1
        %s190 = smul.addr %s189, 8
        %s191 = scalar_lea.vmem %s1, %s190
      $region24: #{encoder_decoder_fwd.22} parent=15 // pred_fallthru
        _
      // Predicated region
      $region25: #{encoder_decoder_fwd.22} parent=15 // pred_check
        %p192 = pneg %p96
      $region26: #{encoder_decoder_fwd.22} parent=15 // pred_check_branch
        %194 = sbr.rel (%p192) target = $region28
      $region27: #{encoder_decoder_fwd.22} parent=15 // pred_region
        %p195 = scmp.lt.s32.totalorder %s17, 1
        %s196 = scalar_select %p195, %s17, 1
        %s197 = smul.addr %s196, 8
        %s198 = scalar_lea.vmem %s2, %s197
      $region28: #{encoder_decoder_fwd.22} parent=15 // pred_fallthru
        _
      // Predicated region
      $region29: #{encoder_decoder_fwd.22} parent=15 // pred_check
        %p199 = pneg %p122
      $region30: #{encoder_decoder_fwd.22} parent=15 // pred_check_branch
        %201 = sbr.rel (%p199) target = $region32
      $region31: #{encoder_decoder_fwd.22} parent=15 // pred_region
        %p202 = scmp.lt.s32.totalorder %s17, 1
        %s203 = scalar_select %p202, %s17, 1
        %s204 = scalar_lea.vmem %s3, %s203
      $region32: #{encoder_decoder_fwd.22} parent=15 // pred_fallthru
        _
    $region16: #{encoder_decoder_fwd.22} parent=5 // pred_fallthru
      _
    %p205 = scmp.le.s32.totalorder 1, %s10
    %p206 = scmp.lt.s32.totalorder %s10, 3
    %p207 = pnand %p205, %p206
    %p208 = pneg %p207
    // Predicated region
    $region33: #{encoder_decoder_fwd.22} parent=5 // pred_check
      _
    $region34: #{encoder_decoder_fwd.22} parent=5 // pred_check_branch
      %210 = sbr.rel (%p207) target = $region36
    $region35: #{encoder_decoder_fwd.22} parent=5 // pred_region
      %s211 = ssub.s32 %s10, 1
      %p212 = scmp.lt.s32.totalorder %s19, 1
      %s213 = scalar_select %p212, %s19, 1
      %p214 = scmp.lt.s32.totalorder %s20, 0
      %s215 = scalar_select %p214, %s20, 0
      %s216 = sadd.s32 %s215, %s213
      %s217 = smul.addr %s216, 8
      %s218 = scalar_lea.vmem %s0, %s217
      %p219 = pneg %p50
      %p220 = pneg %p47
      %p221 = scmp.lt.s32.totalorder %s19, 1
      %s222 = scalar_select %p221, %s19, 1
      %s223 = smul.addr %s222, 8
      %s224 = scalar_lea.vmem %s1, %s223
      %p225 = pneg %p76
      %p226 = pneg %p73
      %p227 = scmp.lt.s32.totalorder %s19, 1
      %s228 = scalar_select %p227, %s19, 1
      %s229 = smul.addr %s228, 8
      %s230 = scalar_lea.vmem %s2, %s229
      %p231 = pneg %p102
      %p232 = pneg %p99
      %p233 = scmp.lt.s32.totalorder %s19, 1
      %s234 = scalar_select %p233, %s19, 1
      %s235 = scalar_lea.vmem %s3, %s234
      %p236 = pneg %p128
      %p237 = pneg %p125
      %p238 = pneg %p156
      %p239 = pneg %p153
      %p240 = scmp.lt.s32.totalorder %s19, 1
      %s241 = scalar_select %p240, %s19, 1
      %p242 = scmp.lt.s32.totalorder %s20, 0
      %s243 = scalar_select %p242, %s20, 0
      %s244 = sadd.s32 %s243, %s241
      %s245 = smul.addr %s244, 8
      %s246 = scalar_lea.vmem %s4, %s245
      %p247 = scmp.lt.s32.totalorder %s19, 1
      %s248 = scalar_select %p247, %s19, 1
      %p249 = scmp.lt.s32.totalorder %s20, 0
      %s250 = scalar_select %p249, %s20, 0
      %s251 = sadd.s32 %s250, %s248
      %s252 = smul.addr %s251, 8
      %s253 = scalar_lea.vmem %s0, %s252
      %p254 = scmp.lt.s32.totalorder %s19, 1
      %s255 = scalar_select %p254, %s19, 1
      %s256 = smul.addr %s255, 8
      %s257 = scalar_lea.vmem %s1, %s256
      %p258 = scmp.lt.s32.totalorder %s19, 1
      %s259 = scalar_select %p258, %s19, 1
      %s260 = smul.addr %s259, 8
      %s261 = scalar_lea.vmem %s2, %s260
      %p262 = scmp.lt.s32.totalorder %s19, 1
      %s263 = scalar_select %p262, %s19, 1
      %s264 = scalar_lea.vmem %s3, %s263
      %p265 = scmp.lt.s32.totalorder %s19, 1
      %s266 = scalar_select %p265, %s19, 1
      %p267 = scmp.lt.s32.totalorder %s20, 0
      %s268 = scalar_select %p267, %s20, 0
      %s269 = sadd.s32 %s268, %s266
      %s270 = smul.addr %s269, 8
      %s271 = scalar_lea.vmem %s4, %s270
      %v273 = vld [vmem:[%s253] sm:$0xff]
      %v274 = vld [vmem:[%s257] sm:$0xff]
      %v275 = vld [vmem:[%s261] sm:$0xff]
      %v276 = vld [vmem:[%s264] sm:$0x1]
      %v277 = vmul.f32 %v273, 0.35355338
      %v278 = vpack.c.bf16 %v277, %v277
      %v279 = vpack.c.bf16 %v274, %v274
      %v280 = vpack.c.bf16 %v275, %v275
      %v282 = vperm.slane %v276, 0
      %vm284 = vcmask 64512
      %v286 = vsel %vm284, %v278, 0
      %v289 = vsel %vm284, %v279, 0
      %291 = vmatpush.bf16.xpose.msra.mxu0 0
      %292 = vmatpush.bf16.xpose.msra.mxu0 0
      %293 = vmatpush.bf16.xpose.msra.mxu0 0
      %294 = vmatpush.bf16.xpose.msra.mxu0 0
      %295 = vmatpush.bf16.xpose.msra.mxu0 0
      %296 = vmatpush.bf16.xpose.msra.mxu0 0
      %297 = vmatpush.bf16.xpose.msra.mxu0 0
      %298 = vmatpush.bf16.xpose.msra.mxu0 %v289
      %299 = vmatmul.bf16.gmra.mxu0 %v286
      %v300 = vpop.f32.mrf.mxu0
      %v301 = vadd.f32 %v282, %v300
      %v302 = vpop.f32.mrf.mxu0
      %303 = vdwg.mxu0
      %v304 = vsel %vm284, %v301, -inf
      %305 = vmax.xlane.f32.xlu0 %v304
      %v306 = vpop.xlane.xlu0 %305
      %v307 = vsub.f32 %v301, %v306
      %v308 = vmul.f32 %v307, 1.442695
      %v309 = vpow.pop %v308
      %v310 = vsel %vm284, %v309, 0.0
      %311 = vadd.xlane.f32.xlu0 %v310
      %v312 = vpop.xlane.xlu0 %311
      %v313 = vrcp.pop %v312
      %v314 = vmul.f32 %v309, %v313
      %v315 = vpack.c.bf16 %v314, %v314
      %v317 = vsel %vm284, %v315, 0
      %vm319 = vcmask 1043456
      %v321 = vsel %vm319, %v280, 0
      %323 = vmatpush.bf16.msra.mxu0 0
      %324 = vmatpush.bf16.msra.mxu0 0
      %325 = vmatpush.bf16.msra.mxu0 0
      %326 = vmatpush.bf16.msra.mxu0 0
      %327 = vmatpush.bf16.msra.mxu0 0
      %328 = vmatpush.bf16.msra.mxu0 0
      %329 = vmatpush.bf16.msra.mxu0 0
      %330 = vmatpush.bf16.msra.mxu0 %v321
      %331 = vmatmul.bf16.gmra.mxu0 %v317
      %v332 = vpop.f32.mrf.mxu0
      %v333 = vadd.f32 0.0, %v332
      %v334 = vpop.f32.mrf.mxu0
      %335 = vdwg.mxu0
      %337 = vrot.lane.b32.xlu0 %v278, 120
      %v338 = vpop.permute.xlu0 %337
      %340 = vrot.lane.b32.xlu0 %v279, 120
      %v341 = vpop.permute.xlu0 %340
      %v343 = vsel %vm284, %v338, 0
      %v346 = vsel %vm284, %v341, 0
      %348 = vmatpush.bf16.xpose.msra.mxu0 0
      %349 = vmatpush.bf16.xpose.msra.mxu0 0
      %350 = vmatpush.bf16.xpose.msra.mxu0 0
      %351 = vmatpush.bf16.xpose.msra.mxu0 0
      %352 = vmatpush.bf16.xpose.msra.mxu0 0
      %353 = vmatpush.bf16.xpose.msra.mxu0 0
      %354 = vmatpush.bf16.xpose.msra.mxu0 0
      %355 = vmatpush.bf16.xpose.msra.mxu0 %v346
      %356 = vmatmul.bf16.gmra.mxu0 %v343
      %v357 = vpop.f32.mrf.mxu0
      %v358 = vadd.f32 %v282, %v357
      %v359 = vpop.f32.mrf.mxu0
      %360 = vdwg.mxu0
      %v361 = vsel %vm284, %v358, -inf
      %362 = vmax.xlane.f32.xlu0 %v361
      %v363 = vpop.xlane.xlu0 %362
      %v364 = vsub.f32 %v358, %v363
      %v365 = vmul.f32 %v364, 1.442695
      %v366 = vpow.pop %v365
      %v367 = vsel %vm284, %v366, 0.0
      %368 = vadd.xlane.f32.xlu0 %v367
      %v369 = vpop.xlane.xlu0 %368
      %v370 = vrcp.pop %v369
      %v371 = vmul.f32 %v366, %v370
      %v372 = vpack.c.bf16 %v371, %v371
      %374 = vrot.lane.b32.xlu0 %v280, 120
      %v375 = vpop.permute.xlu0 %374
      %v377 = vsel %vm284, %v372, 0
      %v380 = vsel %vm319, %v375, 0
      %382 = vmatpush.bf16.msra.mxu0 0
      %383 = vmatpush.bf16.msra.mxu0 0
      %384 = vmatpush.bf16.msra.mxu0 0
      %385 = vmatpush.bf16.msra.mxu0 0
      %386 = vmatpush.bf16.msra.mxu0 0
      %387 = vmatpush.bf16.msra.mxu0 0
      %388 = vmatpush.bf16.msra.mxu0 0
      %389 = vmatpush.bf16.msra.mxu0 %v380
      %390 = vmatmul.bf16.gmra.mxu0 %v377
      %v391 = vpop.f32.mrf.mxu0
      %v392 = vadd.f32 0.0, %v391
      %v393 = vpop.f32.mrf.mxu0
      %394 = vdwg.mxu0
      %395 = vrot.lane.b32.xlu0 %v278, 112
      %v396 = vpop.permute.xlu0 %395
      %397 = vrot.lane.b32.xlu0 %v279, 112
      %v398 = vpop.permute.xlu0 %397
      %v400 = vsel %vm284, %v396, 0
      %v403 = vsel %vm284, %v398, 0
      %405 = vmatpush.bf16.xpose.msra.mxu0 0
      %406 = vmatpush.bf16.xpose.msra.mxu0 0
      %407 = vmatpush.bf16.xpose.msra.mxu0 0
      %408 = vmatpush.bf16.xpose.msra.mxu0 0
      %409 = vmatpush.bf16.xpose.msra.mxu0 0
      %410 = vmatpush.bf16.xpose.msra.mxu0 0
      %411 = vmatpush.bf16.xpose.msra.mxu0 0
      %412 = vmatpush.bf16.xpose.msra.mxu0 %v403
      %413 = vmatmul.bf16.gmra.mxu0 %v400
      %v414 = vpop.f32.mrf.mxu0
      %v415 = vadd.f32 %v282, %v414
      %v416 = vpop.f32.mrf.mxu0
      %417 = vdwg.mxu0
      %v418 = vsel %vm284, %v415, -inf
      %419 = vmax.xlane.f32.xlu0 %v418
      %v420 = vpop.xlane.xlu0 %419
      %v421 = vsub.f32 %v415, %v420
      %v422 = vmul.f32 %v421, 1.442695
      %v423 = vpow.pop %v422
      %v424 = vsel %vm284, %v423, 0.0
      %425 = vadd.xlane.f32.xlu0 %v424
      %v426 = vpop.xlane.xlu0 %425
      %v427 = vrcp.pop %v426
      %v428 = vmul.f32 %v423, %v427
      %v429 = vpack.c.bf16 %v428, %v428
      %430 = vrot.lane.b32.xlu0 %v280, 112
      %v431 = vpop.permute.xlu0 %430
      %v433 = vsel %vm284, %v429, 0
      %v436 = vsel %vm319, %v431, 0
      %438 = vmatpush.bf16.msra.mxu0 0
      %439 = vmatpush.bf16.msra.mxu0 0
      %440 = vmatpush.bf16.msra.mxu0 0
      %441 = vmatpush.bf16.msra.mxu0 0
      %442 = vmatpush.bf16.msra.mxu0 0
      %443 = vmatpush.bf16.msra.mxu0 0
      %444 = vmatpush.bf16.msra.mxu0 0
      %445 = vmatpush.bf16.msra.mxu0 %v436
      %446 = vmatmul.bf16.gmra.mxu0 %v433
      %v447 = vpop.f32.mrf.mxu0
      %v448 = vadd.f32 0.0, %v447
      %v449 = vpop.f32.mrf.mxu0
      %450 = vdwg.mxu0
      %451 = vrot.lane.b32.xlu0 %v278, 104
      %v452 = vpop.permute.xlu0 %451
      %453 = vrot.lane.b32.xlu0 %v279, 104
      %v454 = vpop.permute.xlu0 %453
      %v456 = vsel %vm284, %v452, 0
      %v459 = vsel %vm284, %v454, 0
      %461 = vmatpush.bf16.xpose.msra.mxu0 0
      %462 = vmatpush.bf16.xpose.msra.mxu0 0
      %463 = vmatpush.bf16.xpose.msra.mxu0 0
      %464 = vmatpush.bf16.xpose.msra.mxu0 0
      %465 = vmatpush.bf16.xpose.msra.mxu0 0
      %466 = vmatpush.bf16.xpose.msra.mxu0 0
      %467 = vmatpush.bf16.xpose.msra.mxu0 0
      %468 = vmatpush.bf16.xpose.msra.mxu0 %v459
      %469 = vmatmul.bf16.gmra.mxu0 %v456
      %v470 = vpop.f32.mrf.mxu0
      %v471 = vadd.f32 %v282, %v470
      %v472 = vpop.f32.mrf.mxu0
      %473 = vdwg.mxu0
      %v474 = vsel %vm284, %v471, -inf
      %475 = vmax.xlane.f32.xlu0 %v474
      %v476 = vpop.xlane.xlu0 %475
      %v477 = vsub.f32 %v471, %v476
      %v478 = vmul.f32 %v477, 1.442695
      %v479 = vpow.pop %v478
      %v480 = vsel %vm284, %v479, 0.0
      %481 = vadd.xlane.f32.xlu0 %v480
      %v482 = vpop.xlane.xlu0 %481
      %v483 = vrcp.pop %v482
      %v484 = vmul.f32 %v479, %v483
      %v485 = vpack.c.bf16 %v484, %v484
      %486 = vrot.lane.b32.xlu0 %v280, 104
      %v487 = vpop.permute.xlu0 %486
      %v489 = vsel %vm284, %v485, 0
      %v492 = vsel %vm319, %v487, 0
      %494 = vmatpush.bf16.msra.mxu0 0
      %495 = vmatpush.bf16.msra.mxu0 0
      %496 = vmatpush.bf16.msra.mxu0 0
      %497 = vmatpush.bf16.msra.mxu0 0
      %498 = vmatpush.bf16.msra.mxu0 0
      %499 = vmatpush.bf16.msra.mxu0 0
      %500 = vmatpush.bf16.msra.mxu0 0
      %501 = vmatpush.bf16.msra.mxu0 %v492
      %502 = vmatmul.bf16.gmra.mxu0 %v489
      %v503 = vpop.f32.mrf.mxu0
      %v504 = vadd.f32 0.0, %v503
      %v505 = vpop.f32.mrf.mxu0
      %506 = vdwg.mxu0
      %508 = vrot.lane.b32.xlu0 %v392, 8
      %v509 = vpop.permute.xlu0 %508
      %512 = vrot.lane.b32.xlu0 %v448, 16
      %v513 = vpop.permute.xlu0 %512
      %516 = vrot.lane.b32.xlu0 %v504, 24
      %v517 = vpop.permute.xlu0 %516
      %v519 = vsel %vm284, %v333, %v509
      %vm520 = vcmask 130048
      %v521 = vsel %vm520, %v519, %v513
      %vm522 = vcmask 195584
      %v523 = vsel %vm522, %v521, %v517
      %vm524 = vcmask 261120
      %525 = vst.msk [vmem:[%s271] sm:$0xff] %vm524, %v523
      %p526 = scmp.lt.s32.totalorder %s19, 1
      %s527 = scalar_select %p526, %s19, 1
      %p528 = scmp.lt.s32.totalorder %s20, 0
      %s529 = scalar_select %p528, %s20, 0
      %s530 = sadd.s32 %s529, %s527
      %s531 = smul.addr %s530, 8
      %s532 = scalar_lea.vmem %s4, %s531
      // Predicated region
      $region37: #{encoder_decoder_fwd.22} parent=35 // pred_check
        %p533 = pneg %p153
      $region38: #{encoder_decoder_fwd.22} parent=35 // pred_check_branch
        %535 = sbr.rel (%p533) target = $region40
      $region39: #{encoder_decoder_fwd.22} parent=35 // pred_region
        _
      $region40: #{encoder_decoder_fwd.22} parent=35 // pred_fallthru
        _
    $region36: #{encoder_decoder_fwd.22} parent=5 // pred_fallthru
      _
    %p536 = scmp.le.s32.totalorder 2, %s10
    // Predicated region
    $region41: #{encoder_decoder_fwd.22} parent=5 // pred_check
      %p537 = pneg %p536
    $region42: #{encoder_decoder_fwd.22} parent=5 // pred_check_branch
      %539 = sbr.rel (%p537) target = $region44
    $region43: #{encoder_decoder_fwd.22} parent=5 // pred_region
      %s540 = ssub.s32 %s10, 2
      // Predicated region
      $region45: #{encoder_decoder_fwd.22} parent=43 // pred_check
        %p541 = pneg %p159
      $region46: #{encoder_decoder_fwd.22} parent=43 // pred_check_branch
        %543 = sbr.rel (%p541) target = $region48
      $region47: #{encoder_decoder_fwd.22} parent=43 // pred_region
        %p544 = scmp.lt.s32.totalorder %s21, 1
        %s545 = scalar_select %p544, %s21, 1
        %p546 = scmp.lt.s32.totalorder %s22, 0
        %s547 = scalar_select %p546, %s22, 0
        %s548 = sadd.s32 %s547, %s545
        %s549 = smul.addr %s548, 8
        %s550 = scalar_lea.vmem %s4, %s549
      $region48: #{encoder_decoder_fwd.22} parent=43 // pred_fallthru
        _
    $region44: #{encoder_decoder_fwd.22} parent=5 // pred_fallthru
      _
  $region6: #{encoder_decoder_fwd.22} parent=0 // loop_footer
    %s14 = sadd.s32 1, %s10
  $region7: #{encoder_decoder_fwd.22} parent=0 // loop_footer_branch
    %9 = sbr.rel target = $region3
  $region8: #{encoder_decoder_fwd.22} parent=0 // loop_exit
    _

// kernel: encoder_decoder_fwd.27
$region0: #{encoder_decoder_fwd.27}
  #allocation0 [shape = 'u32[]', space=smem, size = 0x4, offset = 0x4, fixed_abs, tag = 'smem constant byte address 0x4 - core index']
  #allocation1 [shape = 'u32[72,128]{1,0:T(1,128)}', space=vmem, size = 0x9000, scoped, tag = 'internal scratch']
  %s0 = inlined_call_operand.vmem [shape: f32[16,32], index: 0, kind: input, shape index: {}]
  %s1 = inlined_call_operand.vmem [shape: f32[1,32], index: 1, kind: input, shape index: {}]
  %s2 = inlined_call_operand.vmem [shape: f32[1,32], index: 2, kind: input, shape index: {}]
  %s3 = inlined_call_operand.vmem [shape: f32[16,32], index: 3, kind: output, shape index: {}]
  %s4 = sld [smem:[#allocation0]]
  $region22: #{encoder_decoder_fwd.27} parent=0
    _
  %s6 = ssub.s32 1, %s4
  %s7 = scalar_select 0, %s6, %s4
  // Predicated region
  $region2: #{encoder_decoder_fwd.27} parent=0 // pred_check
    _
  $region3: #{encoder_decoder_fwd.27} parent=0 // pred_check_branch
    %9 = sbr.rel (0) target = $region5
  $region4: #{encoder_decoder_fwd.27} parent=0 // pred_region
    _
  $region5: #{encoder_decoder_fwd.27} parent=0 // pred_fallthru
    _
  // Predicated region
  $region6: #{encoder_decoder_fwd.27} parent=0 // pred_check
    _
  $region7: #{encoder_decoder_fwd.27} parent=0 // pred_check_branch
    %11 = sbr.rel (0) target = $region9
  $region8: #{encoder_decoder_fwd.27} parent=0 // pred_region
    _
  $region9: #{encoder_decoder_fwd.27} parent=0 // pred_fallthru
    _
  // Predicated region
  $region10: #{encoder_decoder_fwd.27} parent=0 // pred_check
    _
  $region11: #{encoder_decoder_fwd.27} parent=0 // pred_check_branch
    %13 = sbr.rel (0) target = $region13
  $region12: #{encoder_decoder_fwd.27} parent=0 // pred_region
    _
  $region13: #{encoder_decoder_fwd.27} parent=0 // pred_fallthru
    _
  %v14 = vld [vmem:[%s0] sm:$0xff]
  %v15 = vld [vmem:[%s0 + $0x8] sm:$0xff]
  %v16 = vld [vmem:[%s1] sm:$0x1]
  %v17 = vld [vmem:[%s2] sm:$0x1]
  %vm18 = vcmask 261120
  %v19 = vsel %vm18, %v14, 0.0
  %20 = vadd.xlane.f32.xlu0 %v19
  %v21 = vpop.xlane.xlu0 %20
  %v22 = vsel %vm18, %v15, 0.0
  %23 = vadd.xlane.f32.xlu0 %v22
  %v24 = vpop.xlane.xlu0 %23
  %v25 = vrcp.pop 32.0
  %v26 = vmul.f32 32.0, %v25
  %v27 = vsub.f32 1.0, %v26
  %v28 = vmul.f32 %v25, %v27
  %v29 = vadd.f32 %v25, %v28
  %vm30 = vweird.f32 %v25
  %v31 = vsel %vm30, %v25, %v29
  %v32 = vmul.f32 %v21, %v31
  %v33 = vmul.f32 %v24, %v31
  %v34 = vsub.f32 %v14, %v32
  %v35 = vsub.f32 %v15, %v33
  %v36 = vmul.f32 %v34, %v34
  %v37 = vmul.f32 %v35, %v35
  %v38 = vsel %vm18, %v36, 0.0
  %39 = vadd.xlane.f32.xlu0 %v38
  %v40 = vpop.xlane.xlu0 %39
  %v41 = vsel %vm18, %v37, 0.0
  %42 = vadd.xlane.f32.xlu0 %v41
  %v43 = vpop.xlane.xlu0 %42
  %v44 = vmul.f32 %v40, %v31
  %v45 = vmul.f32 %v43, %v31
  %v46 = vadd.f32 %v44, 1e-05
  %v47 = vadd.f32 %v45, 1e-05
  %v48 = vrsqrt.pop %v46
  %v49 = vmul.f32 %v48, %v46
  %v50 = vmul.f32 %v49, %v48
  %v51 = vmul.f32 0.5, %v50
  %v52 = vsub.f32 1.5, %v51
  %v53 = vmul.f32 %v48, %v52
  %vm54 = vweird.f32 %v46
  %vm55 = vweird.f32 %v48
  %vm56 = vmor %vm54, %vm55
  %v57 = vsel %vm56, %v48, %v53
  %v58 = vrsqrt.pop %v47
  %v59 = vmul.f32 %v58, %v47
  %v60 = vmul.f32 %v59, %v58
  %v61 = vmul.f32 0.5, %v60
  %v62 = vsub.f32 1.5, %v61
  %v63 = vmul.f32 %v58, %v62
  %vm64 = vweird.f32 %v47
  %vm65 = vweird.f32 %v58
  %vm66 = vmor %vm64, %vm65
  %v67 = vsel %vm66, %v58, %v63
  %v68 = vmul.f32 %v34, %v57
  %v69 = vmul.f32 %v35, %v67
  %v71 = vperm.slane %v16, 0
  %v73 = vmul.f32 %v68, %v71
  %v74 = vmul.f32 %v69, %v71
  %v76 = vperm.slane %v17, 0
  %v78 = vadd.f32 %v73, %v76
  %v79 = vadd.f32 %v74, %v76
  %80 = vst.msk [vmem:[%s3] sm:$0xff] %vm18, %v78
  %81 = vst.msk [vmem:[%s3 + $0x8] sm:$0xff] %vm18, %v79
  // Predicated region
  $region14: #{encoder_decoder_fwd.27} parent=0 // pred_check
    _
  $region15: #{encoder_decoder_fwd.27} parent=0 // pred_check_branch
    %83 = sbr.rel (0) target = $region17
  $region16: #{encoder_decoder_fwd.27} parent=0 // pred_region
    _
  $region17: #{encoder_decoder_fwd.27} parent=0 // pred_fallthru
    _
  // Predicated region
  $region18: #{encoder_decoder_fwd.27} parent=0 // pred_check
    _
  $region19: #{encoder_decoder_fwd.27} parent=0 // pred_check_branch
    %85 = sbr.rel (0) target = $region21
  $region20: #{encoder_decoder_fwd.27} parent=0 // pred_region
    _
  $region21: #{encoder_decoder_fwd.27} parent=0 // pred_fallthru
    _

// kernel: encoder_decoder_fwd.23
$region0: #{encoder_decoder_fwd.23}
  #allocation0 [shape = 'u32[]', space=smem, size = 0x4, offset = 0x4, fixed_abs, tag = 'smem constant byte address 0x4 - core index']
  #allocation1 [shape = 'u32[72,128]{1,0:T(1,128)}', space=vmem, size = 0x9000, scoped, tag = 'internal scratch']
  #allocation2 [shape = 'f32[16,32]{1,0:T(8,128)}', space=vmem, size = 0x2000, scoped, tag = 'scratch operand']
  #allocation3 [shape = 'f32[16,32]{1,0:T(8,128)}', space=vmem, size = 0x2000, scoped, tag = 'scratch operand']
  %s0 = inlined_call_operand.vmem [shape: f32[16,32], index: 0, kind: input, shape index: {}]
  %s1 = inlined_call_operand.vmem [shape: f32[16,32], index: 1, kind: input, shape index: {}]
  %s2 = inlined_call_operand.vmem [shape: f32[1,32], index: 2, kind: input, shape index: {}]
  %s3 = inlined_call_operand.vmem [shape: f32[1,32], index: 3, kind: input, shape index: {}]
  %s4 = inlined_call_operand.vmem [shape: bf16[32,64], index: 4, kind: input, shape index: {}]
  %s5 = inlined_call_operand.vmem [shape: f32[1,64], index: 5, kind: input, shape index: {}]
  %s6 = inlined_call_operand.vmem [shape: bf16[64,32], index: 6, kind: input, shape index: {}]
  %s7 = inlined_call_operand.vmem [shape: f32[1,32], index: 7, kind: input, shape index: {}]
  %s8 = inlined_call_operand.vmem [shape: f32[16,32], index: 8, kind: output, shape index: {}]
  %s9 = sld [smem:[#allocation0]]
  $region50: #{encoder_decoder_fwd.23} parent=0
    _
  %s11 = ssub.s32 1, %s9
  %s12 = scalar_select 0, %s11, %s9
  // Predicated region
  $region2: #{encoder_decoder_fwd.23} parent=0 // pred_check
    _
  $region3: #{encoder_decoder_fwd.23} parent=0 // pred_check_branch
    %14 = sbr.rel (0) target = $region5
  $region4: #{encoder_decoder_fwd.23} parent=0 // pred_region
    _
  $region5: #{encoder_decoder_fwd.23} parent=0 // pred_fallthru
    _
  // Predicated region
  $region6: #{encoder_decoder_fwd.23} parent=0 // pred_check
    _
  $region7: #{encoder_decoder_fwd.23} parent=0 // pred_check_branch
    %16 = sbr.rel (0) target = $region9
  $region8: #{encoder_decoder_fwd.23} parent=0 // pred_region
    _
  $region9: #{encoder_decoder_fwd.23} parent=0 // pred_fallthru
    _
  // Predicated region
  $region10: #{encoder_decoder_fwd.23} parent=0 // pred_check
    _
  $region11: #{encoder_decoder_fwd.23} parent=0 // pred_check_branch
    %18 = sbr.rel (0) target = $region13
  $region12: #{encoder_decoder_fwd.23} parent=0 // pred_region
    _
  $region13: #{encoder_decoder_fwd.23} parent=0 // pred_fallthru
    _
  // Predicated region
  $region14: #{encoder_decoder_fwd.23} parent=0 // pred_check
    _
  $region15: #{encoder_decoder_fwd.23} parent=0 // pred_check_branch
    %20 = sbr.rel (0) target = $region17
  $region16: #{encoder_decoder_fwd.23} parent=0 // pred_region
    _
  $region17: #{encoder_decoder_fwd.23} parent=0 // pred_fallthru
    _
  // Predicated region
  $region18: #{encoder_decoder_fwd.23} parent=0 // pred_check
    _
  $region19: #{encoder_decoder_fwd.23} parent=0 // pred_check_branch
    %22 = sbr.rel (0) target = $region21
  $region20: #{encoder_decoder_fwd.23} parent=0 // pred_region
    _
  $region21: #{encoder_decoder_fwd.23} parent=0 // pred_fallthru
    _
  // Predicated region
  $region22: #{encoder_decoder_fwd.23} parent=0 // pred_check
    _
  $region23: #{encoder_decoder_fwd.23} parent=0 // pred_check_branch
    %24 = sbr.rel (0) target = $region25
  $region24: #{encoder_decoder_fwd.23} parent=0 // pred_region
    _
  $region25: #{encoder_decoder_fwd.23} parent=0 // pred_fallthru
    _
  // Predicated region
  $region26: #{encoder_decoder_fwd.23} parent=0 // pred_check
    _
  $region27: #{encoder_decoder_fwd.23} parent=0 // pred_check_branch
    %26 = sbr.rel (0) target = $region29
  $region28: #{encoder_decoder_fwd.23} parent=0 // pred_region
    _
  $region29: #{encoder_decoder_fwd.23} parent=0 // pred_fallthru
    _
  // Predicated region
  $region30: #{encoder_decoder_fwd.23} parent=0 // pred_check
    _
  $region31: #{encoder_decoder_fwd.23} parent=0 // pred_check_branch
    %28 = sbr.rel (0) target = $region33
  $region32: #{encoder_decoder_fwd.23} parent=0 // pred_region
    _
  $region33: #{encoder_decoder_fwd.23} parent=0 // pred_fallthru
    _
  %p30 = scmp.eq.s32.totalorder 0, 0
  // Predicated region
  $region34: #{encoder_decoder_fwd.23} parent=0 // pred_check
    %p31 = pneg %p30
  $region35: #{encoder_decoder_fwd.23} parent=0 // pred_check_branch
    %33 = sbr.rel (%p31) target = $region37
  $region36: #{encoder_decoder_fwd.23} parent=0 // pred_region
    %v34 = vld [vmem:[%s0] sm:$0xff]
    %v35 = vld [vmem:[%s0 + $0x8] sm:$0xff]
    %v36 = vld [vmem:[%s1] sm:$0xff]
    %v37 = vld [vmem:[%s1 + $0x8] sm:$0xff]
    %v38 = vadd.f32 %v34, %v36
    %v39 = vadd.f32 %v35, %v37
    %v40 = vld [vmem:[%s2] sm:$0x1]
    %v41 = vld [vmem:[%s3] sm:$0x1]
    %vm42 = vcmask 261120
    %v43 = vsel %vm42, %v38, 0.0
    %44 = vadd.xlane.f32.xlu0 %v43
    %v45 = vpop.xlane.xlu0 %44
    %v46 = vsel %vm42, %v39, 0.0
    %47 = vadd.xlane.f32.xlu0 %v46
    %v48 = vpop.xlane.xlu0 %47
    %v49 = vrcp.pop 32.0
    %v50 = vmul.f32 32.0, %v49
    %v51 = vsub.f32 1.0, %v50
    %v52 = vmul.f32 %v49, %v51
    %v53 = vadd.f32 %v49, %v52
    %vm54 = vweird.f32 %v49
    %v55 = vsel %vm54, %v49, %v53
    %v56 = vmul.f32 %v45, %v55
    %v57 = vmul.f32 %v48, %v55
    %v58 = vsub.f32 %v38, %v56
    %v59 = vsub.f32 %v39, %v57
    %v60 = vmul.f32 %v58, %v58
    %v61 = vmul.f32 %v59, %v59
    %v62 = vsel %vm42, %v60, 0.0
    %63 = vadd.xlane.f32.xlu0 %v62
    %v64 = vpop.xlane.xlu0 %63
    %v65 = vsel %vm42, %v61, 0.0
    %66 = vadd.xlane.f32.xlu0 %v65
    %v67 = vpop.xlane.xlu0 %66
    %v68 = vmul.f32 %v64, %v55
    %v69 = vmul.f32 %v67, %v55
    %v70 = vadd.f32 %v68, 1e-05
    %v71 = vadd.f32 %v69, 1e-05
    %v72 = vrsqrt.pop %v70
    %v73 = vmul.f32 %v72, %v70
    %v74 = vmul.f32 %v73, %v72
    %v75 = vmul.f32 0.5, %v74
    %v76 = vsub.f32 1.5, %v75
    %v77 = vmul.f32 %v72, %v76
    %vm78 = vweird.f32 %v70
    %vm79 = vweird.f32 %v72
    %vm80 = vmor %vm78, %vm79
    %v81 = vsel %vm80, %v72, %v77
    %v82 = vrsqrt.pop %v71
    %v83 = vmul.f32 %v82, %v71
    %v84 = vmul.f32 %v83, %v82
    %v85 = vmul.f32 0.5, %v84
    %v86 = vsub.f32 1.5, %v85
    %v87 = vmul.f32 %v82, %v86
    %vm88 = vweird.f32 %v71
    %vm89 = vweird.f32 %v82
    %vm90 = vmor %vm88, %vm89
    %v91 = vsel %vm90, %v82, %v87
    %v92 = vmul.f32 %v58, %v81
    %v93 = vmul.f32 %v59, %v91
    %v95 = vperm.slane %v40, 0
    %v97 = vmul.f32 %v92, %v95
    %v98 = vmul.f32 %v93, %v95
    %v100 = vperm.slane %v41, 0
    %v102 = vadd.f32 %v97, %v100
    %v103 = vadd.f32 %v98, %v100
    %104 = vst.msk [vmem:[#allocation2] sm:$0xff] %vm42, %v102
    %105 = vst.msk [vmem:[#allocation2 + $0x8] sm:$0xff] %vm42, %v103
    %106 = vst.msk [vmem:[#allocation3] sm:$0xff] %vm42, 0.0
    %107 = vst.msk [vmem:[#allocation3 + $0x8] sm:$0xff] %vm42, 0.0
  $region37: #{encoder_decoder_fwd.23} parent=0 // pred_fallthru
    _
  %v108 = vld [vmem:[#allocation2] sm:$0xff]
  %v109 = vld [vmem:[#allocation2 + $0x8] sm:$0xff]
  %v110 = vpack.c.bf16 %v109, %v108
  %v111 = vld [vmem:[%s4] sm:$0xf]
  %v112 = vld [vmem:[%s4 + $0x4] sm:$0xf]
  %v113 = vld [vmem:[%s4 + $0x8] sm:$0xf]
  %v114 = vld [vmem:[%s4 + $0xc] sm:$0xf]
  %v115 = vld [vmem:[%s5] sm:$0x1]
  %v117 = vperm.slane %v115, 0
  %v123 = vunpack.c.l.b16 %v111
  %v124 = vunpack.c.l.b16 %v112
  %v125 = vunpack.c.l.b16 %v113
  %v126 = vunpack.c.l.b16 %v114
  %v127 = vpack.c.b16 %v124, %v123
  %v128 = vpack.c.b16 %v126, %v125
  %vm131 = vcmask 261120
  %v133 = vsel %vm131, %v110, 0
  %135 = vmatpush.bf16.msra.mxu0 0
  %136 = vmatpush.bf16.msra.mxu0 0
  %137 = vmatpush.bf16.msra.mxu0 0
  %138 = vmatpush.bf16.msra.mxu0 0
  %139 = vmatpush.bf16.msra.mxu0 0
  %140 = vmatpush.bf16.msra.mxu0 0
  %141 = vmatpush.bf16.msra.mxu0 %v128
  %142 = vmatpush.bf16.msra.mxu0 %v127
  %143 = vmatmul.bf16.gmra.mxu0 %v133
  %v144 = vpop.f32.mrf.mxu0
  %v145 = vadd.f32 %v117, %v144
  %v146 = vpop.f32.mrf.mxu0
  %v147 = vadd.f32 %v117, %v146
  %148 = vdwg.mxu0
  %v149 = vld [vmem:[#allocation3] sm:$0xff]
  %v150 = vld [vmem:[#allocation3 + $0x8] sm:$0xff]
  %v151 = vpack.c.bf16 %v147, %v145
  %v152 = vld [vmem:[%s6] sm:$0xf]
  %v153 = vld [vmem:[%s6 + $0x4] sm:$0xf]
  %v154 = vld [vmem:[%s6 + $0x8] sm:$0xf]
  %v155 = vld [vmem:[%s6 + $0xc] sm:$0xf]
  %v156 = vld [vmem:[%s6 + $0x10] sm:$0xf]
  %v157 = vld [vmem:[%s6 + $0x14] sm:$0xf]
  %v158 = vld [vmem:[%s6 + $0x18] sm:$0xf]
  %v159 = vld [vmem:[%s6 + $0x1c] sm:$0xf]
  %v168 = vunpack.c.l.b16 %v152
  %v169 = vunpack.c.l.b16 %v153
  %v170 = vunpack.c.l.b16 %v154
  %v171 = vunpack.c.l.b16 %v155
  %v172 = vunpack.c.l.b16 %v156
  %v173 = vunpack.c.l.b16 %v157
  %v174 = vunpack.c.l.b16 %v158
  %v175 = vunpack.c.l.b16 %v159
  %v176 = vpack.c.b16 %v169, %v168
  %v177 = vpack.c.b16 %v171, %v170
  %v178 = vpack.c.b16 %v173, %v172
  %v179 = vpack.c.b16 %v175, %v174
  %vm184 = vcmask 523264
  %v186 = vsel %vm184, %v151, 0
  %188 = vmatpush.bf16.msra.mxu0 0
  %189 = vmatpush.bf16.msra.mxu0 0
  %190 = vmatpush.bf16.msra.mxu0 0
  %191 = vmatpush.bf16.msra.mxu0 0
  %192 = vmatpush.bf16.msra.mxu0 %v179
  %193 = vmatpush.bf16.msra.mxu0 %v178
  %194 = vmatpush.bf16.msra.mxu0 %v177
  %195 = vmatpush.bf16.msra.mxu0 %v176
  %196 = vmatmul.bf16.gmra.mxu0 %v186
  %v197 = vpop.f32.mrf.mxu0
  %v198 = vadd.f32 0.0, %v197
  %v199 = vpop.f32.mrf.mxu0
  %v200 = vadd.f32 0.0, %v199
  %201 = vdwg.mxu0
  %v202 = vadd.f32 %v149, %v198
  %v203 = vadd.f32 %v150, %v200
  %204 = vst.msk [vmem:[#allocation3] sm:$0xff] %vm131, %v202
  %205 = vst.msk [vmem:[#allocation3 + $0x8] sm:$0xff] %vm131, %v203
  // Predicated region
  $region38: #{encoder_decoder_fwd.23} parent=0 // pred_check
    %p206 = pneg %p30
  $region39: #{encoder_decoder_fwd.23} parent=0 // pred_check_branch
    %208 = sbr.rel (%p206) target = $region41
  $region40: #{encoder_decoder_fwd.23} parent=0 // pred_region
    %v209 = vld [vmem:[#allocation3] sm:$0xff]
    %v210 = vld [vmem:[#allocation3 + $0x8] sm:$0xff]
    %v211 = vld [vmem:[%s7] sm:$0x1]
    %v213 = vperm.slane %v211, 0
    %v215 = vadd.f32 %v209, %v213
    %v216 = vadd.f32 %v210, %v213
    %v217 = vmul.f32 %v215, 0.5
    %v218 = vmul.f32 %v216, 0.5
    %v219 = vmul.f32 %v215, 0.70710677
    %v220 = vmul.f32 %v216, 0.70710677
    %vm221 = vcmp.ge.f32.partialorder %v219, 0.0
    %vm222 = vcmp.ge.f32.partialorder %v220, 0.0
    %v223 = vsel %vm221, 1.0, -1.0
    %v224 = vsel %vm222, 1.0, -1.0
    %v225 = vand.u32 2147483647, %v219
    %v226 = vand.u32 2147483647, %v220
    %v227 = vmul.f32 %v225, 0.3275911
    %v228 = vmul.f32 %v226, 0.3275911
    %v229 = vadd.f32 %v227, 1.0
    %v230 = vadd.f32 %v228, 1.0
    %v231 = vrcp.pop %v229
    %v232 = vmul.f32 %v229, %v231
    %v233 = vsub.f32 1.0, %v232
    %v234 = vmul.f32 %v231, %v233
    %v235 = vadd.f32 %v231, %v234
    %vm236 = vweird.f32 %v229
    %vm237 = vweird.f32 %v231
    %vm238 = vmor %vm236, %vm237
    %v239 = vsel %vm238, %v231, %v235
    %v240 = vand.u32 2147483647, %v229
    %vm241 = vcmp.eq.f32.partialorder %v240, 8.507059e+37
    %v242 = vand.u32 %v229, 2147483648
    %v243 = vor.u32 1.1754944e-38, %v242
    %v244 = vsel %vm241, %v243, %v239
    %v245 = vmul.f32 1.0, %v244
    %v246 = vrcp.pop %v230
    %v247 = vmul.f32 %v230, %v246
    %v248 = vsub.f32 1.0, %v247
    %v249 = vmul.f32 %v246, %v248
    %v250 = vadd.f32 %v246, %v249
    %vm251 = vweird.f32 %v230
    %vm252 = vweird.f32 %v246
    %vm253 = vmor %vm251, %vm252
    %v254 = vsel %vm253, %v246, %v250
    %v255 = vand.u32 2147483647, %v230
    %vm256 = vcmp.eq.f32.partialorder %v255, 8.507059e+37
    %v257 = vand.u32 %v230, 2147483648
    %v258 = vor.u32 1.1754944e-38, %v257
    %v259 = vsel %vm256, %v258, %v254
    %v260 = vmul.f32 1.0, %v259
    %v261 = vmul.f32 %v245, 1.0614054
    %v262 = vmul.f32 %v260, 1.0614054
    %v263 = vadd.f32 %v261, -1.4531521
    %v264 = vadd.f32 %v262, -1.4531521
    %v265 = vmul.f32 %v263, %v245
    %v266 = vmul.f32 %v264, %v260
    %v267 = vadd.f32 %v265, 1.4214138
    %v268 = vadd.f32 %v266, 1.4214138
    %v269 = vmul.f32 %v267, %v245
    %v270 = vmul.f32 %v268, %v260
    %v271 = vadd.f32 %v269, -0.28449672
    %v272 = vadd.f32 %v270, -0.28449672
    %v273 = vmul.f32 %v271, %v245
    %v274 = vmul.f32 %v272, %v260
    %v275 = vadd.f32 %v273, 0.2548296
    %v276 = vadd.f32 %v274, 0.2548296
    %v277 = vmul.f32 %v275, %v245
    %v278 = vmul.f32 %v276, %v260
    %v279 = vsub.f32 0.0, %v225
    %v280 = vsub.f32 0.0, %v226
    %v281 = vmul.f32 %v279, %v225
    %v282 = vmul.f32 %v280, %v226
    %v283 = vmul.f32 %v281, 1.442695
    %v284 = vpow.pop %v283
    %v285 = vmul.f32 %v282, 1.442695
    %v286 = vpow.pop %v285
    %v287 = vmul.f32 %v277, %v284
    %v288 = vmul.f32 %v278, %v286
    %v289 = vsub.f32 1.0, %v287
    %v290 = vsub.f32 1.0, %v288
    %v291 = vmul.f32 %v223, %v289
    %v292 = vmul.f32 %v224, %v290
    %v293 = vadd.f32 %v291, 1.0
    %v294 = vadd.f32 %v292, 1.0
    %v295 = vmul.f32 %v217, %v293
    %v296 = vmul.f32 %v218, %v294
    %v297 = vld [vmem:[#allocation2] sm:$0xff]
    %v298 = vld [vmem:[#allocation2 + $0x8] sm:$0xff]
    %v299 = vadd.f32 %v295, %v297
    %v300 = vadd.f32 %v296, %v298
    %301 = vst.msk [vmem:[%s8] sm:$0xff] %vm131, %v299
    %302 = vst.msk [vmem:[%s8 + $0x8] sm:$0xff] %vm131, %v300
  $region41: #{encoder_decoder_fwd.23} parent=0 // pred_fallthru
    _
  // Predicated region
  $region42: #{encoder_decoder_fwd.23} parent=0 // pred_check
    _
  $region43: #{encoder_decoder_fwd.23} parent=0 // pred_check_branch
    %304 = sbr.rel (0) target = $region45
  $region44: #{encoder_decoder_fwd.23} parent=0 // pred_region
    _
  $region45: #{encoder_decoder_fwd.23} parent=0 // pred_fallthru
    _
  // Predicated region
  $region46: #{encoder_decoder_fwd.23} parent=0 // pred_check
    _
  $region47: #{encoder_decoder_fwd.23} parent=0 // pred_check_branch
    %306 = sbr.rel (0) target = $region49
  $region48: #{encoder_decoder_fwd.23} parent=0 // pred_region
    _
  $region49: #{encoder_decoder_fwd.23} parent=0 // pred_fallthru
    _

// kernel: encoder_decoder_fwd.31
$region0: #{encoder_decoder_fwd.31}
  #allocation0 [shape = 'u32[]', space=smem, size = 0x4, offset = 0x4, fixed_abs, tag = 'smem constant byte address 0x4 - core index']
  #allocation1 [shape = 'u32[72,128]{1,0:T(1,128)}', space=vmem, size = 0x9000, scoped, tag = 'internal scratch']
  %s0 = inlined_call_operand.vmem [shape: f32[16,32], index: 0, kind: input, shape index: {}]
  %s1 = inlined_call_operand.vmem [shape: bf16[32,64], index: 1, kind: input, shape index: {}]
  %s2 = inlined_call_operand.vmem [shape: f32[1,64], index: 2, kind: input, shape index: {}]
  %s3 = inlined_call_operand.vmem [shape: f32[16,64], index: 3, kind: output, shape index: {}]
  %s4 = sld [smem:[#allocation0]]
  $region22: #{encoder_decoder_fwd.31} parent=0
    _
  %s6 = ssub.s32 1, %s4
  %s7 = scalar_select 0, %s6, %s4
  // Predicated region
  $region2: #{encoder_decoder_fwd.31} parent=0 // pred_check
    _
  $region3: #{encoder_decoder_fwd.31} parent=0 // pred_check_branch
    %9 = sbr.rel (0) target = $region5
  $region4: #{encoder_decoder_fwd.31} parent=0 // pred_region
    _
  $region5: #{encoder_decoder_fwd.31} parent=0 // pred_fallthru
    _
  // Predicated region
  $region6: #{encoder_decoder_fwd.31} parent=0 // pred_check
    _
  $region7: #{encoder_decoder_fwd.31} parent=0 // pred_check_branch
    %11 = sbr.rel (0) target = $region9
  $region8: #{encoder_decoder_fwd.31} parent=0 // pred_region
    _
  $region9: #{encoder_decoder_fwd.31} parent=0 // pred_fallthru
    _
  // Predicated region
  $region10: #{encoder_decoder_fwd.31} parent=0 // pred_check
    _
  $region11: #{encoder_decoder_fwd.31} parent=0 // pred_check_branch
    %13 = sbr.rel (0) target = $region13
  $region12: #{encoder_decoder_fwd.31} parent=0 // pred_region
    _
  $region13: #{encoder_decoder_fwd.31} parent=0 // pred_fallthru
    _
  %v15 = vld [vmem:[%s0] sm:$0xff]
  %v16 = vld [vmem:[%s0 + $0x8] sm:$0xff]
  %v17 = vpack.c.bf16 %v16, %v15
  %v18 = vld [vmem:[%s1] sm:$0xf]
  %v19 = vld [vmem:[%s1 + $0x4] sm:$0xf]
  %v20 = vld [vmem:[%s1 + $0x8] sm:$0xf]
  %v21 = vld [vmem:[%s1 + $0xc] sm:$0xf]
  %v22 = vld [vmem:[%s2] sm:$0x1]
  %v24 = vperm.slane %v22, 0
  %v30 = vunpack.c.l.b16 %v18
  %v31 = vunpack.c.l.b16 %v19
  %v32 = vunpack.c.l.b16 %v20
  %v33 = vunpack.c.l.b16 %v21
  %v34 = vpack.c.b16 %v31, %v30
  %v35 = vpack.c.b16 %v33, %v32
  %vm38 = vcmask 261120
  %v40 = vsel %vm38, %v17, 0
  %42 = vmatpush.bf16.msra.mxu0 0
  %43 = vmatpush.bf16.msra.mxu0 0
  %44 = vmatpush.bf16.msra.mxu0 0
  %45 = vmatpush.bf16.msra.mxu0 0
  %46 = vmatpush.bf16.msra.mxu0 0
  %47 = vmatpush.bf16.msra.mxu0 0
  %48 = vmatpush.bf16.msra.mxu0 %v35
  %49 = vmatpush.bf16.msra.mxu0 %v34
  %50 = vmatmul.bf16.gmra.mxu0 %v40
  %v51 = vpop.f32.mrf.mxu0
  %v52 = vadd.f32 %v24, %v51
  %v53 = vpop.f32.mrf.mxu0
  %v54 = vadd.f32 %v24, %v53
  %55 = vdwg.mxu0
  %vm56 = vcmask 523264
  %57 = vst.msk [vmem:[%s3] sm:$0xff] %vm56, %v52
  %58 = vst.msk [vmem:[%s3 + $0x8] sm:$0xff] %vm56, %v54
  // Predicated region
  $region14: #{encoder_decoder_fwd.31} parent=0 // pred_check
    _
  $region15: #{encoder_decoder_fwd.31} parent=0 // pred_check_branch
    %60 = sbr.rel (0) target = $region17
  $region16: #{encoder_decoder_fwd.31} parent=0 // pred_region
    _
  $region17: #{encoder_decoder_fwd.31} parent=0 // pred_fallthru
    _
  // Predicated region
  $region18: #{encoder_decoder_fwd.31} parent=0 // pred_check
    _
  $region19: #{encoder_decoder_fwd.31} parent=0 // pred_check_branch
    %62 = sbr.rel (0) target = $region21
  $region20: #{encoder_decoder_fwd.31} parent=0 // pred_region
    _
  $region21: #{encoder_decoder_fwd.31} parent=0 // pred_fallthru
    _

// kernel: encoder_decoder_fwd.30
$region0: #{encoder_decoder_fwd.30}
  #allocation0 [shape = 'u32[]', space=smem, size = 0x4, offset = 0x4, fixed_abs, tag = 'smem constant byte address 0x4 - core index']
  #allocation1 [shape = 'u32[72,128]{1,0:T(1,128)}', space=vmem, size = 0x9000, scoped, tag = 'internal scratch']
  %s0 = inlined_call_operand.vmem [shape: f32[16,32], index: 0, kind: input, shape index: {}]
  %s1 = inlined_call_operand.vmem [shape: f32[16,32], index: 1, kind: input, shape index: {}]
  %s2 = inlined_call_operand.vmem [shape: f32[1,32], index: 2, kind: input, shape index: {}]
  %s3 = inlined_call_operand.vmem [shape: f32[1,32], index: 3, kind: input, shape index: {}]
  %s4 = inlined_call_operand.vmem [shape: bf16[32,32], index: 4, kind: input, shape index: {}]
  %s5 = inlined_call_operand.vmem [shape: f32[1,32], index: 5, kind: input, shape index: {}]
  %s6 = inlined_call_operand.vmem [shape: f32[16,32], index: 6, kind: output, shape index: {0}]
  %s7 = inlined_call_operand.vmem [shape: f32[16,32], index: 7, kind: output, shape index: {1}]
  %8 = xla_tuple %s6, %s7
  %s9 = sld [smem:[#allocation0]]
  $region42: #{encoder_decoder_fwd.30} parent=0
    _
  %s11 = ssub.s32 1, %s9
  %s12 = scalar_select 0, %s11, %s9
  // Predicated region
  $region2: #{encoder_decoder_fwd.30} parent=0 // pred_check
    _
  $region3: #{encoder_decoder_fwd.30} parent=0 // pred_check_branch
    %14 = sbr.rel (0) target = $region5
  $region4: #{encoder_decoder_fwd.30} parent=0 // pred_region
    _
  $region5: #{encoder_decoder_fwd.30} parent=0 // pred_fallthru
    _
  // Predicated region
  $region6: #{encoder_decoder_fwd.30} parent=0 // pred_check
    _
  $region7: #{encoder_decoder_fwd.30} parent=0 // pred_check_branch
    %16 = sbr.rel (0) target = $region9
  $region8: #{encoder_decoder_fwd.30} parent=0 // pred_region
    _
  $region9: #{encoder_decoder_fwd.30} parent=0 // pred_fallthru
    _
  // Predicated region
  $region10: #{encoder_decoder_fwd.30} parent=0 // pred_check
    _
  $region11: #{encoder_decoder_fwd.30} parent=0 // pred_check_branch
    %18 = sbr.rel (0) target = $region13
  $region12: #{encoder_decoder_fwd.30} parent=0 // pred_region
    _
  $region13: #{encoder_decoder_fwd.30} parent=0 // pred_fallthru
    _
  // Predicated region
  $region14: #{encoder_decoder_fwd.30} parent=0 // pred_check
    _
  $region15: #{encoder_decoder_fwd.30} parent=0 // pred_check_branch
    %20 = sbr.rel (0) target = $region17
  $region16: #{encoder_decoder_fwd.30} parent=0 // pred_region
    _
  $region17: #{encoder_decoder_fwd.30} parent=0 // pred_fallthru
    _
  // Predicated region
  $region18: #{encoder_decoder_fwd.30} parent=0 // pred_check
    _
  $region19: #{encoder_decoder_fwd.30} parent=0 // pred_check_branch
    %22 = sbr.rel (0) target = $region21
  $region20: #{encoder_decoder_fwd.30} parent=0 // pred_region
    _
  $region21: #{encoder_decoder_fwd.30} parent=0 // pred_fallthru
    _
  // Predicated region
  $region22: #{encoder_decoder_fwd.30} parent=0 // pred_check
    _
  $region23: #{encoder_decoder_fwd.30} parent=0 // pred_check_branch
    %24 = sbr.rel (0) target = $region25
  $region24: #{encoder_decoder_fwd.30} parent=0 // pred_region
    _
  $region25: #{encoder_decoder_fwd.30} parent=0 // pred_fallthru
    _
  %v26 = vld [vmem:[%s0] sm:$0xff]
  %v27 = vld [vmem:[%s0 + $0x8] sm:$0xff]
  %v28 = vld [vmem:[%s1] sm:$0xff]
  %v29 = vld [vmem:[%s1 + $0x8] sm:$0xff]
  %v30 = vadd.f32 %v26, %v28
  %v31 = vadd.f32 %v27, %v29
  %v32 = vld [vmem:[%s2] sm:$0x1]
  %v33 = vld [vmem:[%s3] sm:$0x1]
  %vm34 = vcmask 261120
  %v35 = vsel %vm34, %v30, 0.0
  %36 = vadd.xlane.f32.xlu0 %v35
  %v37 = vpop.xlane.xlu0 %36
  %v38 = vsel %vm34, %v31, 0.0
  %39 = vadd.xlane.f32.xlu0 %v38
  %v40 = vpop.xlane.xlu0 %39
  %v41 = vrcp.pop 32.0
  %v42 = vmul.f32 32.0, %v41
  %v43 = vsub.f32 1.0, %v42
  %v44 = vmul.f32 %v41, %v43
  %v45 = vadd.f32 %v41, %v44
  %vm46 = vweird.f32 %v41
  %v47 = vsel %vm46, %v41, %v45
  %v48 = vmul.f32 %v37, %v47
  %v49 = vmul.f32 %v40, %v47
  %v50 = vsub.f32 %v30, %v48
  %v51 = vsub.f32 %v31, %v49
  %v52 = vmul.f32 %v50, %v50
  %v53 = vmul.f32 %v51, %v51
  %v54 = vsel %vm34, %v52, 0.0
  %55 = vadd.xlane.f32.xlu0 %v54
  %v56 = vpop.xlane.xlu0 %55
  %v57 = vsel %vm34, %v53, 0.0
  %58 = vadd.xlane.f32.xlu0 %v57
  %v59 = vpop.xlane.xlu0 %58
  %v60 = vmul.f32 %v56, %v47
  %v61 = vmul.f32 %v59, %v47
  %v62 = vadd.f32 %v60, 1e-05
  %v63 = vadd.f32 %v61, 1e-05
  %v64 = vrsqrt.pop %v62
  %v65 = vmul.f32 %v64, %v62
  %v66 = vmul.f32 %v65, %v64
  %v67 = vmul.f32 0.5, %v66
  %v68 = vsub.f32 1.5, %v67
  %v69 = vmul.f32 %v64, %v68
  %vm70 = vweird.f32 %v62
  %vm71 = vweird.f32 %v64
  %vm72 = vmor %vm70, %vm71
  %v73 = vsel %vm72, %v64, %v69
  %v74 = vrsqrt.pop %v63
  %v75 = vmul.f32 %v74, %v63
  %v76 = vmul.f32 %v75, %v74
  %v77 = vmul.f32 0.5, %v76
  %v78 = vsub.f32 1.5, %v77
  %v79 = vmul.f32 %v74, %v78
  %vm80 = vweird.f32 %v63
  %vm81 = vweird.f32 %v74
  %vm82 = vmor %vm80, %vm81
  %v83 = vsel %vm82, %v74, %v79
  %v84 = vmul.f32 %v50, %v73
  %v85 = vmul.f32 %v51, %v83
  %v87 = vperm.slane %v32, 0
  %v89 = vmul.f32 %v84, %v87
  %v90 = vmul.f32 %v85, %v87
  %v92 = vperm.slane %v33, 0
  %v94 = vadd.f32 %v89, %v92
  %v95 = vadd.f32 %v90, %v92
  %96 = vst.msk [vmem:[%s6] sm:$0xff] %vm34, %v94
  %97 = vst.msk [vmem:[%s6 + $0x8] sm:$0xff] %vm34, %v95
  %v98 = vpack.c.bf16 %v95, %v94
  %v99 = vld [vmem:[%s4] sm:$0xf]
  %v100 = vld [vmem:[%s4 + $0x4] sm:$0xf]
  %v101 = vld [vmem:[%s4 + $0x8] sm:$0xf]
  %v102 = vld [vmem:[%s4 + $0xc] sm:$0xf]
  %v103 = vld [vmem:[%s5] sm:$0x1]
  %v105 = vperm.slane %v103, 0
  %v111 = vunpack.c.l.b16 %v99
  %v112 = vunpack.c.l.b16 %v100
  %v113 = vunpack.c.l.b16 %v101
  %v114 = vunpack.c.l.b16 %v102
  %v115 = vpack.c.b16 %v112, %v111
  %v116 = vpack.c.b16 %v114, %v113
  %v120 = vsel %vm34, %v98, 0
  %122 = vmatpush.bf16.msra.mxu0 0
  %123 = vmatpush.bf16.msra.mxu0 0
  %124 = vmatpush.bf16.msra.mxu0 0
  %125 = vmatpush.bf16.msra.mxu0 0
  %126 = vmatpush.bf16.msra.mxu0 0
  %127 = vmatpush.bf16.msra.mxu0 0
  %128 = vmatpush.bf16.msra.mxu0 %v116
  %129 = vmatpush.bf16.msra.mxu0 %v115
  %130 = vmatmul.bf16.gmra.mxu0 %v120
  %v131 = vpop.f32.mrf.mxu0
  %v132 = vadd.f32 %v105, %v131
  %v133 = vpop.f32.mrf.mxu0
  %v134 = vadd.f32 %v105, %v133
  %135 = vdwg.mxu0
  %136 = vst.msk [vmem:[%s7] sm:$0xff] %vm34, %v132
  %137 = vst.msk [vmem:[%s7 + $0x8] sm:$0xff] %vm34, %v134
  // Predicated region
  $region26: #{encoder_decoder_fwd.30} parent=0 // pred_check
    _
  $region27: #{encoder_decoder_fwd.30} parent=0 // pred_check_branch
    %139 = sbr.rel (0) target = $region29
  $region28: #{encoder_decoder_fwd.30} parent=0 // pred_region
    _
  $region29: #{encoder_decoder_fwd.30} parent=0 // pred_fallthru
    _
  // Predicated region
  $region30: #{encoder_decoder_fwd.30} parent=0 // pred_check
    _
  $region31: #{encoder_decoder_fwd.30} parent=0 // pred_check_branch
    %141 = sbr.rel (0) target = $region33
  $region32: #{encoder_decoder_fwd.30} parent=0 // pred_region
    _
  $region33: #{encoder_decoder_fwd.30} parent=0 // pred_fallthru
    _
  // Predicated region
  $region34: #{encoder_decoder_fwd.30} parent=0 // pred_check
    _
  $region35: #{encoder_decoder_fwd.30} parent=0 // pred_check_branch
    %143 = sbr.rel (0) target = $region37
  $region36: #{encoder_decoder_fwd.30} parent=0 // pred_region
    _
  $region37: #{encoder_decoder_fwd.30} parent=0 // pred_fallthru
    _
  // Predicated region
  $region38: #{encoder_decoder_fwd.30} parent=0 // pred_check
    _
  $region39: #{encoder_decoder_fwd.30} parent=0 // pred_check_branch
    %145 = sbr.rel (0) target = $region41
  $region40: #{encoder_decoder_fwd.30} parent=0 // pred_region
    _
  $region41: #{encoder_decoder_fwd.30} parent=0 // pred_fallthru
    _

// kernel: encoder_decoder_fwd.41
$region0: #{encoder_decoder_fwd.41}
  #allocation0 [shape = 'u32[]', space=smem, size = 0x4, offset = 0x4, fixed_abs, tag = 'smem constant byte address 0x4 - core index']
  #allocation1 [shape = 'u32[72,128]{1,0:T(1,128)}', space=vmem, size = 0x9000, scoped, tag = 'internal scratch']
  %s0 = inlined_call_operand.vmem [shape: f32[16,32], index: 0, kind: input, shape index: {}]
  %s1 = inlined_call_operand.vmem [shape: bf16[128,32], index: 1, kind: input, shape index: {}]
  %s2 = inlined_call_operand.vmem [shape: f32[16,128], index: 2, kind: output, shape index: {}]
  %s3 = sld [smem:[#allocation0]]
  $region18: #{encoder_decoder_fwd.41} parent=0
    _
  %s5 = ssub.s32 1, %s3
  %s6 = scalar_select 0, %s5, %s3
  // Predicated region
  $region2: #{encoder_decoder_fwd.41} parent=0 // pred_check
    _
  $region3: #{encoder_decoder_fwd.41} parent=0 // pred_check_branch
    %8 = sbr.rel (0) target = $region5
  $region4: #{encoder_decoder_fwd.41} parent=0 // pred_region
    _
  $region5: #{encoder_decoder_fwd.41} parent=0 // pred_fallthru
    _
  // Predicated region
  $region6: #{encoder_decoder_fwd.41} parent=0 // pred_check
    _
  $region7: #{encoder_decoder_fwd.41} parent=0 // pred_check_branch
    %10 = sbr.rel (0) target = $region9
  $region8: #{encoder_decoder_fwd.41} parent=0 // pred_region
    _
  $region9: #{encoder_decoder_fwd.41} parent=0 // pred_fallthru
    _
  %v11 = vld [vmem:[%s0] sm:$0xff]
  %v12 = vld [vmem:[%s0 + $0x8] sm:$0xff]
  %v13 = vpack.c.bf16 %v12, %v11
  %v14 = vld [vmem:[%s1] sm:$0xf]
  %v15 = vld [vmem:[%s1 + $0x4] sm:$0xf]
  %v16 = vld [vmem:[%s1 + $0x8] sm:$0xf]
  %v17 = vld [vmem:[%s1 + $0xc] sm:$0xf]
  %v18 = vld [vmem:[%s1 + $0x10] sm:$0xf]
  %v19 = vld [vmem:[%s1 + $0x14] sm:$0xf]
  %v20 = vld [vmem:[%s1 + $0x18] sm:$0xf]
  %v21 = vld [vmem:[%s1 + $0x1c] sm:$0xf]
  %v22 = vld [vmem:[%s1 + $0x20] sm:$0xf]
  %v23 = vld [vmem:[%s1 + $0x24] sm:$0xf]
  %v24 = vld [vmem:[%s1 + $0x28] sm:$0xf]
  %v25 = vld [vmem:[%s1 + $0x2c] sm:$0xf]
  %v26 = vld [vmem:[%s1 + $0x30] sm:$0xf]
  %v27 = vld [vmem:[%s1 + $0x34] sm:$0xf]
  %v28 = vld [vmem:[%s1 + $0x38] sm:$0xf]
  %v29 = vld [vmem:[%s1 + $0x3c] sm:$0xf]
  %v46 = vunpack.c.l.b16 %v14
  %v47 = vunpack.c.l.b16 %v15
  %v48 = vunpack.c.l.b16 %v16
  %v49 = vunpack.c.l.b16 %v17
  %v50 = vunpack.c.l.b16 %v18
  %v51 = vunpack.c.l.b16 %v19
  %v52 = vunpack.c.l.b16 %v20
  %v53 = vunpack.c.l.b16 %v21
  %v54 = vunpack.c.l.b16 %v22
  %v55 = vunpack.c.l.b16 %v23
  %v56 = vunpack.c.l.b16 %v24
  %v57 = vunpack.c.l.b16 %v25
  %v58 = vunpack.c.l.b16 %v26
  %v59 = vunpack.c.l.b16 %v27
  %v60 = vunpack.c.l.b16 %v28
  %v61 = vunpack.c.l.b16 %v29
  %v62 = vpack.c.b16 %v47, %v46
  %v63 = vpack.c.b16 %v49, %v48
  %v64 = vpack.c.b16 %v51, %v50
  %v65 = vpack.c.b16 %v53, %v52
  %v66 = vpack.c.b16 %v55, %v54
  %v67 = vpack.c.b16 %v57, %v56
  %v68 = vpack.c.b16 %v59, %v58
  %v69 = vpack.c.b16 %v61, %v60
  %vm70 = vcmask 261120
  %v72 = vsel %vm70, %v13, 0
  %v75 = vsel %vm70, %v62, 0
  %v78 = vsel %vm70, %v63, 0
  %v81 = vsel %vm70, %v64, 0
  %v84 = vsel %vm70, %v65, 0
  %v87 = vsel %vm70, %v66, 0
  %v90 = vsel %vm70, %v67, 0
  %v93 = vsel %vm70, %v68, 0
  %v96 = vsel %vm70, %v69, 0
  %98 = vmatpush.bf16.xpose.msra.mxu0 %v96
  %99 = vmatpush.bf16.xpose.msra.mxu0 %v93
  %100 = vmatpush.bf16.xpose.msra.mxu0 %v90
  %101 = vmatpush.bf16.xpose.msra.mxu0 %v87
  %102 = vmatpush.bf16.xpose.msra.mxu0 %v84
  %103 = vmatpush.bf16.xpose.msra.mxu0 %v81
  %104 = vmatpush.bf16.xpose.msra.mxu0 %v78
  %105 = vmatpush.bf16.xpose.msra.mxu0 %v75
  %106 = vmatmul.bf16.gmra.mxu0 %v72
  %v107 = vpop.f32.mrf.mxu0
  %v108 = vadd.f32 0.0, %v107
  %v109 = vpop.f32.mrf.mxu0
  %v110 = vadd.f32 0.0, %v109
  %111 = vdwg.mxu0
  %112 = vst [vmem:[%s2] sm:$0xff] %v108
  %113 = vst [vmem:[%s2 + $0x8] sm:$0xff] %v110
  // Predicated region
  $region10: #{encoder_decoder_fwd.41} parent=0 // pred_check
    _
  $region11: #{encoder_decoder_fwd.41} parent=0 // pred_check_branch
    %115 = sbr.rel (0) target = $region13
  $region12: #{encoder_decoder_fwd.41} parent=0 // pred_region
    _
  $region13: #{encoder_decoder_fwd.41} parent=0 // pred_fallthru
    _
  // Predicated region
  $region14: #{encoder_decoder_fwd.41} parent=0 // pred_check
    _
  $region15: #{encoder_decoder_fwd.41} parent=0 // pred_check_branch
    %117 = sbr.rel (0) target = $region17
  $region16: #{encoder_decoder_fwd.41} parent=0 // pred_region
    _
  $region17: #{encoder_decoder_fwd.41} parent=0 // pred_fallthru
    _

// kernel: encoder_decoder_fwd.29
$region0: #{encoder_decoder_fwd.29}
  #allocation0 [shape = 'u32[]', space=smem, size = 0x4, offset = 0x4, fixed_abs, tag = 'smem constant byte address 0x4 - core index']
  #allocation1 [shape = 'u32[72,128]{1,0:T(1,128)}', space=vmem, size = 0x9000, scoped, tag = 'internal scratch']
  %s0 = inlined_call_operand.vmem [shape: f32[2,8,32], index: 0, kind: input, shape index: {}]
  %s1 = inlined_call_operand.vmem [shape: f32[2,8,32], index: 1, kind: input, shape index: {}]
  %s2 = inlined_call_operand.vmem [shape: f32[2,8,32], index: 2, kind: input, shape index: {}]
  %s3 = inlined_call_operand.vmem [shape: f32[2,8,32], index: 3, kind: output, shape index: {}]
  %s4 = sld [smem:[#allocation0]]
  $region45: #{encoder_decoder_fwd.29} parent=0
    _
  %s6 = ssub.s32 1, %s4
  %s7 = scalar_select 0, %s6, %s4
  loop: start=0, step=1, limit=4
  $region2: #{encoder_decoder_fwd.29} parent=0 // loop_pre_header
    _
  $region3: #{encoder_decoder_fwd.29} parent=0 // loop_header
    %s9 = sphi 0, %s13
    %p10 = scmp.ge.s32.totalorder %s9, 4
    %s16 = sphi 0, %s28
    %s17 = sphi 0, %s24
    %s18 = sphi 0, %s16
    %s19 = sphi 0, %s17
    %s20 = sphi 0, %s18
    %s21 = sphi 0, %s19
    %s33 = sphi 0, %s35
    %s36 = sphi 0, %s33
    %s37 = sphi 0, %s36
    %s53 = sphi 0, %s37
    %s59 = sphi 0, %s61
    %s62 = sphi 0, %s59
    %s63 = sphi 0, %s62
    %s79 = sphi 0, %s63
    %s85 = sphi 0, %s87
    %s88 = sphi 0, %s85
    %s89 = sphi 0, %s88
    %s105 = sphi 0, %s89
    %s113 = sphi 0, %s115
    %s116 = sphi 0, %s113
    %s117 = sphi 0, %s116
    %s133 = sphi 0, %s117
  $region4: #{encoder_decoder_fwd.29} parent=0 // loop_header_branch
    %12 = sbr.rel (%p10) target = $region8
  $region5: #{encoder_decoder_fwd.29} parent=0 // loop_body
    %s14 = ssub.s32 %s9, 1
    %s15 = ssub.s32 %s9, 2
    %s22 = sadd.s32 1, %s17
    %p23 = scmp.ge.s32.totalorder %s22, 1
    %s24 = scalar_select %p23, 0, %s22
    %s25 = sadd.s32 1, %s16
    %s26 = scalar_select %p23, %s25, %s16
    %p27 = scmp.ge.s32.totalorder %s26, 2
    %s28 = scalar_select %p27, 0, %s26
    %s29 = ssub.s32 %s16, %s28
    %s30 = ssub.s32 %s17, %s24
    %s31 = sor.u32 %s29, %s30
    %p32 = scmp.eq.s32.totalorder %s31, 0
    %s34 = sadd.s32 %s33, 1
    %s35 = scalar_select %p32, %s33, %s34
    %p38 = pneg %p32
    %p39 = scmp.eq.s32.totalorder %s9, 1
    %p40 = por %p38, %p39
    %p41 = scmp.ne.s32.totalorder %s33, %s36
    %p42 = scmp.eq.s32.totalorder %s9, 0
    %p43 = por %p41, %p42
    %p44 = scmp.ne.s32.totalorder %s33, %s36
    %p45 = scmp.eq.s32.totalorder %s14, 1
    %p46 = por %p44, %p45
    %p47 = scmp.ne.s32.totalorder %s36, %s37
    %p48 = scmp.eq.s32.totalorder %s14, 0
    %p49 = por %p47, %p48
    %p50 = scmp.ne.s32.totalorder %s36, %s37
    %p51 = scmp.eq.s32.totalorder %s15, 1
    %p52 = por %p50, %p51
    %p54 = scmp.ne.s32.totalorder %s37, %s53
    %p55 = scmp.eq.s32.totalorder %s15, 0
    %p56 = por %p54, %p55
    %s57 = ssub.s32 %s16, %s28
    %p58 = scmp.eq.s32.totalorder %s57, 0
    %s60 = sadd.s32 %s59, 1
    %s61 = scalar_select %p58, %s59, %s60
    %p64 = pneg %p58
    %p65 = scmp.eq.s32.totalorder %s9, 1
    %p66 = por %p64, %p65
    %p67 = scmp.ne.s32.totalorder %s59, %s62
    %p68 = scmp.eq.s32.totalorder %s9, 0
    %p69 = por %p67, %p68
    %p70 = scmp.ne.s32.totalorder %s59, %s62
    %p71 = scmp.eq.s32.totalorder %s14, 1
    %p72 = por %p70, %p71
    %p73 = scmp.ne.s32.totalorder %s62, %s63
    %p74 = scmp.eq.s32.totalorder %s14, 0
    %p75 = por %p73, %p74
    %p76 = scmp.ne.s32.totalorder %s62, %s63
    %p77 = scmp.eq.s32.totalorder %s15, 1
    %p78 = por %p76, %p77
    %p80 = scmp.ne.s32.totalorder %s63, %s79
    %p81 = scmp.eq.s32.totalorder %s15, 0
    %p82 = por %p80, %p81
    %s83 = ssub.s32 %s16, %s28
    %p84 = scmp.eq.s32.totalorder %s83, 0
    %s86 = sadd.s32 %s85, 1
    %s87 = scalar_select %p84, %s85, %s86
    %p90 = pneg %p84
    %p91 = scmp.eq.s32.totalorder %s9, 1
    %p92 = por %p90, %p91
    %p93 = scmp.ne.s32.totalorder %s85, %s88
    %p94 = scmp.eq.s32.totalorder %s9, 0
    %p95 = por %p93, %p94
    %p96 = scmp.ne.s32.totalorder %s85, %s88
    %p97 = scmp.eq.s32.totalorder %s14, 1
    %p98 = por %p96, %p97
    %p99 = scmp.ne.s32.totalorder %s88, %s89
    %p100 = scmp.eq.s32.totalorder %s14, 0
    %p101 = por %p99, %p100
    %p102 = scmp.ne.s32.totalorder %s88, %s89
    %p103 = scmp.eq.s32.totalorder %s15, 1
    %p104 = por %p102, %p103
    %p106 = scmp.ne.s32.totalorder %s89, %s105
    %p107 = scmp.eq.s32.totalorder %s15, 0
    %p108 = por %p106, %p107
    %s109 = ssub.s32 %s16, %s28
    %s110 = ssub.s32 %s17, %s24
    %s111 = sor.u32 %s109, %s110
    %p112 = scmp.eq.s32.totalorder %s111, 0
    %s114 = sadd.s32 %s113, 1
    %s115 = scalar_select %p112, %s113, %s114
    %p118 = pneg %p112
    %p119 = scmp.eq.s32.totalorder %s9, 1
    %p120 = por %p118, %p119
    %p121 = scmp.ne.s32.totalorder %s113, %s116
    %p122 = scmp.eq.s32.totalorder %s9, 0
    %p123 = por %p121, %p122
    %p124 = scmp.ne.s32.totalorder %s113, %s116
    %p125 = scmp.eq.s32.totalorder %s14, 1
    %p126 = por %p124, %p125
    %p127 = scmp.ne.s32.totalorder %s116, %s117
    %p128 = scmp.eq.s32.totalorder %s14, 0
    %p129 = por %p127, %p128
    %p130 = scmp.ne.s32.totalorder %s116, %s117
    %p131 = scmp.eq.s32.totalorder %s15, 1
    %p132 = por %p130, %p131
    %p134 = scmp.ne.s32.totalorder %s117, %s133
    %p135 = scmp.eq.s32.totalorder %s15, 0
    %p136 = por %p134, %p135
    %p137 = scmp.le.s32.totalorder 1, %s9
    %p138 = scmp.lt.s32.totalorder %s9, 3
    %p139 = pnand %p137, %p138
    %p140 = pneg %p139
    // Predicated region
    $region9: #{encoder_decoder_fwd.29} parent=5 // pred_check
      _
    $region10: #{encoder_decoder_fwd.29} parent=5 // pred_check_branch
      %142 = sbr.rel (%p139) target = $region12
    $region11: #{encoder_decoder_fwd.29} parent=5 // pred_region
      %s143 = ssub.s32 %s9, 1
    $region12: #{encoder_decoder_fwd.29} parent=5 // pred_fallthru
      _
    %p144 = scmp.lt.s32.totalorder %s9, 2
    // Predicated region
    $region13: #{encoder_decoder_fwd.29} parent=5 // pred_check
      %p145 = pneg %p144
    $region14: #{encoder_decoder_fwd.29} parent=5 // pred_check_branch
      %147 = sbr.rel (%p145) target = $region16
    $region15: #{encoder_decoder_fwd.29} parent=5 // pred_region
      // Predicated region
      $region17: #{encoder_decoder_fwd.29} parent=15 // pred_check
        %p148 = pneg %p43
      $region18: #{encoder_decoder_fwd.29} parent=15 // pred_check_branch
        %150 = sbr.rel (%p148) target = $region20
      $region19: #{encoder_decoder_fwd.29} parent=15 // pred_region
        %p151 = scmp.lt.s32.totalorder %s16, 1
        %s152 = scalar_select %p151, %s16, 1
        %p153 = scmp.lt.s32.totalorder %s17, 0
        %s154 = scalar_select %p153, %s17, 0
        %s155 = sadd.s32 %s154, %s152
        %s156 = smul.addr %s155, 8
        %s157 = scalar_lea.vmem %s0, %s156
      $region20: #{encoder_decoder_fwd.29} parent=15 // pred_fallthru
        _
      // Predicated region
      $region21: #{encoder_decoder_fwd.29} parent=15 // pred_check
        %p158 = pneg %p69
      $region22: #{encoder_decoder_fwd.29} parent=15 // pred_check_branch
        %160 = sbr.rel (%p158) target = $region24
      $region23: #{encoder_decoder_fwd.29} parent=15 // pred_region
        %p161 = scmp.lt.s32.totalorder %s16, 1
        %s162 = scalar_select %p161, %s16, 1
        %s163 = smul.addr %s162, 8
        %s164 = scalar_lea.vmem %s1, %s163
      $region24: #{encoder_decoder_fwd.29} parent=15 // pred_fallthru
        _
      // Predicated region
      $region25: #{encoder_decoder_fwd.29} parent=15 // pred_check
        %p165 = pneg %p95
      $region26: #{encoder_decoder_fwd.29} parent=15 // pred_check_branch
        %167 = sbr.rel (%p165) target = $region28
      $region27: #{encoder_decoder_fwd.29} parent=15 // pred_region
        %p168 = scmp.lt.s32.totalorder %s16, 1
        %s169 = scalar_select %p168, %s16, 1
        %s170 = smul.addr %s169, 8
        %s171 = scalar_lea.vmem %s2, %s170
      $region28: #{encoder_decoder_fwd.29} parent=15 // pred_fallthru
        _
    $region16: #{encoder_decoder_fwd.29} parent=5 // pred_fallthru
      _
    %p172 = scmp.le.s32.totalorder 1, %s9
    %p173 = scmp.lt.s32.totalorder %s9, 3
    %p174 = pnand %p172, %p173
    %p175 = pneg %p174
    // Predicated region
    $region29: #{encoder_decoder_fwd.29} parent=5 // pred_check
      _
    $region30: #{encoder_decoder_fwd.29} parent=5 // pred_check_branch
      %177 = sbr.rel (%p174) target = $region32
    $region31: #{encoder_decoder_fwd.29} parent=5 // pred_region
      %s178 = ssub.s32 %s9, 1
      %p179 = scmp.lt.s32.totalorder %s18, 1
      %s180 = scalar_select %p179, %s18, 1
      %p181 = scmp.lt.s32.totalorder %s19, 0
      %s182 = scalar_select %p181, %s19, 0
      %s183 = sadd.s32 %s182, %s180
      %s184 = smul.addr %s183, 8
      %s185 = scalar_lea.vmem %s0, %s184
      %p186 = pneg %p49
      %p187 = pneg %p46
      %p188 = scmp.lt.s32.totalorder %s18, 1
      %s189 = scalar_select %p188, %s18, 1
      %s190 = smul.addr %s189, 8
      %s191 = scalar_lea.vmem %s1, %s190
      %p192 = pneg %p75
      %p193 = pneg %p72
      %p194 = scmp.lt.s32.totalorder %s18, 1
      %s195 = scalar_select %p194, %s18, 1
      %s196 = smul.addr %s195, 8
      %s197 = scalar_lea.vmem %s2, %s196
      %p198 = pneg %p101
      %p199 = pneg %p98
      %p200 = pneg %p129
      %p201 = pneg %p126
      %p202 = scmp.lt.s32.totalorder %s18, 1
      %s203 = scalar_select %p202, %s18, 1
      %p204 = scmp.lt.s32.totalorder %s19, 0
      %s205 = scalar_select %p204, %s19, 0
      %s206 = sadd.s32 %s205, %s203
      %s207 = smul.addr %s206, 8
      %s208 = scalar_lea.vmem %s3, %s207
      %p209 = scmp.lt.s32.totalorder %s18, 1
      %s210 = scalar_select %p209, %s18, 1
      %p211 = scmp.lt.s32.totalorder %s19, 0
      %s212 = scalar_select %p211, %s19, 0
      %s213 = sadd.s32 %s212, %s210
      %s214 = smul.addr %s213, 8
      %s215 = scalar_lea.vmem %s0, %s214
      %p216 = scmp.lt.s32.totalorder %s18, 1
      %s217 = scalar_select %p216, %s18, 1
      %s218 = smul.addr %s217, 8
      %s219 = scalar_lea.vmem %s1, %s218
      %p220 = scmp.lt.s32.totalorder %s18, 1
      %s221 = scalar_select %p220, %s18, 1
      %s222 = smul.addr %s221, 8
      %s223 = scalar_lea.vmem %s2, %s222
      %p224 = scmp.lt.s32.totalorder %s18, 1
      %s225 = scalar_select %p224, %s18, 1
      %p226 = scmp.lt.s32.totalorder %s19, 0
      %s227 = scalar_select %p226, %s19, 0
      %s228 = sadd.s32 %s227, %s225
      %s229 = smul.addr %s228, 8
      %s230 = scalar_lea.vmem %s3, %s229
      %s232 = smul.u32 %s19, 8
      %v233 = vlaneseq
      %v234 = vshrl.u32 %v233, 7
      %v235 = vstv %s232
      %v236 = vadd.s32 %v234, %v235
      %v237 = vlaneseq
      %v238 = vand.u32 %v237, 127
      %vm239 = vcmp.ge.s32.totalorder %v236, %v238
      %v240 = vsel %vm239, 0.0, -1e+30
      %v241 = vld [vmem:[%s215] sm:$0xff]
      %v242 = vld [vmem:[%s219] sm:$0xff]
      %v243 = vld [vmem:[%s223] sm:$0xff]
      %v244 = vmul.f32 %v241, 0.35355338
      %v245 = vpack.c.bf16 %v244, %v244
      %v246 = vpack.c.bf16 %v242, %v242
      %v247 = vpack.c.bf16 %v243, %v243
      %vm248 = vcmask 64512
      %v250 = vsel %vm248, %v245, 0
      %v253 = vsel %vm248, %v246, 0
      %255 = vmatpush.bf16.xpose.msra.mxu0 0
      %256 = vmatpush.bf16.xpose.msra.mxu0 0
      %257 = vmatpush.bf16.xpose.msra.mxu0 0
      %258 = vmatpush.bf16.xpose.msra.mxu0 0
      %259 = vmatpush.bf16.xpose.msra.mxu0 0
      %260 = vmatpush.bf16.xpose.msra.mxu0 0
      %261 = vmatpush.bf16.xpose.msra.mxu0 0
      %262 = vmatpush.bf16.xpose.msra.mxu0 %v253
      %263 = vmatmul.bf16.gmra.mxu0 %v250
      %v264 = vpop.f32.mrf.mxu0
      %v265 = vadd.f32 %v240, %v264
      %v266 = vpop.f32.mrf.mxu0
      %267 = vdwg.mxu0
      %v268 = vsel %vm248, %v265, -inf
      %269 = vmax.xlane.f32.xlu0 %v268
      %v270 = vpop.xlane.xlu0 %269
      %v271 = vsub.f32 %v265, %v270
      %v272 = vmul.f32 %v271, 1.442695
      %v273 = vpow.pop %v272
      %v274 = vsel %vm248, %v273, 0.0
      %275 = vadd.xlane.f32.xlu0 %v274
      %v276 = vpop.xlane.xlu0 %275
      %v277 = vrcp.pop %v276
      %v278 = vmul.f32 %v273, %v277
      %v279 = vpack.c.bf16 %v278, %v278
      %v281 = vsel %vm248, %v279, 0
      %vm283 = vcmask 1043456
      %v285 = vsel %vm283, %v247, 0
      %287 = vmatpush.bf16.msra.mxu0 0
      %288 = vmatpush.bf16.msra.mxu0 0
      %289 = vmatpush.bf16.msra.mxu0 0
      %290 = vmatpush.bf16.msra.mxu0 0
      %291 = vmatpush.bf16.msra.mxu0 0
      %292 = vmatpush.bf16.msra.mxu0 0
      %293 = vmatpush.bf16.msra.mxu0 0
      %294 = vmatpush.bf16.msra.mxu0 %v285
      %295 = vmatmul.bf16.gmra.mxu0 %v281
      %v296 = vpop.f32.mrf.mxu0
      %v297 = vadd.f32 0.0, %v296
      %v298 = vpop.f32.mrf.mxu0
      %299 = vdwg.mxu0
      %301 = vrot.lane.b32.xlu0 %v245, 120
      %v302 = vpop.permute.xlu0 %301
      %304 = vrot.lane.b32.xlu0 %v246, 120
      %v305 = vpop.permute.xlu0 %304
      %v307 = vsel %vm248, %v302, 0
      %v310 = vsel %vm248, %v305, 0
      %312 = vmatpush.bf16.xpose.msra.mxu0 0
      %313 = vmatpush.bf16.xpose.msra.mxu0 0
      %314 = vmatpush.bf16.xpose.msra.mxu0 0
      %315 = vmatpush.bf16.xpose.msra.mxu0 0
      %316 = vmatpush.bf16.xpose.msra.mxu0 0
      %317 = vmatpush.bf16.xpose.msra.mxu0 0
      %318 = vmatpush.bf16.xpose.msra.mxu0 0
      %319 = vmatpush.bf16.xpose.msra.mxu0 %v310
      %320 = vmatmul.bf16.gmra.mxu0 %v307
      %v321 = vpop.f32.mrf.mxu0
      %v322 = vadd.f32 %v240, %v321
      %v323 = vpop.f32.mrf.mxu0
      %324 = vdwg.mxu0
      %v325 = vsel %vm248, %v322, -inf
      %326 = vmax.xlane.f32.xlu0 %v325
      %v327 = vpop.xlane.xlu0 %326
      %v328 = vsub.f32 %v322, %v327
      %v329 = vmul.f32 %v328, 1.442695
      %v330 = vpow.pop %v329
      %v331 = vsel %vm248, %v330, 0.0
      %332 = vadd.xlane.f32.xlu0 %v331
      %v333 = vpop.xlane.xlu0 %332
      %v334 = vrcp.pop %v333
      %v335 = vmul.f32 %v330, %v334
      %v336 = vpack.c.bf16 %v335, %v335
      %338 = vrot.lane.b32.xlu0 %v247, 120
      %v339 = vpop.permute.xlu0 %338
      %v341 = vsel %vm248, %v336, 0
      %v344 = vsel %vm283, %v339, 0
      %346 = vmatpush.bf16.msra.mxu0 0
      %347 = vmatpush.bf16.msra.mxu0 0
      %348 = vmatpush.bf16.msra.mxu0 0
      %349 = vmatpush.bf16.msra.mxu0 0
      %350 = vmatpush.bf16.msra.mxu0 0
      %351 = vmatpush.bf16.msra.mxu0 0
      %352 = vmatpush.bf16.msra.mxu0 0
      %353 = vmatpush.bf16.msra.mxu0 %v344
      %354 = vmatmul.bf16.gmra.mxu0 %v341
      %v355 = vpop.f32.mrf.mxu0
      %v356 = vadd.f32 0.0, %v355
      %v357 = vpop.f32.mrf.mxu0
      %358 = vdwg.mxu0
      %359 = vrot.lane.b32.xlu0 %v245, 112
      %v360 = vpop.permute.xlu0 %359
      %361 = vrot.lane.b32.xlu0 %v246, 112
      %v362 = vpop.permute.xlu0 %361
      %v364 = vsel %vm248, %v360, 0
      %v367 = vsel %vm248, %v362, 0
      %369 = vmatpush.bf16.xpose.msra.mxu0 0
      %370 = vmatpush.bf16.xpose.msra.mxu0 0
      %371 = vmatpush.bf16.xpose.msra.mxu0 0
      %372 = vmatpush.bf16.xpose.msra.mxu0 0
      %373 = vmatpush.bf16.xpose.msra.mxu0 0
      %374 = vmatpush.bf16.xpose.msra.mxu0 0
      %375 = vmatpush.bf16.xpose.msra.mxu0 0
      %376 = vmatpush.bf16.xpose.msra.mxu0 %v367
      %377 = vmatmul.bf16.gmra.mxu0 %v364
      %v378 = vpop.f32.mrf.mxu0
      %v379 = vadd.f32 %v240, %v378
      %v380 = vpop.f32.mrf.mxu0
      %381 = vdwg.mxu0
      %v382 = vsel %vm248, %v379, -inf
      %383 = vmax.xlane.f32.xlu0 %v382
      %v384 = vpop.xlane.xlu0 %383
      %v385 = vsub.f32 %v379, %v384
      %v386 = vmul.f32 %v385, 1.442695
      %v387 = vpow.pop %v386
      %v388 = vsel %vm248, %v387, 0.0
      %389 = vadd.xlane.f32.xlu0 %v388
      %v390 = vpop.xlane.xlu0 %389
      %v391 = vrcp.pop %v390
      %v392 = vmul.f32 %v387, %v391
      %v393 = vpack.c.bf16 %v392, %v392
      %394 = vrot.lane.b32.xlu0 %v247, 112
      %v395 = vpop.permute.xlu0 %394
      %v397 = vsel %vm248, %v393, 0
      %v400 = vsel %vm283, %v395, 0
      %402 = vmatpush.bf16.msra.mxu0 0
      %403 = vmatpush.bf16.msra.mxu0 0
      %404 = vmatpush.bf16.msra.mxu0 0
      %405 = vmatpush.bf16.msra.mxu0 0
      %406 = vmatpush.bf16.msra.mxu0 0
      %407 = vmatpush.bf16.msra.mxu0 0
      %408 = vmatpush.bf16.msra.mxu0 0
      %409 = vmatpush.bf16.msra.mxu0 %v400
      %410 = vmatmul.bf16.gmra.mxu0 %v397
      %v411 = vpop.f32.mrf.mxu0
      %v412 = vadd.f32 0.0, %v411
      %v413 = vpop.f32.mrf.mxu0
      %414 = vdwg.mxu0
      %415 = vrot.lane.b32.xlu0 %v245, 104
      %v416 = vpop.permute.xlu0 %415
      %417 = vrot.lane.b32.xlu0 %v246, 104
      %v418 = vpop.permute.xlu0 %417
      %v420 = vsel %vm248, %v416, 0
      %v423 = vsel %vm248, %v418, 0
      %425 = vmatpush.bf16.xpose.msra.mxu0 0
      %426 = vmatpush.bf16.xpose.msra.mxu0 0
      %427 = vmatpush.bf16.xpose.msra.mxu0 0
      %428 = vmatpush.bf16.xpose.msra.mxu0 0
      %429 = vmatpush.bf16.xpose.msra.mxu0 0
      %430 = vmatpush.bf16.xpose.msra.mxu0 0
      %431 = vmatpush.bf16.xpose.msra.mxu0 0
      %432 = vmatpush.bf16.xpose.msra.mxu0 %v423
      %433 = vmatmul.bf16.gmra.mxu0 %v420
      %v434 = vpop.f32.mrf.mxu0
      %v435 = vadd.f32 %v240, %v434
      %v436 = vpop.f32.mrf.mxu0
      %437 = vdwg.mxu0
      %v438 = vsel %vm248, %v435, -inf
      %439 = vmax.xlane.f32.xlu0 %v438
      %v440 = vpop.xlane.xlu0 %439
      %v441 = vsub.f32 %v435, %v440
      %v442 = vmul.f32 %v441, 1.442695
      %v443 = vpow.pop %v442
      %v444 = vsel %vm248, %v443, 0.0
      %445 = vadd.xlane.f32.xlu0 %v444
      %v446 = vpop.xlane.xlu0 %445
      %v447 = vrcp.pop %v446
      %v448 = vmul.f32 %v443, %v447
      %v449 = vpack.c.bf16 %v448, %v448
      %450 = vrot.lane.b32.xlu0 %v247, 104
      %v451 = vpop.permute.xlu0 %450
      %v453 = vsel %vm248, %v449, 0
      %v456 = vsel %vm283, %v451, 0
      %458 = vmatpush.bf16.msra.mxu0 0
      %459 = vmatpush.bf16.msra.mxu0 0
      %460 = vmatpush.bf16.msra.mxu0 0
      %461 = vmatpush.bf16.msra.mxu0 0
      %462 = vmatpush.bf16.msra.mxu0 0
      %463 = vmatpush.bf16.msra.mxu0 0
      %464 = vmatpush.bf16.msra.mxu0 0
      %465 = vmatpush.bf16.msra.mxu0 %v456
      %466 = vmatmul.bf16.gmra.mxu0 %v453
      %v467 = vpop.f32.mrf.mxu0
      %v468 = vadd.f32 0.0, %v467
      %v469 = vpop.f32.mrf.mxu0
      %470 = vdwg.mxu0
      %472 = vrot.lane.b32.xlu0 %v356, 8
      %v473 = vpop.permute.xlu0 %472
      %476 = vrot.lane.b32.xlu0 %v412, 16
      %v477 = vpop.permute.xlu0 %476
      %480 = vrot.lane.b32.xlu0 %v468, 24
      %v481 = vpop.permute.xlu0 %480
      %v483 = vsel %vm248, %v297, %v473
      %vm484 = vcmask 130048
      %v485 = vsel %vm484, %v483, %v477
      %vm486 = vcmask 195584
      %v487 = vsel %vm486, %v485, %v481
      %vm488 = vcmask 261120
      %489 = vst.msk [vmem:[%s230] sm:$0xff] %vm488, %v487
      %p490 = scmp.lt.s32.totalorder %s18, 1
      %s491 = scalar_select %p490, %s18, 1
      %p492 = scmp.lt.s32.totalorder %s19, 0
      %s493 = scalar_select %p492, %s19, 0
      %s494 = sadd.s32 %s493, %s491
      %s495 = smul.addr %s494, 8
      %s496 = scalar_lea.vmem %s3, %s495
      // Predicated region
      $region33: #{encoder_decoder_fwd.29} parent=31 // pred_check
        %p497 = pneg %p126
      $region34: #{encoder_decoder_fwd.29} parent=31 // pred_check_branch
        %499 = sbr.rel (%p497) target = $region36
      $region35: #{encoder_decoder_fwd.29} parent=31 // pred_region
        _
      $region36: #{encoder_decoder_fwd.29} parent=31 // pred_fallthru
        _
    $region32: #{encoder_decoder_fwd.29} parent=5 // pred_fallthru
      _
    %p500 = scmp.le.s32.totalorder 2, %s9
    // Predicated region
    $region37: #{encoder_decoder_fwd.29} parent=5 // pred_check
      %p501 = pneg %p500
    $region38: #{encoder_decoder_fwd.29} parent=5 // pred_check_branch
      %503 = sbr.rel (%p501) target = $region40
    $region39: #{encoder_decoder_fwd.29} parent=5 // pred_region
      %s504 = ssub.s32 %s9, 2
      // Predicated region
      $region41: #{encoder_decoder_fwd.29} parent=39 // pred_check
        %p505 = pneg %p132
      $region42: #{encoder_decoder_fwd.29} parent=39 // pred_check_branch
        %507 = sbr.rel (%p505) target = $region44
      $region43: #{encoder_decoder_fwd.29} parent=39 // pred_region
        %p508 = scmp.lt.s32.totalorder %s20, 1
        %s509 = scalar_select %p508, %s20, 1
        %p510 = scmp.lt.s32.totalorder %s21, 0
        %s511 = scalar_select %p510, %s21, 0
        %s512 = sadd.s32 %s511, %s509
        %s513 = smul.addr %s512, 8
        %s514 = scalar_lea.vmem %s3, %s513
      $region44: #{encoder_decoder_fwd.29} parent=39 // pred_fallthru
        _
    $region40: #{encoder_decoder_fwd.29} parent=5 // pred_fallthru
      _
  $region6: #{encoder_decoder_fwd.29} parent=0 // loop_footer
    %s13 = sadd.s32 1, %s9
  $region7: #{encoder_decoder_fwd.29} parent=0 // loop_footer_branch
    %8 = sbr.rel target = $region3
  $region8: #{encoder_decoder_fwd.29} parent=0 // loop_exit
    _

</llo_original>
